<compile_context>
chip_gen: v7x
topology: tpu7x:2x2x1
jax: 0.10.0
libtpu: 0.0.40
codegen_flags: <defaults>
</compile_context>

<pallas_src>
import functools

import jax
import jax.numpy as jnp
from jax.experimental import pallas as pl
from jax.experimental.pallas import tpu as pltpu


def _round_up(x, m):
    return ((x + m - 1) // m) * m


# ----------------------------------------------------------------------------
# Fused kernel: all LSTM layers + FC head, one time-chunk per grid step.
# ----------------------------------------------------------------------------
def _make_fused_kernel(num_layers, tc, hidden):
    H = hidden

    def kernel(*refs):
        if num_layers > 1:
            (x_ref, wih0_ref, wihR_ref, whh_ref, b_ref, wfc_ref, bfc_ref,
             out_ref, h_sc, c_sc, act_sc, g_sc) = refs
        else:
            (x_ref, wih0_ref, whh_ref, b_ref, wfc_ref, bfc_ref,
             out_ref, h_sc, c_sc, act_sc, g_sc) = refs
            wihR_ref = None

        bb = h_sc.shape[1]                 # batch rows in this block
        ti = pl.program_id(1)              # time-chunk index (sequential axis)

        @pl.when(ti == 0)
        def _():                           # new batch block -> reset recurrence
            h_sc[...] = jnp.zeros_like(h_sc)
            c_sc[...] = jnp.zeros_like(c_sc)

        for l in range(num_layers):
            # ---- chunk-wide, 4H-wide input->gates matmul (time folded in M) --
            if l == 0:
                inp2d = x_ref[0]                               # (tc*bb, D) bf16
                w_in = wih0_ref[...]                           # (D, 4H)  bf16
            else:
                inp2d = act_sc[...].astype(jnp.bfloat16)       # (tc*bb, H) bf16
                w_in = wihR_ref[l - 1]                         # (H, 4H)  bf16
            g_sc[...] = (jnp.dot(inp2d, w_in, preferred_element_type=jnp.float32)
                         + b_ref[l])                           # (tc*bb, 4H) f32

            # recurrent weights are loop-invariant: hoist out of the time loop
            whh_l = whh_ref[l]                                 # (H, 4H) bf16

            def step(t, carry):
                lo = t * bb
                if not isinstance(t, int):
                    lo = pl.multiple_of(lo, bb)
                h_prev = h_sc[l]                               # (bb, H) f32
                c_prev = c_sc[l]
                # single (bb, H) @ (H, 4H) recurrent matmul for all 4 gates
                gates = g_sc[pl.ds(lo, bb), :] + jnp.dot(
                    h_prev.astype(jnp.bfloat16), whh_l,
                    preferred_element_type=jnp.float32)        # (bb, 4H) f32
                sig = jax.nn.sigmoid(gates[:, : 3 * H])        # i, f, o slab
                i_g = sig[:, 0:H]
                f_g = sig[:, H:2 * H]
                o_g = sig[:, 2 * H:3 * H]
                g_g = jnp.tanh(gates[:, 3 * H:])               # g slab
                c_new = f_g * c_prev + i_g * g_g
                h_new = o_g * jnp.tanh(c_new)
                h_sc[l] = h_new
                c_sc[l] = c_new
                act_sc[pl.ds(lo, bb), :] = h_new               # feed next layer / FC
                return carry

            if tc <= 8:
                for t in range(tc):                            # short chunk: unroll
                    step(t, 0)
            else:
                jax.lax.fori_loop(0, tc, step, 0)

        # ---- fused FC head over the whole chunk (lane-dense Op) -------------
        y = jnp.dot(act_sc[...].astype(jnp.bfloat16), wfc_ref[...],
                    preferred_element_type=jnp.float32) + bfc_ref[...]
        out_ref[0] = y.astype(out_ref.dtype)

    return kernel


# ----------------------------------------------------------------------------
# Parameter init / prep (one-time, outside the jitted forward)
# ----------------------------------------------------------------------------
def init_params(key, input_size, hidden_size, num_layers, output_size):
    """Deterministic init matching PyTorch nn.LSTM / nn.Linear parameter shapes."""
    params = {"lstm": [], "fc": {}}
    k = 1.0 / jnp.sqrt(hidden_size)
    for layer in range(num_layers):
        d_in = input_size if layer == 0 else hidden_size
        key, k1, k2, k3, k4 = jax.random.split(key, 5)
        params["lstm"].append({
            "w_ih": jax.random.uniform(k1, (4 * hidden_size, d_in), jnp.float32, -k, k),
            "w_hh": jax.random.uniform(k2, (4 * hidden_size, hidden_size), jnp.float32, -k, k),
            "b_ih": jax.random.uniform(k3, (4 * hidden_size,), jnp.float32, -k, k),
            "b_hh": jax.random.uniform(k4, (4 * hidden_size,), jnp.float32, -k, k),
        })
    key, k1, k2 = jax.random.split(key, 3)
    params["fc"]["w"] = jax.random.uniform(k1, (output_size, hidden_size), jnp.float32, -k, k)
    params["fc"]["b"] = jax.random.uniform(k2, (output_size,), jnp.float32, -k, k)
    return params


_GATE_PERM = (0, 1, 3, 2)   # PyTorch gate order (i, f, g, o) -> kernel order (i, f, o, g)


def prepare_params(params, lane=128):
    """PyTorch-layout params -> kernel layout (fused 4H-wide, per-gate-permuted, bf16)."""
    lstm = params["lstm"]
    L = len(lstm)
    H = lstm[0]["w_hh"].shape[1]
    perm = jnp.array(_GATE_PERM)

    def pack_w(w):          # (4H, Din) -> (Din, 4H), gate order i,f,o,g
        wg = w.reshape(4, H, -1)[perm]                 # (4, H, Din)
        return jnp.transpose(wg, (2, 0, 1)).reshape(w.shape[1], 4 * H)

    def pack_b(b_ih, b_hh):  # combined bias, gate-permuted, (1, 4H)
        return (b_ih + b_hh).reshape(4, H)[perm].reshape(1, 4 * H)

    O = params["fc"]["w"].shape[0]
    Op = _round_up(O, lane)                            # lane-dense FC output
    wfc = jnp.pad(params["fc"]["w"].T, ((0, 0), (0, Op - O)))       # (H, Op)
    bfc = jnp.pad(params["fc"]["b"], (0, Op - O)).reshape(1, Op)    # (1, Op)

    kp = {
        "wih0": pack_w(lstm[0]["w_ih"]).astype(jnp.bfloat16),                        # (D, 4H)
        "whh": jnp.stack([pack_w(lp["w_hh"]) for lp in lstm]).astype(jnp.bfloat16),  # (L, H, 4H)
        "b": jnp.stack([pack_b(lp["b_ih"], lp["b_hh"])
                        for lp in lstm]).astype(jnp.float32),                        # (L, 1, 4H)
        "wfc": wfc.astype(jnp.bfloat16),                                             # (H, Op)
        "bfc": bfc.astype(jnp.float32),                                              # (1, Op)
    }
    if L > 1:
        kp["wihR"] = jnp.stack([pack_w(lp["w_ih"])
                                for lp in lstm[1:]]).astype(jnp.bfloat16)            # (L-1, H, 4H)
    return kp


# ----------------------------------------------------------------------------
# Forward wrapper
# ----------------------------------------------------------------------------
@functools.partial(jax.jit, static_argnames=("output_size",))
def multi_lstm_forward(kparams, x, *, output_size):
    """x: (B, T, input_size) -> (B, T, output_size).  Matches MultiLSTM.forward."""
    B, T, D = x.shape
    whh = kparams["whh"]
    L, H, _ = whh.shape
    Op = kparams["wfc"].shape[1]

    # ---- static blocking choices -----------------------------------------
    Bp = _round_up(B, 8)                   # sublane-pad the batch
    bb = Bp if Bp <= 256 else 256          # batch rows per block
    Bp = _round_up(Bp, bb)
    nB = Bp // bb
    tc = max(1, min(T, -(-256 // bb)))     # target tc*bb >= 256 (v6e/v7x MXU M)
    tc = min(tc, 64)                       # bound chunk VMEM scratch
    Tp = _round_up(T, tc)
    nT = Tp // tc

    # ---- time-major, padded, (nB, Tp*bb, D) bf16 layout --------------------
    xt = jnp.transpose(x.astype(jnp.float32), (1, 0, 2))            # (T, B, D)
    xt = jnp.pad(xt, ((0, Tp - T), (0, Bp - B), (0, 0)))
    xt = xt.reshape(Tp, nB, bb, D).transpose(1, 0, 2, 3).reshape(nB, Tp * bb, D)
    xt = xt.astype(jnp.bfloat16)

    kernel = _make_fused_kernel(L, tc, H)

    in_specs = [
        pl.BlockSpec((1, tc * bb, D), lambda bi, ti: (bi, ti, 0)),
        pl.BlockSpec((D, 4 * H), lambda bi, ti: (0, 0)),
    ]
    args = [xt, kparams["wih0"]]
    if L > 1:
        in_specs.append(pl.BlockSpec((L - 1, H, 4 * H), lambda bi, ti: (0, 0, 0)))
        args.append(kparams["wihR"])
    in_specs += [
        pl.BlockSpec((L, H, 4 * H), lambda bi, ti: (0, 0, 0)),
        pl.BlockSpec((L, 1, 4 * H), lambda bi, ti: (0, 0, 0)),
        pl.BlockSpec((H, Op), lambda bi, ti: (0, 0)),
        pl.BlockSpec((1, Op), lambda bi, ti: (0, 0)),
    ]
    args += [whh, kparams["b"], kparams["wfc"], kparams["bfc"]]

    # ---- VMEM budget + cost estimate (static python ints) ------------------
    weight_bytes = sum(int(a.size) * a.dtype.itemsize for a in args[1:])
    block_bytes = (tc * bb * D * 2 + tc * bb * Op * 4) * 2          # dbl-buffered x/out
    scratch_bytes = (2 * L * bb * H + tc * bb * H + tc * bb * 4 * H) * 4
    est_vmem = 2 * weight_bytes + block_bytes + scratch_bytes
    vmem_limit = int(min(64 * 1024 * 1024, max(32 * 1024 * 1024, 2 * est_vmem)))

    flops = (2 * Tp * Bp * 4 * H * (D + H)
             + (L - 1) * 2 * Tp * Bp * 4 * H * (2 * H)
             + 2 * Tp * Bp * H * Op)
    transcendentals = 5 * Tp * Bp * H * L
    bytes_accessed = int(xt.size) * 2 + Tp * Bp * Op * 4 + weight_bytes

    out = pl.pallas_call(
        kernel,
        out_shape=jax.ShapeDtypeStruct((nB, Tp * bb, Op), jnp.float32),
        grid_spec=pltpu.PrefetchScalarGridSpec(
            num_scalar_prefetch=0,
            grid=(nB, nT),
            in_specs=in_specs,
            out_specs=pl.BlockSpec((1, tc * bb, Op), lambda bi, ti: (bi, ti, 0)),
            scratch_shapes=[
                pltpu.VMEM((L, bb, H), jnp.float32),         # h state per layer
                pltpu.VMEM((L, bb, H), jnp.float32),         # c state per layer
                pltpu.VMEM((tc * bb, H), jnp.float32),       # chunk inter-layer acts
                pltpu.VMEM((tc * bb, 4 * H), jnp.float32),   # chunk input->gate preacts
            ],
        ),
        compiler_params=pltpu.CompilerParams(
            dimension_semantics=("parallel", "arbitrary"),
            vmem_limit_bytes=vmem_limit,
        ),
        cost_estimate=pl.CostEstimate(flops=flops,
                                      transcendentals=transcendentals,
                                      bytes_accessed=bytes_accessed),
    )(*args)

    out = out.reshape(nB, Tp, bb, Op).transpose(1, 0, 2, 3).reshape(Tp, Bp, Op)
    out = out[:T, :B, :output_size]
    return jnp.transpose(out, (1, 0, 2))                            # (B, T, O)


# ----------------------------------------------------------------------------
# Pure-JAX references (correctness checking only)
# ----------------------------------------------------------------------------
def reference_forward_f32(params, x):
    h_seq = x.astype(jnp.float32)
    B, T, _ = h_seq.shape
    for lp in params["lstm"]:
        H = lp["w_hh"].shape[1]
        h = jnp.zeros((B, H), jnp.float32)
        c = jnp.zeros((B, H), jnp.float32)
        outs = []
        for t in range(T):
            gates = (h_seq[:, t, :] @ lp["w_ih"].T + lp["b_ih"]
                     + h @ lp["w_hh"].T + lp["b_hh"])
            i_g = jax.nn.sigmoid(gates[:, 0 * H:1 * H])
            f_g = jax.nn.sigmoid(gates[:, 1 * H:2 * H])
            g_g = jnp.tanh(gates[:, 2 * H:3 * H])
            o_g = jax.nn.sigmoid(gates[:, 3 * H:4 * H])
            c = f_g * c + i_g * g_g
            h = o_g * jnp.tanh(c)
            outs.append(h)
        h_seq = jnp.stack(outs, axis=1)
    return h_seq @ params["fc"]["w"].T + params["fc"]["b"]


def reference_forward_bf16(params, x):
    """Same numerics as the kernel: bf16 matmul operands, f32 accumulation/state."""
    bf16, f32 = jnp.bfloat16, jnp.float32
    h_seq = x.astype(f32)
    B, T, _ = h_seq.shape
    for lp in params["lstm"]:
        H = lp["w_hh"].shape[1]
        wih = lp["w_ih"].T.astype(bf16)
        whh = lp["w_hh"].T.astype(bf16)
        b = (lp["b_ih"] + lp["b_hh"]).astype(f32)
        h = jnp.zeros((B, H), f32)
        c = jnp.zeros((B, H), f32)
        outs = []
        for t in range(T):
            gates = (jnp.dot(h_seq[:, t, :].astype(bf16), wih, preferred_element_type=f32)
                     + jnp.dot(h.astype(bf16), whh, preferred_element_type=f32) + b)
            i_g = jax.nn.sigmoid(gates[:, 0 * H:1 * H])
            f_g = jax.nn.sigmoid(gates[:, 1 * H:2 * H])
            g_g = jnp.tanh(gates[:, 2 * H:3 * H])
            o_g = jax.nn.sigmoid(gates[:, 3 * H:4 * H])
            c = f_g * c + i_g * g_g
            h = o_g * jnp.tanh(c)
            outs.append(h)
        h_seq = jnp.stack(outs, axis=1)
    return jnp.dot(h_seq.astype(bf16), params["fc"]["w"].T.astype(bf16),
                   preferred_element_type=f32) + params["fc"]["b"]


# ----------------------------------------------------------------------------
if __name__ == "__main__":
    batch, seq = 2, 8
    input_size, hidden_size, num_layers, output_size = 4, 32, 2, 4

    key = jax.random.PRNGKey(0)
    key, pkey, xkey = jax.random.split(key, 3)
    params = init_params(pkey, input_size, hidden_size, num_layers, output_size)
    kparams = prepare_params(params)
    x = jax.random.normal(xkey, (batch, seq, input_size), jnp.float32)

    out = multi_lstm_forward(kparams, x, output_size=output_size)
    out = jax.block_until_ready(out)
    assert out.shape == (batch, seq, output_size), out.shape

    # Tight check against a reference with identical bf16-operand numerics.
    ref_bf = reference_forward_bf16(params, x)
    err_bf = float(jnp.max(jnp.abs(out - ref_bf)))
    assert err_bf < 5e-3, f"bf16-reference mismatch: {err_bf}"

    # Loose sanity check against the exact-f32 PyTorch-equivalent math.
    ref_f32 = reference_forward_f32(params, x)
    err_f32 = float(jnp.max(jnp.abs(out - ref_f32)))
    assert err_f32 < 1.5e-1, f"f32-reference mismatch: {err_f32}"

    print("KERNEL_OK")
</pallas_src>

<mosaic_0001>
module attributes {stable_mosaic.version = 11 : i64} {
  func.func @kernel(%arg0: i32, %arg1: i32, %arg2: memref<1x64x4xbf16, #tpu.memory_space<vmem>>, %arg3: memref<4x128xbf16, #tpu.memory_space<vmem>>, %arg4: memref<1x32x128xbf16, #tpu.memory_space<vmem>>, %arg5: memref<2x32x128xbf16, #tpu.memory_space<vmem>>, %arg6: memref<2x1x128xf32, #tpu.memory_space<vmem>>, %arg7: memref<32x128xbf16, #tpu.memory_space<vmem>>, %arg8: memref<1x128xf32, #tpu.memory_space<vmem>>, %arg9: memref<1x64x128xf32, #tpu.memory_space<vmem>>, %arg10: memref<2x8x32xf32, #tpu.memory_space<vmem>>, %arg11: memref<2x8x32xf32, #tpu.memory_space<vmem>>, %arg12: memref<64x32xf32, #tpu.memory_space<vmem>>, %arg13: memref<64x128xf32, #tpu.memory_space<vmem>>) attributes {dimension_semantics = [#tpu.dimension_semantics<parallel>, #tpu.dimension_semantics<arbitrary>], iteration_bounds = array<i64: 1, 1>, scalar_prefetch = 0 : i64, scratch_operands = 4 : i64, tpu.core_type = #tpu.core_type<tc>, window_params = [{transform_indices = @transform_0, window_bounds = array<i64: 1, 64, 4>}, {pipeline_mode = #tpu.pipeline_mode<synchronous>, transform_indices = @transform_1, window_bounds = array<i64: 4, 128>}, {pipeline_mode = #tpu.pipeline_mode<synchronous>, transform_indices = @transform_2, window_bounds = array<i64: 1, 32, 128>}, {pipeline_mode = #tpu.pipeline_mode<synchronous>, transform_indices = @transform_3, window_bounds = array<i64: 2, 32, 128>}, {pipeline_mode = #tpu.pipeline_mode<synchronous>, transform_indices = @transform_4, window_bounds = array<i64: 2, 1, 128>}, {pipeline_mode = #tpu.pipeline_mode<synchronous>, transform_indices = @transform_5, window_bounds = array<i64: 32, 128>}, {pipeline_mode = #tpu.pipeline_mode<synchronous>, transform_indices = @transform_6, window_bounds = array<i64: 1, 128>}, {transform_indices = @transform_7, window_bounds = array<i64: 1, 64, 128>}]} {
    %c0_i32 = arith.constant 0 : i32
    %0 = arith.cmpi eq, %arg1, %c0_i32 : i32
    %1 = arith.extui %0 : i1 to i32
    %c0_i32_0 = arith.constant 0 : i32
    %2 = arith.cmpi ne, %1, %c0_i32_0 : i32
    scf.if %2 {
      %cst_317 = arith.constant 0.000000e+00 : f32
      %532 = vector.broadcast %cst_317 : f32 to vector<2x8x32xf32>
      %c0_318 = arith.constant 0 : index
      %c0_319 = arith.constant 0 : index
      %c0_320 = arith.constant 0 : index
      %533 = vector.load %arg10[%c0_318, %c0_319, %c0_320] : memref<2x8x32xf32, #tpu.memory_space<vmem>>, vector<2x8x32xf32>
      tpu.vector_store %arg10[%c0_318, %c0_319, %c0_320], %532 {strides = array<i32>} : memref<2x8x32xf32, #tpu.memory_space<vmem>>, vector<2x8x32xf32>,
      %cst_321 = arith.constant 0.000000e+00 : f32
      %534 = vector.broadcast %cst_321 : f32 to vector<2x8x32xf32>
      %c0_322 = arith.constant 0 : index
      %c0_323 = arith.constant 0 : index
      %c0_324 = arith.constant 0 : index
      %535 = vector.load %arg11[%c0_322, %c0_323, %c0_324] : memref<2x8x32xf32, #tpu.memory_space<vmem>>, vector<2x8x32xf32>
      tpu.vector_store %arg11[%c0_322, %c0_323, %c0_324], %534 {strides = array<i32>} : memref<2x8x32xf32, #tpu.memory_space<vmem>>, vector<2x8x32xf32>,
    } else {
    }
    %c0 = arith.constant 0 : index
    %c0_1 = arith.constant 0 : index
    %c0_2 = arith.constant 0 : index
    %3 = vector.load %arg2[%c0, %c0_1, %c0_2] : memref<1x64x4xbf16, #tpu.memory_space<vmem>>, vector<1x64x4xbf16>
    %4 = vector.shape_cast %3 : vector<1x64x4xbf16> to vector<64x4xbf16>
    %c0_3 = arith.constant 0 : index
    %c0_4 = arith.constant 0 : index
    %5 = vector.load %arg3[%c0_3, %c0_4] : memref<4x128xbf16, #tpu.memory_space<vmem>>, vector<4x128xbf16>
    %cst = arith.constant dense<0.000000e+00> : vector<64x128xf32>
    %6 = tpu.matmul %4, %5, %cst {dimension_numbers = #tpu.dot_dimension_numbers<[1], [0], [0], [1], [0, 0, 1, 1], [], []>} : vector<64x4xbf16>, vector<4x128xbf16>, vector<64x128xf32> -> vector<64x128xf32>
    %c0_5 = arith.constant 0 : index
    %c0_6 = arith.constant 0 : index
    %c0_7 = arith.constant 0 : index
    %7 = vector.load %arg6[%c0_5, %c0_6, %c0_7] : memref<2x1x128xf32, #tpu.memory_space<vmem>>, vector<1x1x128xf32>
    %8 = vector.shape_cast %7 : vector<1x1x128xf32> to vector<1x128xf32>
    %9 = vector.broadcast %8 : vector<1x128xf32> to vector<64x128xf32>
    %10 = arith.addf %6, %9 : vector<64x128xf32>
    %c0_8 = arith.constant 0 : index
    %c0_9 = arith.constant 0 : index
    %11 = vector.load %arg13[%c0_8, %c0_9] : memref<64x128xf32, #tpu.memory_space<vmem>>, vector<64x128xf32>
    tpu.vector_store %arg13[%c0_8, %c0_9], %10 {strides = array<i32>} : memref<64x128xf32, #tpu.memory_space<vmem>>, vector<64x128xf32>,
    %c0_10 = arith.constant 0 : index
    %c0_11 = arith.constant 0 : index
    %c0_12 = arith.constant 0 : index
    %12 = vector.load %arg5[%c0_10, %c0_11, %c0_12] : memref<2x32x128xbf16, #tpu.memory_space<vmem>>, vector<1x32x128xbf16>
    %13 = vector.shape_cast %12 : vector<1x32x128xbf16> to vector<32x128xbf16>
    %c0_13 = arith.constant 0 : index
    %c0_14 = arith.constant 0 : index
    %c0_15 = arith.constant 0 : index
    %14 = vector.load %arg10[%c0_13, %c0_14, %c0_15] : memref<2x8x32xf32, #tpu.memory_space<vmem>>, vector<1x8x32xf32>
    %15 = vector.shape_cast %14 : vector<1x8x32xf32> to vector<8x32xf32>
    %c0_16 = arith.constant 0 : index
    %c0_17 = arith.constant 0 : index
    %c0_18 = arith.constant 0 : index
    %16 = vector.load %arg11[%c0_16, %c0_17, %c0_18] : memref<2x8x32xf32, #tpu.memory_space<vmem>>, vector<1x8x32xf32>
    %17 = vector.shape_cast %16 : vector<1x8x32xf32> to vector<8x32xf32>
    %c0_19 = arith.constant 0 : index
    %c0_20 = arith.constant 0 : index
    %18 = vector.load %arg13[%c0_19, %c0_20] : memref<64x128xf32, #tpu.memory_space<vmem>>, vector<8x128xf32>
    %19 = arith.truncf %15 : vector<8x32xf32> to vector<8x32xbf16>
    %cst_21 = arith.constant dense<0.000000e+00> : vector<8x128xf32>
    %20 = tpu.matmul %19, %13, %cst_21 {dimension_numbers = #tpu.dot_dimension_numbers<[1], [0], [0], [1], [0, 0, 1, 1], [], []>} : vector<8x32xbf16>, vector<32x128xbf16>, vector<8x128xf32> -> vector<8x128xf32>
    %21 = arith.addf %18, %20 : vector<8x128xf32>
    %22 = vector.extract_strided_slice %21 {offsets = [0, 0], sizes = [8, 96], strides = [1, 1]} : vector<8x128xf32> to vector<8x96xf32>
    %23 = arith.negf %22 : vector<8x96xf32>
    %24 = math.exp %23 : vector<8x96xf32>
    %cst_22 = arith.constant 1.000000e+00 : f32
    %25 = vector.broadcast %cst_22 : f32 to vector<8x96xf32>
    %26 = arith.addf %25, %24 : vector<8x96xf32>
    %27 = arith.divf %25, %26 : vector<8x96xf32>
    %28 = vector.extract_strided_slice %27 {offsets = [0, 0], sizes = [8, 32], strides = [1, 1]} : vector<8x96xf32> to vector<8x32xf32>
    %29 = vector.extract_strided_slice %27 {offsets = [0, 32], sizes = [8, 32], strides = [1, 1]} : vector<8x96xf32> to vector<8x32xf32>
    %30 = vector.extract_strided_slice %27 {offsets = [0, 64], sizes = [8, 32], strides = [1, 1]} : vector<8x96xf32> to vector<8x32xf32>
    %31 = vector.extract_strided_slice %21 {offsets = [0, 96], sizes = [8, 32], strides = [1, 1]} : vector<8x128xf32> to vector<8x32xf32>
    %32 = math.tanh %31 : vector<8x32xf32>
    %33 = arith.mulf %29, %17 : vector<8x32xf32>
    %34 = arith.mulf %28, %32 : vector<8x32xf32>
    %35 = arith.addf %33, %34 : vector<8x32xf32>
    %36 = math.tanh %35 : vector<8x32xf32>
    %37 = arith.mulf %30, %36 : vector<8x32xf32>
    %c0_23 = arith.constant 0 : index
    %c0_24 = arith.constant 0 : index
    %c0_25 = arith.constant 0 : index
    %38 = vector.load %arg10[%c0_23, %c0_24, %c0_25] : memref<2x8x32xf32, #tpu.memory_space<vmem>>, vector<1x8x32xf32>
    %39 = vector.shape_cast %38 : vector<1x8x32xf32> to vector<8x32xf32>
    %40 = vector.shape_cast %37 : vector<8x32xf32> to vector<1x8x32xf32>
    tpu.vector_store %arg10[%c0_23, %c0_24, %c0_25], %40 {strides = array<i32>} : memref<2x8x32xf32, #tpu.memory_space<vmem>>, vector<1x8x32xf32>,
    %c0_26 = arith.constant 0 : index
    %c0_27 = arith.constant 0 : index
    %c0_28 = arith.constant 0 : index
    %41 = vector.load %arg11[%c0_26, %c0_27, %c0_28] : memref<2x8x32xf32, #tpu.memory_space<vmem>>, vector<1x8x32xf32>
    %42 = vector.shape_cast %41 : vector<1x8x32xf32> to vector<8x32xf32>
    %43 = vector.shape_cast %35 : vector<8x32xf32> to vector<1x8x32xf32>
    tpu.vector_store %arg11[%c0_26, %c0_27, %c0_28], %43 {strides = array<i32>} : memref<2x8x32xf32, #tpu.memory_space<vmem>>, vector<1x8x32xf32>,
    %c0_29 = arith.constant 0 : index
    %c0_30 = arith.constant 0 : index
    %44 = vector.load %arg12[%c0_29, %c0_30] : memref<64x32xf32, #tpu.memory_space<vmem>>, vector<8x32xf32>
    tpu.vector_store %arg12[%c0_29, %c0_30], %37 {strides = array<i32>} : memref<64x32xf32, #tpu.memory_space<vmem>>, vector<8x32xf32>,
    %c0_31 = arith.constant 0 : index
    %c0_32 = arith.constant 0 : index
    %c0_33 = arith.constant 0 : index
    %45 = vector.load %arg10[%c0_31, %c0_32, %c0_33] : memref<2x8x32xf32, #tpu.memory_space<vmem>>, vector<1x8x32xf32>
    %46 = vector.shape_cast %45 : vector<1x8x32xf32> to vector<8x32xf32>
    %c0_34 = arith.constant 0 : index
    %c0_35 = arith.constant 0 : index
    %c0_36 = arith.constant 0 : index
    %47 = vector.load %arg11[%c0_34, %c0_35, %c0_36] : memref<2x8x32xf32, #tpu.memory_space<vmem>>, vector<1x8x32xf32>
    %48 = vector.shape_cast %47 : vector<1x8x32xf32> to vector<8x32xf32>
    %c8 = arith.constant 8 : index
    %c0_37 = arith.constant 0 : index
    %49 = vector.load %arg13[%c8, %c0_37] : memref<64x128xf32, #tpu.memory_space<vmem>>, vector<8x128xf32>
    %50 = arith.truncf %46 : vector<8x32xf32> to vector<8x32xbf16>
    %cst_38 = arith.constant dense<0.000000e+00> : vector<8x128xf32>
    %51 = tpu.matmul %50, %13, %cst_38 {dimension_numbers = #tpu.dot_dimension_numbers<[1], [0], [0], [1], [0, 0, 1, 1], [], []>} : vector<8x32xbf16>, vector<32x128xbf16>, vector<8x128xf32> -> vector<8x128xf32>
    %52 = arith.addf %49, %51 : vector<8x128xf32>
    %53 = vector.extract_strided_slice %52 {offsets = [0, 0], sizes = [8, 96], strides = [1, 1]} : vector<8x128xf32> to vector<8x96xf32>
    %54 = arith.negf %53 : vector<8x96xf32>
    %55 = math.exp %54 : vector<8x96xf32>
    %cst_39 = arith.constant 1.000000e+00 : f32
    %56 = vector.broadcast %cst_39 : f32 to vector<8x96xf32>
    %57 = arith.addf %56, %55 : vector<8x96xf32>
    %58 = arith.divf %56, %57 : vector<8x96xf32>
    %59 = vector.extract_strided_slice %58 {offsets = [0, 0], sizes = [8, 32], strides = [1, 1]} : vector<8x96xf32> to vector<8x32xf32>
    %60 = vector.extract_strided_slice %58 {offsets = [0, 32], sizes = [8, 32], strides = [1, 1]} : vector<8x96xf32> to vector<8x32xf32>
    %61 = vector.extract_strided_slice %58 {offsets = [0, 64], sizes = [8, 32], strides = [1, 1]} : vector<8x96xf32> to vector<8x32xf32>
    %62 = vector.extract_strided_slice %52 {offsets = [0, 96], sizes = [8, 32], strides = [1, 1]} : vector<8x128xf32> to vector<8x32xf32>
    %63 = math.tanh %62 : vector<8x32xf32>
    %64 = arith.mulf %60, %48 : vector<8x32xf32>
    %65 = arith.mulf %59, %63 : vector<8x32xf32>
    %66 = arith.addf %64, %65 : vector<8x32xf32>
    %67 = math.tanh %66 : vector<8x32xf32>
    %68 = arith.mulf %61, %67 : vector<8x32xf32>
    %c0_40 = arith.constant 0 : index
    %c0_41 = arith.constant 0 : index
    %c0_42 = arith.constant 0 : index
    %69 = vector.load %arg10[%c0_40, %c0_41, %c0_42] : memref<2x8x32xf32, #tpu.memory_space<vmem>>, vector<1x8x32xf32>
    %70 = vector.shape_cast %69 : vector<1x8x32xf32> to vector<8x32xf32>
    %71 = vector.shape_cast %68 : vector<8x32xf32> to vector<1x8x32xf32>
    tpu.vector_store %arg10[%c0_40, %c0_41, %c0_42], %71 {strides = array<i32>} : memref<2x8x32xf32, #tpu.memory_space<vmem>>, vector<1x8x32xf32>,
    %c0_43 = arith.constant 0 : index
    %c0_44 = arith.constant 0 : index
    %c0_45 = arith.constant 0 : index
    %72 = vector.load %arg11[%c0_43, %c0_44, %c0_45] : memref<2x8x32xf32, #tpu.memory_space<vmem>>, vector<1x8x32xf32>
    %73 = vector.shape_cast %72 : vector<1x8x32xf32> to vector<8x32xf32>
    %74 = vector.shape_cast %66 : vector<8x32xf32> to vector<1x8x32xf32>
    tpu.vector_store %arg11[%c0_43, %c0_44, %c0_45], %74 {strides = array<i32>} : memref<2x8x32xf32, #tpu.memory_space<vmem>>, vector<1x8x32xf32>,
    %c8_46 = arith.constant 8 : index
    %c0_47 = arith.constant 0 : index
    %75 = vector.load %arg12[%c8_46, %c0_47] : memref<64x32xf32, #tpu.memory_space<vmem>>, vector<8x32xf32>
    tpu.vector_store %arg12[%c8_46, %c0_47], %68 {strides = array<i32>} : memref<64x32xf32, #tpu.memory_space<vmem>>, vector<8x32xf32>,
    %c0_48 = arith.constant 0 : index
    %c0_49 = arith.constant 0 : index
    %c0_50 = arith.constant 0 : index
    %76 = vector.load %arg10[%c0_48, %c0_49, %c0_50] : memref<2x8x32xf32, #tpu.memory_space<vmem>>, vector<1x8x32xf32>
    %77 = vector.shape_cast %76 : vector<1x8x32xf32> to vector<8x32xf32>
    %c0_51 = arith.constant 0 : index
    %c0_52 = arith.constant 0 : index
    %c0_53 = arith.constant 0 : index
    %78 = vector.load %arg11[%c0_51, %c0_52, %c0_53] : memref<2x8x32xf32, #tpu.memory_space<vmem>>, vector<1x8x32xf32>
    %79 = vector.shape_cast %78 : vector<1x8x32xf32> to vector<8x32xf32>
    %c16 = arith.constant 16 : index
    %c0_54 = arith.constant 0 : index
    %80 = vector.load %arg13[%c16, %c0_54] : memref<64x128xf32, #tpu.memory_space<vmem>>, vector<8x128xf32>
    %81 = arith.truncf %77 : vector<8x32xf32> to vector<8x32xbf16>
    %cst_55 = arith.constant dense<0.000000e+00> : vector<8x128xf32>
    %82 = tpu.matmul %81, %13, %cst_55 {dimension_numbers = #tpu.dot_dimension_numbers<[1], [0], [0], [1], [0, 0, 1, 1], [], []>} : vector<8x32xbf16>, vector<32x128xbf16>, vector<8x128xf32> -> vector<8x128xf32>
    %83 = arith.addf %80, %82 : vector<8x128xf32>
    %84 = vector.extract_strided_slice %83 {offsets = [0, 0], sizes = [8, 96], strides = [1, 1]} : vector<8x128xf32> to vector<8x96xf32>
    %85 = arith.negf %84 : vector<8x96xf32>
    %86 = math.exp %85 : vector<8x96xf32>
    %cst_56 = arith.constant 1.000000e+00 : f32
    %87 = vector.broadcast %cst_56 : f32 to vector<8x96xf32>
    %88 = arith.addf %87, %86 : vector<8x96xf32>
    %89 = arith.divf %87, %88 : vector<8x96xf32>
    %90 = vector.extract_strided_slice %89 {offsets = [0, 0], sizes = [8, 32], strides = [1, 1]} : vector<8x96xf32> to vector<8x32xf32>
    %91 = vector.extract_strided_slice %89 {offsets = [0, 32], sizes = [8, 32], strides = [1, 1]} : vector<8x96xf32> to vector<8x32xf32>
    %92 = vector.extract_strided_slice %89 {offsets = [0, 64], sizes = [8, 32], strides = [1, 1]} : vector<8x96xf32> to vector<8x32xf32>
    %93 = vector.extract_strided_slice %83 {offsets = [0, 96], sizes = [8, 32], strides = [1, 1]} : vector<8x128xf32> to vector<8x32xf32>
    %94 = math.tanh %93 : vector<8x32xf32>
    %95 = arith.mulf %91, %79 : vector<8x32xf32>
    %96 = arith.mulf %90, %94 : vector<8x32xf32>
    %97 = arith.addf %95, %96 : vector<8x32xf32>
    %98 = math.tanh %97 : vector<8x32xf32>
    %99 = arith.mulf %92, %98 : vector<8x32xf32>
    %c0_57 = arith.constant 0 : index
    %c0_58 = arith.constant 0 : index
    %c0_59 = arith.constant 0 : index
    %100 = vector.load %arg10[%c0_57, %c0_58, %c0_59] : memref<2x8x32xf32, #tpu.memory_space<vmem>>, vector<1x8x32xf32>
    %101 = vector.shape_cast %100 : vector<1x8x32xf32> to vector<8x32xf32>
    %102 = vector.shape_cast %99 : vector<8x32xf32> to vector<1x8x32xf32>
    tpu.vector_store %arg10[%c0_57, %c0_58, %c0_59], %102 {strides = array<i32>} : memref<2x8x32xf32, #tpu.memory_space<vmem>>, vector<1x8x32xf32>,
    %c0_60 = arith.constant 0 : index
    %c0_61 = arith.constant 0 : index
    %c0_62 = arith.constant 0 : index
    %103 = vector.load %arg11[%c0_60, %c0_61, %c0_62] : memref<2x8x32xf32, #tpu.memory_space<vmem>>, vector<1x8x32xf32>
    %104 = vector.shape_cast %103 : vector<1x8x32xf32> to vector<8x32xf32>
    %105 = vector.shape_cast %97 : vector<8x32xf32> to vector<1x8x32xf32>
    tpu.vector_store %arg11[%c0_60, %c0_61, %c0_62], %105 {strides = array<i32>} : memref<2x8x32xf32, #tpu.memory_space<vmem>>, vector<1x8x32xf32>,
    %c16_63 = arith.constant 16 : index
    %c0_64 = arith.constant 0 : index
    %106 = vector.load %arg12[%c16_63, %c0_64] : memref<64x32xf32, #tpu.memory_space<vmem>>, vector<8x32xf32>
    tpu.vector_store %arg12[%c16_63, %c0_64], %99 {strides = array<i32>} : memref<64x32xf32, #tpu.memory_space<vmem>>, vector<8x32xf32>,
    %c0_65 = arith.constant 0 : index
    %c0_66 = arith.constant 0 : index
    %c0_67 = arith.constant 0 : index
    %107 = vector.load %arg10[%c0_65, %c0_66, %c0_67] : memref<2x8x32xf32, #tpu.memory_space<vmem>>, vector<1x8x32xf32>
    %108 = vector.shape_cast %107 : vector<1x8x32xf32> to vector<8x32xf32>
    %c0_68 = arith.constant 0 : index
    %c0_69 = arith.constant 0 : index
    %c0_70 = arith.constant 0 : index
    %109 = vector.load %arg11[%c0_68, %c0_69, %c0_70] : memref<2x8x32xf32, #tpu.memory_space<vmem>>, vector<1x8x32xf32>
    %110 = vector.shape_cast %109 : vector<1x8x32xf32> to vector<8x32xf32>
    %c24 = arith.constant 24 : index
    %c0_71 = arith.constant 0 : index
    %111 = vector.load %arg13[%c24, %c0_71] : memref<64x128xf32, #tpu.memory_space<vmem>>, vector<8x128xf32>
    %112 = arith.truncf %108 : vector<8x32xf32> to vector<8x32xbf16>
    %cst_72 = arith.constant dense<0.000000e+00> : vector<8x128xf32>
    %113 = tpu.matmul %112, %13, %cst_72 {dimension_numbers = #tpu.dot_dimension_numbers<[1], [0], [0], [1], [0, 0, 1, 1], [], []>} : vector<8x32xbf16>, vector<32x128xbf16>, vector<8x128xf32> -> vector<8x128xf32>
    %114 = arith.addf %111, %113 : vector<8x128xf32>
    %115 = vector.extract_strided_slice %114 {offsets = [0, 0], sizes = [8, 96], strides = [1, 1]} : vector<8x128xf32> to vector<8x96xf32>
    %116 = arith.negf %115 : vector<8x96xf32>
    %117 = math.exp %116 : vector<8x96xf32>
    %cst_73 = arith.constant 1.000000e+00 : f32
    %118 = vector.broadcast %cst_73 : f32 to vector<8x96xf32>
    %119 = arith.addf %118, %117 : vector<8x96xf32>
    %120 = arith.divf %118, %119 : vector<8x96xf32>
    %121 = vector.extract_strided_slice %120 {offsets = [0, 0], sizes = [8, 32], strides = [1, 1]} : vector<8x96xf32> to vector<8x32xf32>
    %122 = vector.extract_strided_slice %120 {offsets = [0, 32], sizes = [8, 32], strides = [1, 1]} : vector<8x96xf32> to vector<8x32xf32>
    %123 = vector.extract_strided_slice %120 {offsets = [0, 64], sizes = [8, 32], strides = [1, 1]} : vector<8x96xf32> to vector<8x32xf32>
    %124 = vector.extract_strided_slice %114 {offsets = [0, 96], sizes = [8, 32], strides = [1, 1]} : vector<8x128xf32> to vector<8x32xf32>
    %125 = math.tanh %124 : vector<8x32xf32>
    %126 = arith.mulf %122, %110 : vector<8x32xf32>
    %127 = arith.mulf %121, %125 : vector<8x32xf32>
    %128 = arith.addf %126, %127 : vector<8x32xf32>
    %129 = math.tanh %128 : vector<8x32xf32>
    %130 = arith.mulf %123, %129 : vector<8x32xf32>
    %c0_74 = arith.constant 0 : index
    %c0_75 = arith.constant 0 : index
    %c0_76 = arith.constant 0 : index
    %131 = vector.load %arg10[%c0_74, %c0_75, %c0_76] : memref<2x8x32xf32, #tpu.memory_space<vmem>>, vector<1x8x32xf32>
    %132 = vector.shape_cast %131 : vector<1x8x32xf32> to vector<8x32xf32>
    %133 = vector.shape_cast %130 : vector<8x32xf32> to vector<1x8x32xf32>
    tpu.vector_store %arg10[%c0_74, %c0_75, %c0_76], %133 {strides = array<i32>} : memref<2x8x32xf32, #tpu.memory_space<vmem>>, vector<1x8x32xf32>,
    %c0_77 = arith.constant 0 : index
    %c0_78 = arith.constant 0 : index
    %c0_79 = arith.constant 0 : index
    %134 = vector.load %arg11[%c0_77, %c0_78, %c0_79] : memref<2x8x32xf32, #tpu.memory_space<vmem>>, vector<1x8x32xf32>
    %135 = vector.shape_cast %134 : vector<1x8x32xf32> to vector<8x32xf32>
    %136 = vector.shape_cast %128 : vector<8x32xf32> to vector<1x8x32xf32>
    tpu.vector_store %arg11[%c0_77, %c0_78, %c0_79], %136 {strides = array<i32>} : memref<2x8x32xf32, #tpu.memory_space<vmem>>, vector<1x8x32xf32>,
    %c24_80 = arith.constant 24 : index
    %c0_81 = arith.constant 0 : index
    %137 = vector.load %arg12[%c24_80, %c0_81] : memref<64x32xf32, #tpu.memory_space<vmem>>, vector<8x32xf32>
    tpu.vector_store %arg12[%c24_80, %c0_81], %130 {strides = array<i32>} : memref<64x32xf32, #tpu.memory_space<vmem>>, vector<8x32xf32>,
    %c0_82 = arith.constant 0 : index
    %c0_83 = arith.constant 0 : index
    %c0_84 = arith.constant 0 : index
    %138 = vector.load %arg10[%c0_82, %c0_83, %c0_84] : memref<2x8x32xf32, #tpu.memory_space<vmem>>, vector<1x8x32xf32>
    %139 = vector.shape_cast %138 : vector<1x8x32xf32> to vector<8x32xf32>
    %c0_85 = arith.constant 0 : index
    %c0_86 = arith.constant 0 : index
    %c0_87 = arith.constant 0 : index
    %140 = vector.load %arg11[%c0_85, %c0_86, %c0_87] : memref<2x8x32xf32, #tpu.memory_space<vmem>>, vector<1x8x32xf32>
    %141 = vector.shape_cast %140 : vector<1x8x32xf32> to vector<8x32xf32>
    %c32 = arith.constant 32 : index
    %c0_88 = arith.constant 0 : index
    %142 = vector.load %arg13[%c32, %c0_88] : memref<64x128xf32, #tpu.memory_space<vmem>>, vector<8x128xf32>
    %143 = arith.truncf %139 : vector<8x32xf32> to vector<8x32xbf16>
    %cst_89 = arith.constant dense<0.000000e+00> : vector<8x128xf32>
    %144 = tpu.matmul %143, %13, %cst_89 {dimension_numbers = #tpu.dot_dimension_numbers<[1], [0], [0], [1], [0, 0, 1, 1], [], []>} : vector<8x32xbf16>, vector<32x128xbf16>, vector<8x128xf32> -> vector<8x128xf32>
    %145 = arith.addf %142, %144 : vector<8x128xf32>
    %146 = vector.extract_strided_slice %145 {offsets = [0, 0], sizes = [8, 96], strides = [1, 1]} : vector<8x128xf32> to vector<8x96xf32>
    %147 = arith.negf %146 : vector<8x96xf32>
    %148 = math.exp %147 : vector<8x96xf32>
    %cst_90 = arith.constant 1.000000e+00 : f32
    %149 = vector.broadcast %cst_90 : f32 to vector<8x96xf32>
    %150 = arith.addf %149, %148 : vector<8x96xf32>
    %151 = arith.divf %149, %150 : vector<8x96xf32>
    %152 = vector.extract_strided_slice %151 {offsets = [0, 0], sizes = [8, 32], strides = [1, 1]} : vector<8x96xf32> to vector<8x32xf32>
    %153 = vector.extract_strided_slice %151 {offsets = [0, 32], sizes = [8, 32], strides = [1, 1]} : vector<8x96xf32> to vector<8x32xf32>
    %154 = vector.extract_strided_slice %151 {offsets = [0, 64], sizes = [8, 32], strides = [1, 1]} : vector<8x96xf32> to vector<8x32xf32>
    %155 = vector.extract_strided_slice %145 {offsets = [0, 96], sizes = [8, 32], strides = [1, 1]} : vector<8x128xf32> to vector<8x32xf32>
    %156 = math.tanh %155 : vector<8x32xf32>
    %157 = arith.mulf %153, %141 : vector<8x32xf32>
    %158 = arith.mulf %152, %156 : vector<8x32xf32>
    %159 = arith.addf %157, %158 : vector<8x32xf32>
    %160 = math.tanh %159 : vector<8x32xf32>
    %161 = arith.mulf %154, %160 : vector<8x32xf32>
    %c0_91 = arith.constant 0 : index
    %c0_92 = arith.constant 0 : index
    %c0_93 = arith.constant 0 : index
    %162 = vector.load %arg10[%c0_91, %c0_92, %c0_93] : memref<2x8x32xf32, #tpu.memory_space<vmem>>, vector<1x8x32xf32>
    %163 = vector.shape_cast %162 : vector<1x8x32xf32> to vector<8x32xf32>
    %164 = vector.shape_cast %161 : vector<8x32xf32> to vector<1x8x32xf32>
    tpu.vector_store %arg10[%c0_91, %c0_92, %c0_93], %164 {strides = array<i32>} : memref<2x8x32xf32, #tpu.memory_space<vmem>>, vector<1x8x32xf32>,
    %c0_94 = arith.constant 0 : index
    %c0_95 = arith.constant 0 : index
    %c0_96 = arith.constant 0 : index
    %165 = vector.load %arg11[%c0_94, %c0_95, %c0_96] : memref<2x8x32xf32, #tpu.memory_space<vmem>>, vector<1x8x32xf32>
    %166 = vector.shape_cast %165 : vector<1x8x32xf32> to vector<8x32xf32>
    %167 = vector.shape_cast %159 : vector<8x32xf32> to vector<1x8x32xf32>
    tpu.vector_store %arg11[%c0_94, %c0_95, %c0_96], %167 {strides = array<i32>} : memref<2x8x32xf32, #tpu.memory_space<vmem>>, vector<1x8x32xf32>,
    %c32_97 = arith.constant 32 : index
    %c0_98 = arith.constant 0 : index
    %168 = vector.load %arg12[%c32_97, %c0_98] : memref<64x32xf32, #tpu.memory_space<vmem>>, vector<8x32xf32>
    tpu.vector_store %arg12[%c32_97, %c0_98], %161 {strides = array<i32>} : memref<64x32xf32, #tpu.memory_space<vmem>>, vector<8x32xf32>,
    %c0_99 = arith.constant 0 : index
    %c0_100 = arith.constant 0 : index
    %c0_101 = arith.constant 0 : index
    %169 = vector.load %arg10[%c0_99, %c0_100, %c0_101] : memref<2x8x32xf32, #tpu.memory_space<vmem>>, vector<1x8x32xf32>
    %170 = vector.shape_cast %169 : vector<1x8x32xf32> to vector<8x32xf32>
    %c0_102 = arith.constant 0 : index
    %c0_103 = arith.constant 0 : index
    %c0_104 = arith.constant 0 : index
    %171 = vector.load %arg11[%c0_102, %c0_103, %c0_104] : memref<2x8x32xf32, #tpu.memory_space<vmem>>, vector<1x8x32xf32>
    %172 = vector.shape_cast %171 : vector<1x8x32xf32> to vector<8x32xf32>
    %c40 = arith.constant 40 : index
    %c0_105 = arith.constant 0 : index
    %173 = vector.load %arg13[%c40, %c0_105] : memref<64x128xf32, #tpu.memory_space<vmem>>, vector<8x128xf32>
    %174 = arith.truncf %170 : vector<8x32xf32> to vector<8x32xbf16>
    %cst_106 = arith.constant dense<0.000000e+00> : vector<8x128xf32>
    %175 = tpu.matmul %174, %13, %cst_106 {dimension_numbers = #tpu.dot_dimension_numbers<[1], [0], [0], [1], [0, 0, 1, 1], [], []>} : vector<8x32xbf16>, vector<32x128xbf16>, vector<8x128xf32> -> vector<8x128xf32>
    %176 = arith.addf %173, %175 : vector<8x128xf32>
    %177 = vector.extract_strided_slice %176 {offsets = [0, 0], sizes = [8, 96], strides = [1, 1]} : vector<8x128xf32> to vector<8x96xf32>
    %178 = arith.negf %177 : vector<8x96xf32>
    %179 = math.exp %178 : vector<8x96xf32>
    %cst_107 = arith.constant 1.000000e+00 : f32
    %180 = vector.broadcast %cst_107 : f32 to vector<8x96xf32>
    %181 = arith.addf %180, %179 : vector<8x96xf32>
    %182 = arith.divf %180, %181 : vector<8x96xf32>
    %183 = vector.extract_strided_slice %182 {offsets = [0, 0], sizes = [8, 32], strides = [1, 1]} : vector<8x96xf32> to vector<8x32xf32>
    %184 = vector.extract_strided_slice %182 {offsets = [0, 32], sizes = [8, 32], strides = [1, 1]} : vector<8x96xf32> to vector<8x32xf32>
    %185 = vector.extract_strided_slice %182 {offsets = [0, 64], sizes = [8, 32], strides = [1, 1]} : vector<8x96xf32> to vector<8x32xf32>
    %186 = vector.extract_strided_slice %176 {offsets = [0, 96], sizes = [8, 32], strides = [1, 1]} : vector<8x128xf32> to vector<8x32xf32>
    %187 = math.tanh %186 : vector<8x32xf32>
    %188 = arith.mulf %184, %172 : vector<8x32xf32>
    %189 = arith.mulf %183, %187 : vector<8x32xf32>
    %190 = arith.addf %188, %189 : vector<8x32xf32>
    %191 = math.tanh %190 : vector<8x32xf32>
    %192 = arith.mulf %185, %191 : vector<8x32xf32>
    %c0_108 = arith.constant 0 : index
    %c0_109 = arith.constant 0 : index
    %c0_110 = arith.constant 0 : index
    %193 = vector.load %arg10[%c0_108, %c0_109, %c0_110] : memref<2x8x32xf32, #tpu.memory_space<vmem>>, vector<1x8x32xf32>
    %194 = vector.shape_cast %193 : vector<1x8x32xf32> to vector<8x32xf32>
    %195 = vector.shape_cast %192 : vector<8x32xf32> to vector<1x8x32xf32>
    tpu.vector_store %arg10[%c0_108, %c0_109, %c0_110], %195 {strides = array<i32>} : memref<2x8x32xf32, #tpu.memory_space<vmem>>, vector<1x8x32xf32>,
    %c0_111 = arith.constant 0 : index
    %c0_112 = arith.constant 0 : index
    %c0_113 = arith.constant 0 : index
    %196 = vector.load %arg11[%c0_111, %c0_112, %c0_113] : memref<2x8x32xf32, #tpu.memory_space<vmem>>, vector<1x8x32xf32>
    %197 = vector.shape_cast %196 : vector<1x8x32xf32> to vector<8x32xf32>
    %198 = vector.shape_cast %190 : vector<8x32xf32> to vector<1x8x32xf32>
    tpu.vector_store %arg11[%c0_111, %c0_112, %c0_113], %198 {strides = array<i32>} : memref<2x8x32xf32, #tpu.memory_space<vmem>>, vector<1x8x32xf32>,
    %c40_114 = arith.constant 40 : index
    %c0_115 = arith.constant 0 : index
    %199 = vector.load %arg12[%c40_114, %c0_115] : memref<64x32xf32, #tpu.memory_space<vmem>>, vector<8x32xf32>
    tpu.vector_store %arg12[%c40_114, %c0_115], %192 {strides = array<i32>} : memref<64x32xf32, #tpu.memory_space<vmem>>, vector<8x32xf32>,
    %c0_116 = arith.constant 0 : index
    %c0_117 = arith.constant 0 : index
    %c0_118 = arith.constant 0 : index
    %200 = vector.load %arg10[%c0_116, %c0_117, %c0_118] : memref<2x8x32xf32, #tpu.memory_space<vmem>>, vector<1x8x32xf32>
    %201 = vector.shape_cast %200 : vector<1x8x32xf32> to vector<8x32xf32>
    %c0_119 = arith.constant 0 : index
    %c0_120 = arith.constant 0 : index
    %c0_121 = arith.constant 0 : index
    %202 = vector.load %arg11[%c0_119, %c0_120, %c0_121] : memref<2x8x32xf32, #tpu.memory_space<vmem>>, vector<1x8x32xf32>
    %203 = vector.shape_cast %202 : vector<1x8x32xf32> to vector<8x32xf32>
    %c48 = arith.constant 48 : index
    %c0_122 = arith.constant 0 : index
    %204 = vector.load %arg13[%c48, %c0_122] : memref<64x128xf32, #tpu.memory_space<vmem>>, vector<8x128xf32>
    %205 = arith.truncf %201 : vector<8x32xf32> to vector<8x32xbf16>
    %cst_123 = arith.constant dense<0.000000e+00> : vector<8x128xf32>
    %206 = tpu.matmul %205, %13, %cst_123 {dimension_numbers = #tpu.dot_dimension_numbers<[1], [0], [0], [1], [0, 0, 1, 1], [], []>} : vector<8x32xbf16>, vector<32x128xbf16>, vector<8x128xf32> -> vector<8x128xf32>
    %207 = arith.addf %204, %206 : vector<8x128xf32>
    %208 = vector.extract_strided_slice %207 {offsets = [0, 0], sizes = [8, 96], strides = [1, 1]} : vector<8x128xf32> to vector<8x96xf32>
    %209 = arith.negf %208 : vector<8x96xf32>
    %210 = math.exp %209 : vector<8x96xf32>
    %cst_124 = arith.constant 1.000000e+00 : f32
    %211 = vector.broadcast %cst_124 : f32 to vector<8x96xf32>
    %212 = arith.addf %211, %210 : vector<8x96xf32>
    %213 = arith.divf %211, %212 : vector<8x96xf32>
    %214 = vector.extract_strided_slice %213 {offsets = [0, 0], sizes = [8, 32], strides = [1, 1]} : vector<8x96xf32> to vector<8x32xf32>
    %215 = vector.extract_strided_slice %213 {offsets = [0, 32], sizes = [8, 32], strides = [1, 1]} : vector<8x96xf32> to vector<8x32xf32>
    %216 = vector.extract_strided_slice %213 {offsets = [0, 64], sizes = [8, 32], strides = [1, 1]} : vector<8x96xf32> to vector<8x32xf32>
    %217 = vector.extract_strided_slice %207 {offsets = [0, 96], sizes = [8, 32], strides = [1, 1]} : vector<8x128xf32> to vector<8x32xf32>
    %218 = math.tanh %217 : vector<8x32xf32>
    %219 = arith.mulf %215, %203 : vector<8x32xf32>
    %220 = arith.mulf %214, %218 : vector<8x32xf32>
    %221 = arith.addf %219, %220 : vector<8x32xf32>
    %222 = math.tanh %221 : vector<8x32xf32>
    %223 = arith.mulf %216, %222 : vector<8x32xf32>
    %c0_125 = arith.constant 0 : index
    %c0_126 = arith.constant 0 : index
    %c0_127 = arith.constant 0 : index
    %224 = vector.load %arg10[%c0_125, %c0_126, %c0_127] : memref<2x8x32xf32, #tpu.memory_space<vmem>>, vector<1x8x32xf32>
    %225 = vector.shape_cast %224 : vector<1x8x32xf32> to vector<8x32xf32>
    %226 = vector.shape_cast %223 : vector<8x32xf32> to vector<1x8x32xf32>
    tpu.vector_store %arg10[%c0_125, %c0_126, %c0_127], %226 {strides = array<i32>} : memref<2x8x32xf32, #tpu.memory_space<vmem>>, vector<1x8x32xf32>,
    %c0_128 = arith.constant 0 : index
    %c0_129 = arith.constant 0 : index
    %c0_130 = arith.constant 0 : index
    %227 = vector.load %arg11[%c0_128, %c0_129, %c0_130] : memref<2x8x32xf32, #tpu.memory_space<vmem>>, vector<1x8x32xf32>
    %228 = vector.shape_cast %227 : vector<1x8x32xf32> to vector<8x32xf32>
    %229 = vector.shape_cast %221 : vector<8x32xf32> to vector<1x8x32xf32>
    tpu.vector_store %arg11[%c0_128, %c0_129, %c0_130], %229 {strides = array<i32>} : memref<2x8x32xf32, #tpu.memory_space<vmem>>, vector<1x8x32xf32>,
    %c48_131 = arith.constant 48 : index
    %c0_132 = arith.constant 0 : index
    %230 = vector.load %arg12[%c48_131, %c0_132] : memref<64x32xf32, #tpu.memory_space<vmem>>, vector<8x32xf32>
    tpu.vector_store %arg12[%c48_131, %c0_132], %223 {strides = array<i32>} : memref<64x32xf32, #tpu.memory_space<vmem>>, vector<8x32xf32>,
    %c0_133 = arith.constant 0 : index
    %c0_134 = arith.constant 0 : index
    %c0_135 = arith.constant 0 : index
    %231 = vector.load %arg10[%c0_133, %c0_134, %c0_135] : memref<2x8x32xf32, #tpu.memory_space<vmem>>, vector<1x8x32xf32>
    %232 = vector.shape_cast %231 : vector<1x8x32xf32> to vector<8x32xf32>
    %c0_136 = arith.constant 0 : index
    %c0_137 = arith.constant 0 : index
    %c0_138 = arith.constant 0 : index
    %233 = vector.load %arg11[%c0_136, %c0_137, %c0_138] : memref<2x8x32xf32, #tpu.memory_space<vmem>>, vector<1x8x32xf32>
    %234 = vector.shape_cast %233 : vector<1x8x32xf32> to vector<8x32xf32>
    %c56 = arith.constant 56 : index
    %c0_139 = arith.constant 0 : index
    %235 = vector.load %arg13[%c56, %c0_139] : memref<64x128xf32, #tpu.memory_space<vmem>>, vector<8x128xf32>
    %236 = arith.truncf %232 : vector<8x32xf32> to vector<8x32xbf16>
    %cst_140 = arith.constant dense<0.000000e+00> : vector<8x128xf32>
    %237 = tpu.matmul %236, %13, %cst_140 {dimension_numbers = #tpu.dot_dimension_numbers<[1], [0], [0], [1], [0, 0, 1, 1], [], []>} : vector<8x32xbf16>, vector<32x128xbf16>, vector<8x128xf32> -> vector<8x128xf32>
    %238 = arith.addf %235, %237 : vector<8x128xf32>
    %239 = vector.extract_strided_slice %238 {offsets = [0, 0], sizes = [8, 96], strides = [1, 1]} : vector<8x128xf32> to vector<8x96xf32>
    %240 = arith.negf %239 : vector<8x96xf32>
    %241 = math.exp %240 : vector<8x96xf32>
    %cst_141 = arith.constant 1.000000e+00 : f32
    %242 = vector.broadcast %cst_141 : f32 to vector<8x96xf32>
    %243 = arith.addf %242, %241 : vector<8x96xf32>
    %244 = arith.divf %242, %243 : vector<8x96xf32>
    %245 = vector.extract_strided_slice %244 {offsets = [0, 0], sizes = [8, 32], strides = [1, 1]} : vector<8x96xf32> to vector<8x32xf32>
    %246 = vector.extract_strided_slice %244 {offsets = [0, 32], sizes = [8, 32], strides = [1, 1]} : vector<8x96xf32> to vector<8x32xf32>
    %247 = vector.extract_strided_slice %244 {offsets = [0, 64], sizes = [8, 32], strides = [1, 1]} : vector<8x96xf32> to vector<8x32xf32>
    %248 = vector.extract_strided_slice %238 {offsets = [0, 96], sizes = [8, 32], strides = [1, 1]} : vector<8x128xf32> to vector<8x32xf32>
    %249 = math.tanh %248 : vector<8x32xf32>
    %250 = arith.mulf %246, %234 : vector<8x32xf32>
    %251 = arith.mulf %245, %249 : vector<8x32xf32>
    %252 = arith.addf %250, %251 : vector<8x32xf32>
    %253 = math.tanh %252 : vector<8x32xf32>
    %254 = arith.mulf %247, %253 : vector<8x32xf32>
    %c0_142 = arith.constant 0 : index
    %c0_143 = arith.constant 0 : index
    %c0_144 = arith.constant 0 : index
    %255 = vector.load %arg10[%c0_142, %c0_143, %c0_144] : memref<2x8x32xf32, #tpu.memory_space<vmem>>, vector<1x8x32xf32>
    %256 = vector.shape_cast %255 : vector<1x8x32xf32> to vector<8x32xf32>
    %257 = vector.shape_cast %254 : vector<8x32xf32> to vector<1x8x32xf32>
    tpu.vector_store %arg10[%c0_142, %c0_143, %c0_144], %257 {strides = array<i32>} : memref<2x8x32xf32, #tpu.memory_space<vmem>>, vector<1x8x32xf32>,
    %c0_145 = arith.constant 0 : index
    %c0_146 = arith.constant 0 : index
    %c0_147 = arith.constant 0 : index
    %258 = vector.load %arg11[%c0_145, %c0_146, %c0_147] : memref<2x8x32xf32, #tpu.memory_space<vmem>>, vector<1x8x32xf32>
    %259 = vector.shape_cast %258 : vector<1x8x32xf32> to vector<8x32xf32>
    %260 = vector.shape_cast %252 : vector<8x32xf32> to vector<1x8x32xf32>
    tpu.vector_store %arg11[%c0_145, %c0_146, %c0_147], %260 {strides = array<i32>} : memref<2x8x32xf32, #tpu.memory_space<vmem>>, vector<1x8x32xf32>,
    %c56_148 = arith.constant 56 : index
    %c0_149 = arith.constant 0 : index
    %261 = vector.load %arg12[%c56_148, %c0_149] : memref<64x32xf32, #tpu.memory_space<vmem>>, vector<8x32xf32>
    tpu.vector_store %arg12[%c56_148, %c0_149], %254 {strides = array<i32>} : memref<64x32xf32, #tpu.memory_space<vmem>>, vector<8x32xf32>,
    %c0_150 = arith.constant 0 : index
    %c0_151 = arith.constant 0 : index
    %262 = vector.load %arg12[%c0_150, %c0_151] : memref<64x32xf32, #tpu.memory_space<vmem>>, vector<64x32xf32>
    %263 = arith.truncf %262 : vector<64x32xf32> to vector<64x32xbf16>
    %c0_152 = arith.constant 0 : index
    %c0_153 = arith.constant 0 : index
    %c0_154 = arith.constant 0 : index
    %264 = vector.load %arg4[%c0_152, %c0_153, %c0_154] : memref<1x32x128xbf16, #tpu.memory_space<vmem>>, vector<1x32x128xbf16>
    %265 = vector.shape_cast %264 : vector<1x32x128xbf16> to vector<32x128xbf16>
    %cst_155 = arith.constant dense<0.000000e+00> : vector<64x128xf32>
    %266 = tpu.matmul %263, %265, %cst_155 {dimension_numbers = #tpu.dot_dimension_numbers<[1], [0], [0], [1], [0, 0, 1, 1], [], []>} : vector<64x32xbf16>, vector<32x128xbf16>, vector<64x128xf32> -> vector<64x128xf32>
    %c1 = arith.constant 1 : index
    %c0_156 = arith.constant 0 : index
    %c0_157 = arith.constant 0 : index
    %267 = vector.load %arg6[%c1, %c0_156, %c0_157] : memref<2x1x128xf32, #tpu.memory_space<vmem>>, vector<1x1x128xf32>
    %268 = vector.shape_cast %267 : vector<1x1x128xf32> to vector<1x128xf32>
    %269 = vector.broadcast %268 : vector<1x128xf32> to vector<64x128xf32>
    %270 = arith.addf %266, %269 : vector<64x128xf32>
    %c0_158 = arith.constant 0 : index
    %c0_159 = arith.constant 0 : index
    %271 = vector.load %arg13[%c0_158, %c0_159] : memref<64x128xf32, #tpu.memory_space<vmem>>, vector<64x128xf32>
    tpu.vector_store %arg13[%c0_158, %c0_159], %270 {strides = array<i32>} : memref<64x128xf32, #tpu.memory_space<vmem>>, vector<64x128xf32>,
    %c1_160 = arith.constant 1 : index
    %c0_161 = arith.constant 0 : index
    %c0_162 = arith.constant 0 : index
    %272 = vector.load %arg5[%c1_160, %c0_161, %c0_162] : memref<2x32x128xbf16, #tpu.memory_space<vmem>>, vector<1x32x128xbf16>
    %273 = vector.shape_cast %272 : vector<1x32x128xbf16> to vector<32x128xbf16>
    %c1_163 = arith.constant 1 : index
    %c0_164 = arith.constant 0 : index
    %c0_165 = arith.constant 0 : index
    %274 = vector.load %arg10[%c1_163, %c0_164, %c0_165] : memref<2x8x32xf32, #tpu.memory_space<vmem>>, vector<1x8x32xf32>
    %275 = vector.shape_cast %274 : vector<1x8x32xf32> to vector<8x32xf32>
    %c1_166 = arith.constant 1 : index
    %c0_167 = arith.constant 0 : index
    %c0_168 = arith.constant 0 : index
    %276 = vector.load %arg11[%c1_166, %c0_167, %c0_168] : memref<2x8x32xf32, #tpu.memory_space<vmem>>, vector<1x8x32xf32>
    %277 = vector.shape_cast %276 : vector<1x8x32xf32> to vector<8x32xf32>
    %c0_169 = arith.constant 0 : index
    %c0_170 = arith.constant 0 : index
    %278 = vector.load %arg13[%c0_169, %c0_170] : memref<64x128xf32, #tpu.memory_space<vmem>>, vector<8x128xf32>
    %279 = arith.truncf %275 : vector<8x32xf32> to vector<8x32xbf16>
    %cst_171 = arith.constant dense<0.000000e+00> : vector<8x128xf32>
    %280 = tpu.matmul %279, %273, %cst_171 {dimension_numbers = #tpu.dot_dimension_numbers<[1], [0], [0], [1], [0, 0, 1, 1], [], []>} : vector<8x32xbf16>, vector<32x128xbf16>, vector<8x128xf32> -> vector<8x128xf32>
    %281 = arith.addf %278, %280 : vector<8x128xf32>
    %282 = vector.extract_strided_slice %281 {offsets = [0, 0], sizes = [8, 96], strides = [1, 1]} : vector<8x128xf32> to vector<8x96xf32>
    %283 = arith.negf %282 : vector<8x96xf32>
    %284 = math.exp %283 : vector<8x96xf32>
    %cst_172 = arith.constant 1.000000e+00 : f32
    %285 = vector.broadcast %cst_172 : f32 to vector<8x96xf32>
    %286 = arith.addf %285, %284 : vector<8x96xf32>
    %287 = arith.divf %285, %286 : vector<8x96xf32>
    %288 = vector.extract_strided_slice %287 {offsets = [0, 0], sizes = [8, 32], strides = [1, 1]} : vector<8x96xf32> to vector<8x32xf32>
    %289 = vector.extract_strided_slice %287 {offsets = [0, 32], sizes = [8, 32], strides = [1, 1]} : vector<8x96xf32> to vector<8x32xf32>
    %290 = vector.extract_strided_slice %287 {offsets = [0, 64], sizes = [8, 32], strides = [1, 1]} : vector<8x96xf32> to vector<8x32xf32>
    %291 = vector.extract_strided_slice %281 {offsets = [0, 96], sizes = [8, 32], strides = [1, 1]} : vector<8x128xf32> to vector<8x32xf32>
    %292 = math.tanh %291 : vector<8x32xf32>
    %293 = arith.mulf %289, %277 : vector<8x32xf32>
    %294 = arith.mulf %288, %292 : vector<8x32xf32>
    %295 = arith.addf %293, %294 : vector<8x32xf32>
    %296 = math.tanh %295 : vector<8x32xf32>
    %297 = arith.mulf %290, %296 : vector<8x32xf32>
    %c1_173 = arith.constant 1 : index
    %c0_174 = arith.constant 0 : index
    %c0_175 = arith.constant 0 : index
    %298 = vector.load %arg10[%c1_173, %c0_174, %c0_175] : memref<2x8x32xf32, #tpu.memory_space<vmem>>, vector<1x8x32xf32>
    %299 = vector.shape_cast %298 : vector<1x8x32xf32> to vector<8x32xf32>
    %300 = vector.shape_cast %297 : vector<8x32xf32> to vector<1x8x32xf32>
    tpu.vector_store %arg10[%c1_173, %c0_174, %c0_175], %300 {strides = array<i32>} : memref<2x8x32xf32, #tpu.memory_space<vmem>>, vector<1x8x32xf32>,
    %c1_176 = arith.constant 1 : index
    %c0_177 = arith.constant 0 : index
    %c0_178 = arith.constant 0 : index
    %301 = vector.load %arg11[%c1_176, %c0_177, %c0_178] : memref<2x8x32xf32, #tpu.memory_space<vmem>>, vector<1x8x32xf32>
    %302 = vector.shape_cast %301 : vector<1x8x32xf32> to vector<8x32xf32>
    %303 = vector.shape_cast %295 : vector<8x32xf32> to vector<1x8x32xf32>
    tpu.vector_store %arg11[%c1_176, %c0_177, %c0_178], %303 {strides = array<i32>} : memref<2x8x32xf32, #tpu.memory_space<vmem>>, vector<1x8x32xf32>,
    %c0_179 = arith.constant 0 : index
    %c0_180 = arith.constant 0 : index
    %304 = vector.load %arg12[%c0_179, %c0_180] : memref<64x32xf32, #tpu.memory_space<vmem>>, vector<8x32xf32>
    tpu.vector_store %arg12[%c0_179, %c0_180], %297 {strides = array<i32>} : memref<64x32xf32, #tpu.memory_space<vmem>>, vector<8x32xf32>,
    %c1_181 = arith.constant 1 : index
    %c0_182 = arith.constant 0 : index
    %c0_183 = arith.constant 0 : index
    %305 = vector.load %arg10[%c1_181, %c0_182, %c0_183] : memref<2x8x32xf32, #tpu.memory_space<vmem>>, vector<1x8x32xf32>
    %306 = vector.shape_cast %305 : vector<1x8x32xf32> to vector<8x32xf32>
    %c1_184 = arith.constant 1 : index
    %c0_185 = arith.constant 0 : index
    %c0_186 = arith.constant 0 : index
    %307 = vector.load %arg11[%c1_184, %c0_185, %c0_186] : memref<2x8x32xf32, #tpu.memory_space<vmem>>, vector<1x8x32xf32>
    %308 = vector.shape_cast %307 : vector<1x8x32xf32> to vector<8x32xf32>
    %c8_187 = arith.constant 8 : index
    %c0_188 = arith.constant 0 : index
    %309 = vector.load %arg13[%c8_187, %c0_188] : memref<64x128xf32, #tpu.memory_space<vmem>>, vector<8x128xf32>
    %310 = arith.truncf %306 : vector<8x32xf32> to vector<8x32xbf16>
    %cst_189 = arith.constant dense<0.000000e+00> : vector<8x128xf32>
    %311 = tpu.matmul %310, %273, %cst_189 {dimension_numbers = #tpu.dot_dimension_numbers<[1], [0], [0], [1], [0, 0, 1, 1], [], []>} : vector<8x32xbf16>, vector<32x128xbf16>, vector<8x128xf32> -> vector<8x128xf32>
    %312 = arith.addf %309, %311 : vector<8x128xf32>
    %313 = vector.extract_strided_slice %312 {offsets = [0, 0], sizes = [8, 96], strides = [1, 1]} : vector<8x128xf32> to vector<8x96xf32>
    %314 = arith.negf %313 : vector<8x96xf32>
    %315 = math.exp %314 : vector<8x96xf32>
    %cst_190 = arith.constant 1.000000e+00 : f32
    %316 = vector.broadcast %cst_190 : f32 to vector<8x96xf32>
    %317 = arith.addf %316, %315 : vector<8x96xf32>
    %318 = arith.divf %316, %317 : vector<8x96xf32>
    %319 = vector.extract_strided_slice %318 {offsets = [0, 0], sizes = [8, 32], strides = [1, 1]} : vector<8x96xf32> to vector<8x32xf32>
    %320 = vector.extract_strided_slice %318 {offsets = [0, 32], sizes = [8, 32], strides = [1, 1]} : vector<8x96xf32> to vector<8x32xf32>
    %321 = vector.extract_strided_slice %318 {offsets = [0, 64], sizes = [8, 32], strides = [1, 1]} : vector<8x96xf32> to vector<8x32xf32>
    %322 = vector.extract_strided_slice %312 {offsets = [0, 96], sizes = [8, 32], strides = [1, 1]} : vector<8x128xf32> to vector<8x32xf32>
    %323 = math.tanh %322 : vector<8x32xf32>
    %324 = arith.mulf %320, %308 : vector<8x32xf32>
    %325 = arith.mulf %319, %323 : vector<8x32xf32>
    %326 = arith.addf %324, %325 : vector<8x32xf32>
    %327 = math.tanh %326 : vector<8x32xf32>
    %328 = arith.mulf %321, %327 : vector<8x32xf32>
    %c1_191 = arith.constant 1 : index
    %c0_192 = arith.constant 0 : index
    %c0_193 = arith.constant 0 : index
    %329 = vector.load %arg10[%c1_191, %c0_192, %c0_193] : memref<2x8x32xf32, #tpu.memory_space<vmem>>, vector<1x8x32xf32>
    %330 = vector.shape_cast %329 : vector<1x8x32xf32> to vector<8x32xf32>
    %331 = vector.shape_cast %328 : vector<8x32xf32> to vector<1x8x32xf32>
    tpu.vector_store %arg10[%c1_191, %c0_192, %c0_193], %331 {strides = array<i32>} : memref<2x8x32xf32, #tpu.memory_space<vmem>>, vector<1x8x32xf32>,
    %c1_194 = arith.constant 1 : index
    %c0_195 = arith.constant 0 : index
    %c0_196 = arith.constant 0 : index
    %332 = vector.load %arg11[%c1_194, %c0_195, %c0_196] : memref<2x8x32xf32, #tpu.memory_space<vmem>>, vector<1x8x32xf32>
    %333 = vector.shape_cast %332 : vector<1x8x32xf32> to vector<8x32xf32>
    %334 = vector.shape_cast %326 : vector<8x32xf32> to vector<1x8x32xf32>
    tpu.vector_store %arg11[%c1_194, %c0_195, %c0_196], %334 {strides = array<i32>} : memref<2x8x32xf32, #tpu.memory_space<vmem>>, vector<1x8x32xf32>,
    %c8_197 = arith.constant 8 : index
    %c0_198 = arith.constant 0 : index
    %335 = vector.load %arg12[%c8_197, %c0_198] : memref<64x32xf32, #tpu.memory_space<vmem>>, vector<8x32xf32>
    tpu.vector_store %arg12[%c8_197, %c0_198], %328 {strides = array<i32>} : memref<64x32xf32, #tpu.memory_space<vmem>>, vector<8x32xf32>,
    %c1_199 = arith.constant 1 : index
    %c0_200 = arith.constant 0 : index
    %c0_201 = arith.constant 0 : index
    %336 = vector.load %arg10[%c1_199, %c0_200, %c0_201] : memref<2x8x32xf32, #tpu.memory_space<vmem>>, vector<1x8x32xf32>
    %337 = vector.shape_cast %336 : vector<1x8x32xf32> to vector<8x32xf32>
    %c1_202 = arith.constant 1 : index
    %c0_203 = arith.constant 0 : index
    %c0_204 = arith.constant 0 : index
    %338 = vector.load %arg11[%c1_202, %c0_203, %c0_204] : memref<2x8x32xf32, #tpu.memory_space<vmem>>, vector<1x8x32xf32>
    %339 = vector.shape_cast %338 : vector<1x8x32xf32> to vector<8x32xf32>
    %c16_205 = arith.constant 16 : index
    %c0_206 = arith.constant 0 : index
    %340 = vector.load %arg13[%c16_205, %c0_206] : memref<64x128xf32, #tpu.memory_space<vmem>>, vector<8x128xf32>
    %341 = arith.truncf %337 : vector<8x32xf32> to vector<8x32xbf16>
    %cst_207 = arith.constant dense<0.000000e+00> : vector<8x128xf32>
    %342 = tpu.matmul %341, %273, %cst_207 {dimension_numbers = #tpu.dot_dimension_numbers<[1], [0], [0], [1], [0, 0, 1, 1], [], []>} : vector<8x32xbf16>, vector<32x128xbf16>, vector<8x128xf32> -> vector<8x128xf32>
    %343 = arith.addf %340, %342 : vector<8x128xf32>
    %344 = vector.extract_strided_slice %343 {offsets = [0, 0], sizes = [8, 96], strides = [1, 1]} : vector<8x128xf32> to vector<8x96xf32>
    %345 = arith.negf %344 : vector<8x96xf32>
    %346 = math.exp %345 : vector<8x96xf32>
    %cst_208 = arith.constant 1.000000e+00 : f32
    %347 = vector.broadcast %cst_208 : f32 to vector<8x96xf32>
    %348 = arith.addf %347, %346 : vector<8x96xf32>
    %349 = arith.divf %347, %348 : vector<8x96xf32>
    %350 = vector.extract_strided_slice %349 {offsets = [0, 0], sizes = [8, 32], strides = [1, 1]} : vector<8x96xf32> to vector<8x32xf32>
    %351 = vector.extract_strided_slice %349 {offsets = [0, 32], sizes = [8, 32], strides = [1, 1]} : vector<8x96xf32> to vector<8x32xf32>
    %352 = vector.extract_strided_slice %349 {offsets = [0, 64], sizes = [8, 32], strides = [1, 1]} : vector<8x96xf32> to vector<8x32xf32>
    %353 = vector.extract_strided_slice %343 {offsets = [0, 96], sizes = [8, 32], strides = [1, 1]} : vector<8x128xf32> to vector<8x32xf32>
    %354 = math.tanh %353 : vector<8x32xf32>
    %355 = arith.mulf %351, %339 : vector<8x32xf32>
    %356 = arith.mulf %350, %354 : vector<8x32xf32>
    %357 = arith.addf %355, %356 : vector<8x32xf32>
    %358 = math.tanh %357 : vector<8x32xf32>
    %359 = arith.mulf %352, %358 : vector<8x32xf32>
    %c1_209 = arith.constant 1 : index
    %c0_210 = arith.constant 0 : index
    %c0_211 = arith.constant 0 : index
    %360 = vector.load %arg10[%c1_209, %c0_210, %c0_211] : memref<2x8x32xf32, #tpu.memory_space<vmem>>, vector<1x8x32xf32>
    %361 = vector.shape_cast %360 : vector<1x8x32xf32> to vector<8x32xf32>
    %362 = vector.shape_cast %359 : vector<8x32xf32> to vector<1x8x32xf32>
    tpu.vector_store %arg10[%c1_209, %c0_210, %c0_211], %362 {strides = array<i32>} : memref<2x8x32xf32, #tpu.memory_space<vmem>>, vector<1x8x32xf32>,
    %c1_212 = arith.constant 1 : index
    %c0_213 = arith.constant 0 : index
    %c0_214 = arith.constant 0 : index
    %363 = vector.load %arg11[%c1_212, %c0_213, %c0_214] : memref<2x8x32xf32, #tpu.memory_space<vmem>>, vector<1x8x32xf32>
    %364 = vector.shape_cast %363 : vector<1x8x32xf32> to vector<8x32xf32>
    %365 = vector.shape_cast %357 : vector<8x32xf32> to vector<1x8x32xf32>
    tpu.vector_store %arg11[%c1_212, %c0_213, %c0_214], %365 {strides = array<i32>} : memref<2x8x32xf32, #tpu.memory_space<vmem>>, vector<1x8x32xf32>,
    %c16_215 = arith.constant 16 : index
    %c0_216 = arith.constant 0 : index
    %366 = vector.load %arg12[%c16_215, %c0_216] : memref<64x32xf32, #tpu.memory_space<vmem>>, vector<8x32xf32>
    tpu.vector_store %arg12[%c16_215, %c0_216], %359 {strides = array<i32>} : memref<64x32xf32, #tpu.memory_space<vmem>>, vector<8x32xf32>,
    %c1_217 = arith.constant 1 : index
    %c0_218 = arith.constant 0 : index
    %c0_219 = arith.constant 0 : index
    %367 = vector.load %arg10[%c1_217, %c0_218, %c0_219] : memref<2x8x32xf32, #tpu.memory_space<vmem>>, vector<1x8x32xf32>
    %368 = vector.shape_cast %367 : vector<1x8x32xf32> to vector<8x32xf32>
    %c1_220 = arith.constant 1 : index
    %c0_221 = arith.constant 0 : index
    %c0_222 = arith.constant 0 : index
    %369 = vector.load %arg11[%c1_220, %c0_221, %c0_222] : memref<2x8x32xf32, #tpu.memory_space<vmem>>, vector<1x8x32xf32>
    %370 = vector.shape_cast %369 : vector<1x8x32xf32> to vector<8x32xf32>
    %c24_223 = arith.constant 24 : index
    %c0_224 = arith.constant 0 : index
    %371 = vector.load %arg13[%c24_223, %c0_224] : memref<64x128xf32, #tpu.memory_space<vmem>>, vector<8x128xf32>
    %372 = arith.truncf %368 : vector<8x32xf32> to vector<8x32xbf16>
    %cst_225 = arith.constant dense<0.000000e+00> : vector<8x128xf32>
    %373 = tpu.matmul %372, %273, %cst_225 {dimension_numbers = #tpu.dot_dimension_numbers<[1], [0], [0], [1], [0, 0, 1, 1], [], []>} : vector<8x32xbf16>, vector<32x128xbf16>, vector<8x128xf32> -> vector<8x128xf32>
    %374 = arith.addf %371, %373 : vector<8x128xf32>
    %375 = vector.extract_strided_slice %374 {offsets = [0, 0], sizes = [8, 96], strides = [1, 1]} : vector<8x128xf32> to vector<8x96xf32>
    %376 = arith.negf %375 : vector<8x96xf32>
    %377 = math.exp %376 : vector<8x96xf32>
    %cst_226 = arith.constant 1.000000e+00 : f32
    %378 = vector.broadcast %cst_226 : f32 to vector<8x96xf32>
    %379 = arith.addf %378, %377 : vector<8x96xf32>
    %380 = arith.divf %378, %379 : vector<8x96xf32>
    %381 = vector.extract_strided_slice %380 {offsets = [0, 0], sizes = [8, 32], strides = [1, 1]} : vector<8x96xf32> to vector<8x32xf32>
    %382 = vector.extract_strided_slice %380 {offsets = [0, 32], sizes = [8, 32], strides = [1, 1]} : vector<8x96xf32> to vector<8x32xf32>
    %383 = vector.extract_strided_slice %380 {offsets = [0, 64], sizes = [8, 32], strides = [1, 1]} : vector<8x96xf32> to vector<8x32xf32>
    %384 = vector.extract_strided_slice %374 {offsets = [0, 96], sizes = [8, 32], strides = [1, 1]} : vector<8x128xf32> to vector<8x32xf32>
    %385 = math.tanh %384 : vector<8x32xf32>
    %386 = arith.mulf %382, %370 : vector<8x32xf32>
    %387 = arith.mulf %381, %385 : vector<8x32xf32>
    %388 = arith.addf %386, %387 : vector<8x32xf32>
    %389 = math.tanh %388 : vector<8x32xf32>
    %390 = arith.mulf %383, %389 : vector<8x32xf32>
    %c1_227 = arith.constant 1 : index
    %c0_228 = arith.constant 0 : index
    %c0_229 = arith.constant 0 : index
    %391 = vector.load %arg10[%c1_227, %c0_228, %c0_229] : memref<2x8x32xf32, #tpu.memory_space<vmem>>, vector<1x8x32xf32>
    %392 = vector.shape_cast %391 : vector<1x8x32xf32> to vector<8x32xf32>
    %393 = vector.shape_cast %390 : vector<8x32xf32> to vector<1x8x32xf32>
    tpu.vector_store %arg10[%c1_227, %c0_228, %c0_229], %393 {strides = array<i32>} : memref<2x8x32xf32, #tpu.memory_space<vmem>>, vector<1x8x32xf32>,
    %c1_230 = arith.constant 1 : index
    %c0_231 = arith.constant 0 : index
    %c0_232 = arith.constant 0 : index
    %394 = vector.load %arg11[%c1_230, %c0_231, %c0_232] : memref<2x8x32xf32, #tpu.memory_space<vmem>>, vector<1x8x32xf32>
    %395 = vector.shape_cast %394 : vector<1x8x32xf32> to vector<8x32xf32>
    %396 = vector.shape_cast %388 : vector<8x32xf32> to vector<1x8x32xf32>
    tpu.vector_store %arg11[%c1_230, %c0_231, %c0_232], %396 {strides = array<i32>} : memref<2x8x32xf32, #tpu.memory_space<vmem>>, vector<1x8x32xf32>,
    %c24_233 = arith.constant 24 : index
    %c0_234 = arith.constant 0 : index
    %397 = vector.load %arg12[%c24_233, %c0_234] : memref<64x32xf32, #tpu.memory_space<vmem>>, vector<8x32xf32>
    tpu.vector_store %arg12[%c24_233, %c0_234], %390 {strides = array<i32>} : memref<64x32xf32, #tpu.memory_space<vmem>>, vector<8x32xf32>,
    %c1_235 = arith.constant 1 : index
    %c0_236 = arith.constant 0 : index
    %c0_237 = arith.constant 0 : index
    %398 = vector.load %arg10[%c1_235, %c0_236, %c0_237] : memref<2x8x32xf32, #tpu.memory_space<vmem>>, vector<1x8x32xf32>
    %399 = vector.shape_cast %398 : vector<1x8x32xf32> to vector<8x32xf32>
    %c1_238 = arith.constant 1 : index
    %c0_239 = arith.constant 0 : index
    %c0_240 = arith.constant 0 : index
    %400 = vector.load %arg11[%c1_238, %c0_239, %c0_240] : memref<2x8x32xf32, #tpu.memory_space<vmem>>, vector<1x8x32xf32>
    %401 = vector.shape_cast %400 : vector<1x8x32xf32> to vector<8x32xf32>
    %c32_241 = arith.constant 32 : index
    %c0_242 = arith.constant 0 : index
    %402 = vector.load %arg13[%c32_241, %c0_242] : memref<64x128xf32, #tpu.memory_space<vmem>>, vector<8x128xf32>
    %403 = arith.truncf %399 : vector<8x32xf32> to vector<8x32xbf16>
    %cst_243 = arith.constant dense<0.000000e+00> : vector<8x128xf32>
    %404 = tpu.matmul %403, %273, %cst_243 {dimension_numbers = #tpu.dot_dimension_numbers<[1], [0], [0], [1], [0, 0, 1, 1], [], []>} : vector<8x32xbf16>, vector<32x128xbf16>, vector<8x128xf32> -> vector<8x128xf32>
    %405 = arith.addf %402, %404 : vector<8x128xf32>
    %406 = vector.extract_strided_slice %405 {offsets = [0, 0], sizes = [8, 96], strides = [1, 1]} : vector<8x128xf32> to vector<8x96xf32>
    %407 = arith.negf %406 : vector<8x96xf32>
    %408 = math.exp %407 : vector<8x96xf32>
    %cst_244 = arith.constant 1.000000e+00 : f32
    %409 = vector.broadcast %cst_244 : f32 to vector<8x96xf32>
    %410 = arith.addf %409, %408 : vector<8x96xf32>
    %411 = arith.divf %409, %410 : vector<8x96xf32>
    %412 = vector.extract_strided_slice %411 {offsets = [0, 0], sizes = [8, 32], strides = [1, 1]} : vector<8x96xf32> to vector<8x32xf32>
    %413 = vector.extract_strided_slice %411 {offsets = [0, 32], sizes = [8, 32], strides = [1, 1]} : vector<8x96xf32> to vector<8x32xf32>
    %414 = vector.extract_strided_slice %411 {offsets = [0, 64], sizes = [8, 32], strides = [1, 1]} : vector<8x96xf32> to vector<8x32xf32>
    %415 = vector.extract_strided_slice %405 {offsets = [0, 96], sizes = [8, 32], strides = [1, 1]} : vector<8x128xf32> to vector<8x32xf32>
    %416 = math.tanh %415 : vector<8x32xf32>
    %417 = arith.mulf %413, %401 : vector<8x32xf32>
    %418 = arith.mulf %412, %416 : vector<8x32xf32>
    %419 = arith.addf %417, %418 : vector<8x32xf32>
    %420 = math.tanh %419 : vector<8x32xf32>
    %421 = arith.mulf %414, %420 : vector<8x32xf32>
    %c1_245 = arith.constant 1 : index
    %c0_246 = arith.constant 0 : index
    %c0_247 = arith.constant 0 : index
    %422 = vector.load %arg10[%c1_245, %c0_246, %c0_247] : memref<2x8x32xf32, #tpu.memory_space<vmem>>, vector<1x8x32xf32>
    %423 = vector.shape_cast %422 : vector<1x8x32xf32> to vector<8x32xf32>
    %424 = vector.shape_cast %421 : vector<8x32xf32> to vector<1x8x32xf32>
    tpu.vector_store %arg10[%c1_245, %c0_246, %c0_247], %424 {strides = array<i32>} : memref<2x8x32xf32, #tpu.memory_space<vmem>>, vector<1x8x32xf32>,
    %c1_248 = arith.constant 1 : index
    %c0_249 = arith.constant 0 : index
    %c0_250 = arith.constant 0 : index
    %425 = vector.load %arg11[%c1_248, %c0_249, %c0_250] : memref<2x8x32xf32, #tpu.memory_space<vmem>>, vector<1x8x32xf32>
    %426 = vector.shape_cast %425 : vector<1x8x32xf32> to vector<8x32xf32>
    %427 = vector.shape_cast %419 : vector<8x32xf32> to vector<1x8x32xf32>
    tpu.vector_store %arg11[%c1_248, %c0_249, %c0_250], %427 {strides = array<i32>} : memref<2x8x32xf32, #tpu.memory_space<vmem>>, vector<1x8x32xf32>,
    %c32_251 = arith.constant 32 : index
    %c0_252 = arith.constant 0 : index
    %428 = vector.load %arg12[%c32_251, %c0_252] : memref<64x32xf32, #tpu.memory_space<vmem>>, vector<8x32xf32>
    tpu.vector_store %arg12[%c32_251, %c0_252], %421 {strides = array<i32>} : memref<64x32xf32, #tpu.memory_space<vmem>>, vector<8x32xf32>,
    %c1_253 = arith.constant 1 : index
    %c0_254 = arith.constant 0 : index
    %c0_255 = arith.constant 0 : index
    %429 = vector.load %arg10[%c1_253, %c0_254, %c0_255] : memref<2x8x32xf32, #tpu.memory_space<vmem>>, vector<1x8x32xf32>
    %430 = vector.shape_cast %429 : vector<1x8x32xf32> to vector<8x32xf32>
    %c1_256 = arith.constant 1 : index
    %c0_257 = arith.constant 0 : index
    %c0_258 = arith.constant 0 : index
    %431 = vector.load %arg11[%c1_256, %c0_257, %c0_258] : memref<2x8x32xf32, #tpu.memory_space<vmem>>, vector<1x8x32xf32>
    %432 = vector.shape_cast %431 : vector<1x8x32xf32> to vector<8x32xf32>
    %c40_259 = arith.constant 40 : index
    %c0_260 = arith.constant 0 : index
    %433 = vector.load %arg13[%c40_259, %c0_260] : memref<64x128xf32, #tpu.memory_space<vmem>>, vector<8x128xf32>
    %434 = arith.truncf %430 : vector<8x32xf32> to vector<8x32xbf16>
    %cst_261 = arith.constant dense<0.000000e+00> : vector<8x128xf32>
    %435 = tpu.matmul %434, %273, %cst_261 {dimension_numbers = #tpu.dot_dimension_numbers<[1], [0], [0], [1], [0, 0, 1, 1], [], []>} : vector<8x32xbf16>, vector<32x128xbf16>, vector<8x128xf32> -> vector<8x128xf32>
    %436 = arith.addf %433, %435 : vector<8x128xf32>
    %437 = vector.extract_strided_slice %436 {offsets = [0, 0], sizes = [8, 96], strides = [1, 1]} : vector<8x128xf32> to vector<8x96xf32>
    %438 = arith.negf %437 : vector<8x96xf32>
    %439 = math.exp %438 : vector<8x96xf32>
    %cst_262 = arith.constant 1.000000e+00 : f32
    %440 = vector.broadcast %cst_262 : f32 to vector<8x96xf32>
    %441 = arith.addf %440, %439 : vector<8x96xf32>
    %442 = arith.divf %440, %441 : vector<8x96xf32>
    %443 = vector.extract_strided_slice %442 {offsets = [0, 0], sizes = [8, 32], strides = [1, 1]} : vector<8x96xf32> to vector<8x32xf32>
    %444 = vector.extract_strided_slice %442 {offsets = [0, 32], sizes = [8, 32], strides = [1, 1]} : vector<8x96xf32> to vector<8x32xf32>
    %445 = vector.extract_strided_slice %442 {offsets = [0, 64], sizes = [8, 32], strides = [1, 1]} : vector<8x96xf32> to vector<8x32xf32>
    %446 = vector.extract_strided_slice %436 {offsets = [0, 96], sizes = [8, 32], strides = [1, 1]} : vector<8x128xf32> to vector<8x32xf32>
    %447 = math.tanh %446 : vector<8x32xf32>
    %448 = arith.mulf %444, %432 : vector<8x32xf32>
    %449 = arith.mulf %443, %447 : vector<8x32xf32>
    %450 = arith.addf %448, %449 : vector<8x32xf32>
    %451 = math.tanh %450 : vector<8x32xf32>
    %452 = arith.mulf %445, %451 : vector<8x32xf32>
    %c1_263 = arith.constant 1 : index
    %c0_264 = arith.constant 0 : index
    %c0_265 = arith.constant 0 : index
    %453 = vector.load %arg10[%c1_263, %c0_264, %c0_265] : memref<2x8x32xf32, #tpu.memory_space<vmem>>, vector<1x8x32xf32>
    %454 = vector.shape_cast %453 : vector<1x8x32xf32> to vector<8x32xf32>
    %455 = vector.shape_cast %452 : vector<8x32xf32> to vector<1x8x32xf32>
    tpu.vector_store %arg10[%c1_263, %c0_264, %c0_265], %455 {strides = array<i32>} : memref<2x8x32xf32, #tpu.memory_space<vmem>>, vector<1x8x32xf32>,
    %c1_266 = arith.constant 1 : index
    %c0_267 = arith.constant 0 : index
    %c0_268 = arith.constant 0 : index
    %456 = vector.load %arg11[%c1_266, %c0_267, %c0_268] : memref<2x8x32xf32, #tpu.memory_space<vmem>>, vector<1x8x32xf32>
    %457 = vector.shape_cast %456 : vector<1x8x32xf32> to vector<8x32xf32>
    %458 = vector.shape_cast %450 : vector<8x32xf32> to vector<1x8x32xf32>
    tpu.vector_store %arg11[%c1_266, %c0_267, %c0_268], %458 {strides = array<i32>} : memref<2x8x32xf32, #tpu.memory_space<vmem>>, vector<1x8x32xf32>,
    %c40_269 = arith.constant 40 : index
    %c0_270 = arith.constant 0 : index
    %459 = vector.load %arg12[%c40_269, %c0_270] : memref<64x32xf32, #tpu.memory_space<vmem>>, vector<8x32xf32>
    tpu.vector_store %arg12[%c40_269, %c0_270], %452 {strides = array<i32>} : memref<64x32xf32, #tpu.memory_space<vmem>>, vector<8x32xf32>,
    %c1_271 = arith.constant 1 : index
    %c0_272 = arith.constant 0 : index
    %c0_273 = arith.constant 0 : index
    %460 = vector.load %arg10[%c1_271, %c0_272, %c0_273] : memref<2x8x32xf32, #tpu.memory_space<vmem>>, vector<1x8x32xf32>
    %461 = vector.shape_cast %460 : vector<1x8x32xf32> to vector<8x32xf32>
    %c1_274 = arith.constant 1 : index
    %c0_275 = arith.constant 0 : index
    %c0_276 = arith.constant 0 : index
    %462 = vector.load %arg11[%c1_274, %c0_275, %c0_276] : memref<2x8x32xf32, #tpu.memory_space<vmem>>, vector<1x8x32xf32>
    %463 = vector.shape_cast %462 : vector<1x8x32xf32> to vector<8x32xf32>
    %c48_277 = arith.constant 48 : index
    %c0_278 = arith.constant 0 : index
    %464 = vector.load %arg13[%c48_277, %c0_278] : memref<64x128xf32, #tpu.memory_space<vmem>>, vector<8x128xf32>
    %465 = arith.truncf %461 : vector<8x32xf32> to vector<8x32xbf16>
    %cst_279 = arith.constant dense<0.000000e+00> : vector<8x128xf32>
    %466 = tpu.matmul %465, %273, %cst_279 {dimension_numbers = #tpu.dot_dimension_numbers<[1], [0], [0], [1], [0, 0, 1, 1], [], []>} : vector<8x32xbf16>, vector<32x128xbf16>, vector<8x128xf32> -> vector<8x128xf32>
    %467 = arith.addf %464, %466 : vector<8x128xf32>
    %468 = vector.extract_strided_slice %467 {offsets = [0, 0], sizes = [8, 96], strides = [1, 1]} : vector<8x128xf32> to vector<8x96xf32>
    %469 = arith.negf %468 : vector<8x96xf32>
    %470 = math.exp %469 : vector<8x96xf32>
    %cst_280 = arith.constant 1.000000e+00 : f32
    %471 = vector.broadcast %cst_280 : f32 to vector<8x96xf32>
    %472 = arith.addf %471, %470 : vector<8x96xf32>
    %473 = arith.divf %471, %472 : vector<8x96xf32>
    %474 = vector.extract_strided_slice %473 {offsets = [0, 0], sizes = [8, 32], strides = [1, 1]} : vector<8x96xf32> to vector<8x32xf32>
    %475 = vector.extract_strided_slice %473 {offsets = [0, 32], sizes = [8, 32], strides = [1, 1]} : vector<8x96xf32> to vector<8x32xf32>
    %476 = vector.extract_strided_slice %473 {offsets = [0, 64], sizes = [8, 32], strides = [1, 1]} : vector<8x96xf32> to vector<8x32xf32>
    %477 = vector.extract_strided_slice %467 {offsets = [0, 96], sizes = [8, 32], strides = [1, 1]} : vector<8x128xf32> to vector<8x32xf32>
    %478 = math.tanh %477 : vector<8x32xf32>
    %479 = arith.mulf %475, %463 : vector<8x32xf32>
    %480 = arith.mulf %474, %478 : vector<8x32xf32>
    %481 = arith.addf %479, %480 : vector<8x32xf32>
    %482 = math.tanh %481 : vector<8x32xf32>
    %483 = arith.mulf %476, %482 : vector<8x32xf32>
    %c1_281 = arith.constant 1 : index
    %c0_282 = arith.constant 0 : index
    %c0_283 = arith.constant 0 : index
    %484 = vector.load %arg10[%c1_281, %c0_282, %c0_283] : memref<2x8x32xf32, #tpu.memory_space<vmem>>, vector<1x8x32xf32>
    %485 = vector.shape_cast %484 : vector<1x8x32xf32> to vector<8x32xf32>
    %486 = vector.shape_cast %483 : vector<8x32xf32> to vector<1x8x32xf32>
    tpu.vector_store %arg10[%c1_281, %c0_282, %c0_283], %486 {strides = array<i32>} : memref<2x8x32xf32, #tpu.memory_space<vmem>>, vector<1x8x32xf32>,
    %c1_284 = arith.constant 1 : index
    %c0_285 = arith.constant 0 : index
    %c0_286 = arith.constant 0 : index
    %487 = vector.load %arg11[%c1_284, %c0_285, %c0_286] : memref<2x8x32xf32, #tpu.memory_space<vmem>>, vector<1x8x32xf32>
    %488 = vector.shape_cast %487 : vector<1x8x32xf32> to vector<8x32xf32>
    %489 = vector.shape_cast %481 : vector<8x32xf32> to vector<1x8x32xf32>
    tpu.vector_store %arg11[%c1_284, %c0_285, %c0_286], %489 {strides = array<i32>} : memref<2x8x32xf32, #tpu.memory_space<vmem>>, vector<1x8x32xf32>,
    %c48_287 = arith.constant 48 : index
    %c0_288 = arith.constant 0 : index
    %490 = vector.load %arg12[%c48_287, %c0_288] : memref<64x32xf32, #tpu.memory_space<vmem>>, vector<8x32xf32>
    tpu.vector_store %arg12[%c48_287, %c0_288], %483 {strides = array<i32>} : memref<64x32xf32, #tpu.memory_space<vmem>>, vector<8x32xf32>,
    %c1_289 = arith.constant 1 : index
    %c0_290 = arith.constant 0 : index
    %c0_291 = arith.constant 0 : index
    %491 = vector.load %arg10[%c1_289, %c0_290, %c0_291] : memref<2x8x32xf32, #tpu.memory_space<vmem>>, vector<1x8x32xf32>
    %492 = vector.shape_cast %491 : vector<1x8x32xf32> to vector<8x32xf32>
    %c1_292 = arith.constant 1 : index
    %c0_293 = arith.constant 0 : index
    %c0_294 = arith.constant 0 : index
    %493 = vector.load %arg11[%c1_292, %c0_293, %c0_294] : memref<2x8x32xf32, #tpu.memory_space<vmem>>, vector<1x8x32xf32>
    %494 = vector.shape_cast %493 : vector<1x8x32xf32> to vector<8x32xf32>
    %c56_295 = arith.constant 56 : index
    %c0_296 = arith.constant 0 : index
    %495 = vector.load %arg13[%c56_295, %c0_296] : memref<64x128xf32, #tpu.memory_space<vmem>>, vector<8x128xf32>
    %496 = arith.truncf %492 : vector<8x32xf32> to vector<8x32xbf16>
    %cst_297 = arith.constant dense<0.000000e+00> : vector<8x128xf32>
    %497 = tpu.matmul %496, %273, %cst_297 {dimension_numbers = #tpu.dot_dimension_numbers<[1], [0], [0], [1], [0, 0, 1, 1], [], []>} : vector<8x32xbf16>, vector<32x128xbf16>, vector<8x128xf32> -> vector<8x128xf32>
    %498 = arith.addf %495, %497 : vector<8x128xf32>
    %499 = vector.extract_strided_slice %498 {offsets = [0, 0], sizes = [8, 96], strides = [1, 1]} : vector<8x128xf32> to vector<8x96xf32>
    %500 = arith.negf %499 : vector<8x96xf32>
    %501 = math.exp %500 : vector<8x96xf32>
    %cst_298 = arith.constant 1.000000e+00 : f32
    %502 = vector.broadcast %cst_298 : f32 to vector<8x96xf32>
    %503 = arith.addf %502, %501 : vector<8x96xf32>
    %504 = arith.divf %502, %503 : vector<8x96xf32>
    %505 = vector.extract_strided_slice %504 {offsets = [0, 0], sizes = [8, 32], strides = [1, 1]} : vector<8x96xf32> to vector<8x32xf32>
    %506 = vector.extract_strided_slice %504 {offsets = [0, 32], sizes = [8, 32], strides = [1, 1]} : vector<8x96xf32> to vector<8x32xf32>
    %507 = vector.extract_strided_slice %504 {offsets = [0, 64], sizes = [8, 32], strides = [1, 1]} : vector<8x96xf32> to vector<8x32xf32>
    %508 = vector.extract_strided_slice %498 {offsets = [0, 96], sizes = [8, 32], strides = [1, 1]} : vector<8x128xf32> to vector<8x32xf32>
    %509 = math.tanh %508 : vector<8x32xf32>
    %510 = arith.mulf %506, %494 : vector<8x32xf32>
    %511 = arith.mulf %505, %509 : vector<8x32xf32>
    %512 = arith.addf %510, %511 : vector<8x32xf32>
    %513 = math.tanh %512 : vector<8x32xf32>
    %514 = arith.mulf %507, %513 : vector<8x32xf32>
    %c1_299 = arith.constant 1 : index
    %c0_300 = arith.constant 0 : index
    %c0_301 = arith.constant 0 : index
    %515 = vector.load %arg10[%c1_299, %c0_300, %c0_301] : memref<2x8x32xf32, #tpu.memory_space<vmem>>, vector<1x8x32xf32>
    %516 = vector.shape_cast %515 : vector<1x8x32xf32> to vector<8x32xf32>
    %517 = vector.shape_cast %514 : vector<8x32xf32> to vector<1x8x32xf32>
    tpu.vector_store %arg10[%c1_299, %c0_300, %c0_301], %517 {strides = array<i32>} : memref<2x8x32xf32, #tpu.memory_space<vmem>>, vector<1x8x32xf32>,
    %c1_302 = arith.constant 1 : index
    %c0_303 = arith.constant 0 : index
    %c0_304 = arith.constant 0 : index
    %518 = vector.load %arg11[%c1_302, %c0_303, %c0_304] : memref<2x8x32xf32, #tpu.memory_space<vmem>>, vector<1x8x32xf32>
    %519 = vector.shape_cast %518 : vector<1x8x32xf32> to vector<8x32xf32>
    %520 = vector.shape_cast %512 : vector<8x32xf32> to vector<1x8x32xf32>
    tpu.vector_store %arg11[%c1_302, %c0_303, %c0_304], %520 {strides = array<i32>} : memref<2x8x32xf32, #tpu.memory_space<vmem>>, vector<1x8x32xf32>,
    %c56_305 = arith.constant 56 : index
    %c0_306 = arith.constant 0 : index
    %521 = vector.load %arg12[%c56_305, %c0_306] : memref<64x32xf32, #tpu.memory_space<vmem>>, vector<8x32xf32>
    tpu.vector_store %arg12[%c56_305, %c0_306], %514 {strides = array<i32>} : memref<64x32xf32, #tpu.memory_space<vmem>>, vector<8x32xf32>,
    %c0_307 = arith.constant 0 : index
    %c0_308 = arith.constant 0 : index
    %522 = vector.load %arg12[%c0_307, %c0_308] : memref<64x32xf32, #tpu.memory_space<vmem>>, vector<64x32xf32>
    %523 = arith.truncf %522 : vector<64x32xf32> to vector<64x32xbf16>
    %c0_309 = arith.constant 0 : index
    %c0_310 = arith.constant 0 : index
    %524 = vector.load %arg7[%c0_309, %c0_310] : memref<32x128xbf16, #tpu.memory_space<vmem>>, vector<32x128xbf16>
    %cst_311 = arith.constant dense<0.000000e+00> : vector<64x128xf32>
    %525 = tpu.matmul %523, %524, %cst_311 {dimension_numbers = #tpu.dot_dimension_numbers<[1], [0], [0], [1], [0, 0, 1, 1], [], []>} : vector<64x32xbf16>, vector<32x128xbf16>, vector<64x128xf32> -> vector<64x128xf32>
    %c0_312 = arith.constant 0 : index
    %c0_313 = arith.constant 0 : index
    %526 = vector.load %arg8[%c0_312, %c0_313] : memref<1x128xf32, #tpu.memory_space<vmem>>, vector<1x128xf32>
    %527 = vector.broadcast %526 : vector<1x128xf32> to vector<64x128xf32>
    %528 = arith.addf %525, %527 : vector<64x128xf32>
    %c0_314 = arith.constant 0 : index
    %c0_315 = arith.constant 0 : index
    %c0_316 = arith.constant 0 : index
    %529 = vector.load %arg9[%c0_314, %c0_315, %c0_316] : memref<1x64x128xf32, #tpu.memory_space<vmem>>, vector<1x64x128xf32>
    %530 = vector.shape_cast %529 : vector<1x64x128xf32> to vector<64x128xf32>
    %531 = vector.shape_cast %528 : vector<64x128xf32> to vector<1x64x128xf32>
    tpu.vector_store %arg9[%c0_314, %c0_315, %c0_316], %531 {strides = array<i32>} : memref<1x64x128xf32, #tpu.memory_space<vmem>>, vector<1x64x128xf32>,
    return
  }
  func.func @transform_0(%arg0: i32, %arg1: i32) -> (i32, i32, i32) {
    %c0_i32 = arith.constant 0 : i32
    %c0_i32_0 = arith.constant 0 : i32
    return %arg0, %arg1, %c0_i32 : i32, i32, i32
  }
  func.func @transform_1(%arg0: i32, %arg1: i32) -> (i32, i32) {
    %c0_i32 = arith.constant 0 : i32
    %c0_i32_0 = arith.constant 0 : i32
    %c0_i32_1 = arith.constant 0 : i32
    return %c0_i32, %c0_i32_0 : i32, i32
  }
  func.func @transform_2(%arg0: i32, %arg1: i32) -> (i32, i32, i32) {
    %c0_i32 = arith.constant 0 : i32
    %c0_i32_0 = arith.constant 0 : i32
    %c0_i32_1 = arith.constant 0 : i32
    %c0_i32_2 = arith.constant 0 : i32
    return %c0_i32, %c0_i32_0, %c0_i32_1 : i32, i32, i32
  }
  func.func @transform_3(%arg0: i32, %arg1: i32) -> (i32, i32, i32) {
    %c0_i32 = arith.constant 0 : i32
    %c0_i32_0 = arith.constant 0 : i32
    %c0_i32_1 = arith.constant 0 : i32
    %c0_i32_2 = arith.constant 0 : i32
    return %c0_i32, %c0_i32_0, %c0_i32_1 : i32, i32, i32
  }
  func.func @transform_4(%arg0: i32, %arg1: i32) -> (i32, i32, i32) {
    %c0_i32 = arith.constant 0 : i32
    %c0_i32_0 = arith.constant 0 : i32
    %c0_i32_1 = arith.constant 0 : i32
    %c0_i32_2 = arith.constant 0 : i32
    return %c0_i32, %c0_i32_0, %c0_i32_1 : i32, i32, i32
  }
  func.func @transform_5(%arg0: i32, %arg1: i32) -> (i32, i32) {
    %c0_i32 = arith.constant 0 : i32
    %c0_i32_0 = arith.constant 0 : i32
    %c0_i32_1 = arith.constant 0 : i32
    return %c0_i32, %c0_i32_0 : i32, i32
  }
  func.func @transform_6(%arg0: i32, %arg1: i32) -> (i32, i32) {
    %c0_i32 = arith.constant 0 : i32
    %c0_i32_0 = arith.constant 0 : i32
    %c0_i32_1 = arith.constant 0 : i32
    return %c0_i32, %c0_i32_0 : i32, i32
  }
  func.func @transform_7(%arg0: i32, %arg1: i32) -> (i32, i32, i32) {
    %c0_i32 = arith.constant 0 : i32
    %c0_i32_0 = arith.constant 0 : i32
    return %arg0, %arg1, %c0_i32 : i32, i32, i32
  }
}

</mosaic_0001>

<llo_original>
// kernel: multi_lstm_forward.1
$region0: #{multi_lstm_forward.1}
  #allocation0 [shape = 'u32[]', space=smem, size = 0x4, offset = 0x4, fixed_abs, tag = 'smem constant byte address 0x4 - core index']
  #allocation1 [shape = 'u32[144,128]{1,0:T(1,128)}', space=vmem, size = 0x12000, scoped, tag = 'internal scratch']
  #allocation2 [shape = 'f32[2,8,32]{2,1,0:T(8,128)}', space=vmem, size = 0x2000, scoped, tag = 'scratch operand']
  #allocation3 [shape = 'f32[2,8,32]{2,1,0:T(8,128)}', space=vmem, size = 0x2000, scoped, tag = 'scratch operand']
  #allocation4 [shape = 'f32[64,32]{1,0:T(8,128)}', space=vmem, size = 0x8000, scoped, tag = 'scratch operand']
  #allocation5 [shape = 'f32[64,128]{1,0:T(8,128)}', space=vmem, size = 0x8000, scoped, tag = 'scratch operand']
  %s0 = inlined_call_operand.vmem [shape: bf16[1,64,4], index: 0, kind: input, shape index: {}]
  %s1 = inlined_call_operand.vmem [shape: bf16[4,128], index: 1, kind: input, shape index: {}]
  %s2 = inlined_call_operand.vmem [shape: bf16[1,32,128], index: 2, kind: input, shape index: {}]
  %s3 = inlined_call_operand.vmem [shape: bf16[2,32,128], index: 3, kind: input, shape index: {}]
  %s4 = inlined_call_operand.hbm [shape: f32[2,1,128], index: 4, kind: input, shape index: {}]
  %s5 = inlined_call_operand.vmem [shape: bf16[32,128], index: 5, kind: input, shape index: {}]
  %s6 = inlined_call_operand.vmem [shape: f32[1,128], index: 6, kind: input, shape index: {}]
  %s7 = inlined_call_operand.vmem [shape: f32[1,64,128], index: 7, kind: output, shape index: {}]
  %s8 = sld [smem:[#allocation0]]
  $region46: #{multi_lstm_forward.1} parent=0
    _
  %s10 = ssub.s32 1, %s8
  %s11 = scalar_select 0, %s10, %s8
  $region1: #{multi_lstm_forward.1} parent=0
    #allocation6 [shape = 'u8[1024]{0}', space=vmem, size = 0x400, scoped, tag = 'input window, operand 4, single buffered']
    #allocation7 [shape = 's32[1]{0}', space=sflag, size = 0x4, scoped, tag = 'scoped memory for multi_lstm_forward.1']
    %12 = vsyncpa [#allocation7], 0
    // Predicated region
    $region2: #{multi_lstm_forward.1} parent=1 // pred_check
      _
    $region3: #{multi_lstm_forward.1} parent=1 // pred_check_branch
      %14 = sbr.rel (0) target = $region5
    $region4: #{multi_lstm_forward.1} parent=1 // pred_region
      _
    $region5: #{multi_lstm_forward.1} parent=1 // pred_fallthru
      _
    // Predicated region
    $region6: #{multi_lstm_forward.1} parent=1 // pred_check
      _
    $region7: #{multi_lstm_forward.1} parent=1 // pred_check_branch
      %16 = sbr.rel (0) target = $region9
    $region8: #{multi_lstm_forward.1} parent=1 // pred_region
      _
    $region9: #{multi_lstm_forward.1} parent=1 // pred_fallthru
      _
    // Predicated region
    $region10: #{multi_lstm_forward.1} parent=1 // pred_check
      _
    $region11: #{multi_lstm_forward.1} parent=1 // pred_check_branch
      %18 = sbr.rel (0) target = $region13
    $region12: #{multi_lstm_forward.1} parent=1 // pred_region
      _
    $region13: #{multi_lstm_forward.1} parent=1 // pred_fallthru
      _
    // Predicated region
    $region14: #{multi_lstm_forward.1} parent=1 // pred_check
      _
    $region15: #{multi_lstm_forward.1} parent=1 // pred_check_branch
      %20 = sbr.rel (0) target = $region17
    $region16: #{multi_lstm_forward.1} parent=1 // pred_region
      _
    $region17: #{multi_lstm_forward.1} parent=1 // pred_fallthru
      _
    // Predicated region
    $region18: #{multi_lstm_forward.1} parent=1 // pred_check
      _
    $region19: #{multi_lstm_forward.1} parent=1 // pred_check_branch
      %22 = sbr.rel (0) target = $region21
    $region20: #{multi_lstm_forward.1} parent=1 // pred_region
      %s24 = ssub.s32 32, 32
      %25 = vsyncadd [#allocation7], %s24
      %s26 = sshll.u32 [#allocation6], 4
      %s27 = int_to_ptr.vmem [resolvable:$true] %s26
      %32 = dma.hbm_to_vmem [thread:$0]  %s4, 32, %s27, [#allocation7], 16, 16, 1
    $region21: #{multi_lstm_forward.1} parent=1 // pred_fallthru
      _
    // Predicated region
    $region22: #{multi_lstm_forward.1} parent=1 // pred_check
      _
    $region23: #{multi_lstm_forward.1} parent=1 // pred_check_branch
      %34 = sbr.rel (0) target = $region25
    $region24: #{multi_lstm_forward.1} parent=1 // pred_region
      _
    $region25: #{multi_lstm_forward.1} parent=1 // pred_fallthru
      _
    // Predicated region
    $region26: #{multi_lstm_forward.1} parent=1 // pred_check
      _
    $region27: #{multi_lstm_forward.1} parent=1 // pred_check_branch
      %36 = sbr.rel (0) target = $region29
    $region28: #{multi_lstm_forward.1} parent=1 // pred_region
      _
    $region29: #{multi_lstm_forward.1} parent=1 // pred_fallthru
      _
    // Predicated region
    $region30: #{multi_lstm_forward.1} parent=1 // pred_check
      _
    $region31: #{multi_lstm_forward.1} parent=1 // pred_check_branch
      %38 = sbr.rel (0) target = $region33
    $region32: #{multi_lstm_forward.1} parent=1 // pred_region
      %39 = dma.done [#allocation7], 32
    $region33: #{multi_lstm_forward.1} parent=1 // pred_fallthru
      _
    %p41 = scmp.eq.s32.totalorder 0, 0
    // Predicated region
    $region34: #{multi_lstm_forward.1} parent=1 // pred_check
      %p42 = pneg %p41
    $region35: #{multi_lstm_forward.1} parent=1 // pred_check_branch
      %44 = sbr.rel (%p42) target = $region37
    $region36: #{multi_lstm_forward.1} parent=1 // pred_region
      %vm45 = vcmask 261120
      %46 = vst.msk [vmem:[#allocation2] sm:$0xff] %vm45, 0.0
      %47 = vst.msk [vmem:[#allocation2 + $0x8] sm:$0xff] %vm45, 0.0
      %48 = vst.msk [vmem:[#allocation3] sm:$0xff] %vm45, 0.0
      %49 = vst.msk [vmem:[#allocation3 + $0x8] sm:$0xff] %vm45, 0.0
    $region37: #{multi_lstm_forward.1} parent=1 // pred_fallthru
      _
    %v50 = vld [vmem:[%s0] sm:$0xf]
    %v51 = vld [vmem:[%s0 + $0x4] sm:$0xf]
    %v52 = vld [vmem:[%s0 + $0x8] sm:$0xf]
    %v53 = vld [vmem:[%s0 + $0xc] sm:$0xf]
    %v54 = vld [vmem:[%s0 + $0x10] sm:$0xf]
    %v55 = vld [vmem:[%s0 + $0x14] sm:$0xf]
    %v56 = vld [vmem:[%s0 + $0x18] sm:$0xf]
    %v57 = vld [vmem:[%s0 + $0x1c] sm:$0xf]
    %v58 = vld [vmem:[%s1] sm:$0x3]
    %v59 = vld [vmem:[#allocation6] sm:$0x1]
    %v61 = vlaneseq
    %v62 = vshrl.u32 %v61, 7
    %v63 = vsub.s32 0, %v62
    %v64 = vrot.slane %v59, %v63
    %v74 = vunpack.c.l.b16 %v50
    %v75 = vunpack.c.l.b16 %v51
    %v76 = vunpack.c.l.b16 %v52
    %v77 = vunpack.c.l.b16 %v53
    %v78 = vunpack.c.l.b16 %v54
    %v79 = vunpack.c.l.b16 %v55
    %v80 = vunpack.c.l.b16 %v56
    %v81 = vunpack.c.l.b16 %v57
    %v82 = vpack.c.b16 %v75, %v74
    %v83 = vpack.c.b16 %v77, %v76
    %v84 = vpack.c.b16 %v79, %v78
    %v85 = vpack.c.b16 %v81, %v80
    %vm86 = vcmask 31744
    %v88 = vsel %vm86, %v82, 0
    %v91 = vsel %vm86, %v83, 0
    %v94 = vsel %vm86, %v84, 0
    %v97 = vsel %vm86, %v85, 0
    %vm99 = vcmask 1041408
    %v101 = vsel %vm99, %v58, 0
    %103 = vmatprep.subr.bf16.mxu0 0
    %104 = vmatpush1.bf16.msra.mxu0 %v101
    %105 = vmatprep.subr.bf16.mxu0 0
    %106 = vmatpush1.bf16.msra.mxu0 0
    %107 = vmatprep.subr.bf16.mxu0 0
    %108 = vmatpush1.bf16.msra.mxu0 0
    %109 = vmatprep.subr.bf16.mxu0 0
    %110 = vmatpush1.bf16.msra.mxu0 0
    %111 = vmatprep.subr.bf16.mxu0 0
    %112 = vmatpush1.bf16.msra.mxu0 0
    %113 = vmatprep.subr.bf16.mxu0 0
    %114 = vmatpush1.bf16.msra.mxu0 0
    %115 = vmatprep.subr.bf16.mxu0 0
    %116 = vmatpush1.bf16.msra.mxu0 0
    %117 = vmatprep.subr.bf16.mxu0 0
    %118 = vmatpush1.bf16.msra.mxu0 0
    %119 = vmatprep.subr.bf16.mxu0 0
    %120 = vmatpush1.bf16.msra.mxu0 0
    %121 = vmatprep.subr.bf16.mxu0 0
    %122 = vmatpush1.bf16.msra.mxu0 0
    %123 = vmatprep.subr.bf16.mxu0 0
    %124 = vmatpush1.bf16.msra.mxu0 0
    %125 = vmatprep.subr.bf16.mxu0 0
    %126 = vmatpush1.bf16.msra.mxu0 0
    %127 = vmatprep.subr.bf16.mxu0 0
    %128 = vmatpush1.bf16.msra.mxu0 0
    %129 = vmatprep.subr.bf16.mxu0 0
    %130 = vmatpush1.bf16.msra.mxu0 0
    %131 = vmatprep.subr.bf16.mxu0 0
    %132 = vmatpush1.bf16.msra.mxu0 0
    %133 = vmatprep.subr.bf16.mxu0 0
    %134 = vmatpush1.bf16.msra.mxu0 0
    %135 = vmatprep.mubr.bf16.mxu0 0
    %136 = vmatmul.mubr.bf16.gmra.mrb[0].mxu0 %v88
    %v137 = vpop.f32.mrb[0].mxu0
    %v138 = vadd.f32 %v64, %v137
    %v139 = vpop.f32.mrb[0].mxu0
    %v140 = vpop.f32.mrb[0].mxu0
    %v141 = vadd.f32 %v64, %v140
    %v142 = vpop.f32.mrb[0].mxu0
    %143 = vmatprep.mubr.bf16.mxu0 0
    %144 = vmatmul.mubr.bf16.gmra.mrb[0].mxu0 %v91
    %v145 = vpop.f32.mrb[0].mxu0
    %v146 = vadd.f32 %v64, %v145
    %v147 = vpop.f32.mrb[0].mxu0
    %v148 = vpop.f32.mrb[0].mxu0
    %v149 = vadd.f32 %v64, %v148
    %v150 = vpop.f32.mrb[0].mxu0
    %151 = vmatprep.mubr.bf16.mxu0 0
    %152 = vmatmul.mubr.bf16.gmra.mrb[0].mxu0 %v94
    %v153 = vpop.f32.mrb[0].mxu0
    %v154 = vadd.f32 %v64, %v153
    %v155 = vpop.f32.mrb[0].mxu0
    %v156 = vpop.f32.mrb[0].mxu0
    %v157 = vadd.f32 %v64, %v156
    %v158 = vpop.f32.mrb[0].mxu0
    %159 = vmatprep.mubr.bf16.mxu0 0
    %160 = vmatmul.mubr.bf16.gmra.mrb[0].mxu0 %v97
    %v161 = vpop.f32.mrb[0].mxu0
    %v162 = vadd.f32 %v64, %v161
    %v163 = vpop.f32.mrb[0].mxu0
    %v164 = vpop.f32.mrb[0].mxu0
    %v165 = vadd.f32 %v64, %v164
    %v166 = vpop.f32.mrb[0].mxu0
    %167 = vdwg.mxu0
    %168 = vst [vmem:[#allocation5] sm:$0xff] %v138
    %169 = vst [vmem:[#allocation5 + $0x8] sm:$0xff] %v141
    %170 = vst [vmem:[#allocation5 + $0x10] sm:$0xff] %v146
    %171 = vst [vmem:[#allocation5 + $0x18] sm:$0xff] %v149
    %172 = vst [vmem:[#allocation5 + $0x20] sm:$0xff] %v154
    %173 = vst [vmem:[#allocation5 + $0x28] sm:$0xff] %v157
    %174 = vst [vmem:[#allocation5 + $0x30] sm:$0xff] %v162
    %175 = vst [vmem:[#allocation5 + $0x38] sm:$0xff] %v165
    %v176 = vld [vmem:[%s3] sm:$0xf]
    %v177 = vld [vmem:[%s3 + $0x4] sm:$0xf]
    %v178 = vld [vmem:[%s3 + $0x8] sm:$0xf]
    %v179 = vld [vmem:[%s3 + $0xc] sm:$0xf]
    %v180 = vld [vmem:[#allocation2] sm:$0xff]
    %v181 = vld [vmem:[#allocation3] sm:$0xff]
    %v182 = vld [vmem:[#allocation5] sm:$0xff]
    %v183 = vpack.c.bf16 %v180, %v180
    %v188 = vunpack.c.l.b16 %v176
    %v189 = vunpack.c.l.b16 %v177
    %v190 = vunpack.c.l.b16 %v178
    %v191 = vunpack.c.l.b16 %v179
    %v192 = vpack.c.b16 %v189, %v188
    %v193 = vpack.c.b16 %v191, %v190
    %vm196 = vcmask 261120
    %v198 = vsel %vm196, %v183, 0
    %200 = vmatprep.subr.bf16.mxu0 0
    %201 = vmatpush1.bf16.msra.mxu0 %v192
    %202 = vmatprep.subr.bf16.mxu0 0
    %203 = vmatpush1.bf16.msra.mxu0 %v193
    %204 = vmatprep.subr.bf16.mxu0 0
    %205 = vmatpush1.bf16.msra.mxu0 0
    %206 = vmatprep.subr.bf16.mxu0 0
    %207 = vmatpush1.bf16.msra.mxu0 0
    %208 = vmatprep.subr.bf16.mxu0 0
    %209 = vmatpush1.bf16.msra.mxu0 0
    %210 = vmatprep.subr.bf16.mxu0 0
    %211 = vmatpush1.bf16.msra.mxu0 0
    %212 = vmatprep.subr.bf16.mxu0 0
    %213 = vmatpush1.bf16.msra.mxu0 0
    %214 = vmatprep.subr.bf16.mxu0 0
    %215 = vmatpush1.bf16.msra.mxu0 0
    %216 = vmatprep.subr.bf16.mxu0 0
    %217 = vmatpush1.bf16.msra.mxu0 0
    %218 = vmatprep.subr.bf16.mxu0 0
    %219 = vmatpush1.bf16.msra.mxu0 0
    %220 = vmatprep.subr.bf16.mxu0 0
    %221 = vmatpush1.bf16.msra.mxu0 0
    %222 = vmatprep.subr.bf16.mxu0 0
    %223 = vmatpush1.bf16.msra.mxu0 0
    %224 = vmatprep.subr.bf16.mxu0 0
    %225 = vmatpush1.bf16.msra.mxu0 0
    %226 = vmatprep.subr.bf16.mxu0 0
    %227 = vmatpush1.bf16.msra.mxu0 0
    %228 = vmatprep.subr.bf16.mxu0 0
    %229 = vmatpush1.bf16.msra.mxu0 0
    %230 = vmatprep.subr.bf16.mxu0 0
    %231 = vmatpush1.bf16.msra.mxu0 0
    %232 = vmatprep.mubr.bf16.mxu0 0
    %233 = vmatmul.mubr.bf16.gmra.mrb[0].mxu0 %v198
    %v234 = vpop.f32.mrb[0].mxu0
    %v235 = vadd.f32 0.0, %v234
    %v236 = vpop.f32.mrb[0].mxu0
    %v237 = vpop.f32.mrb[0].mxu0
    %v238 = vpop.f32.mrb[0].mxu0
    %239 = vdwg.mxu0
    %v240 = vadd.f32 %v182, %v235
    %v241 = vxor.u32 %v240, 2147483648
    %v242 = vmul.f32 %v241, 1.442695
    %v243 = vpow.pop %v242
    %v244 = vadd.f32 %v243, 1.0
    %v245 = vrcp.pop %v244
    %v246 = vmul.f32 1.0, %v245
    %v247 = vtanh.pop %v240
    %249 = vrot.lane.b32.xlu0 %v181, 32
    %v250 = vpop.permute.xlu0 %249
    %v252 = vmul.f32 %v246, %v250
    %254 = vrot.lane.b32.xlu0 %v247, 32
    %v255 = vpop.permute.xlu0 %254
    %v257 = vmul.f32 %v246, %v255
    %259 = vrot.lane.b32.xlu0 %v257, 32
    %v260 = vpop.permute.xlu0 %259
    %v262 = vadd.f32 %v252, %v260
    %v263 = vtanh.pop %v262
    %265 = vrot.lane.b32.xlu0 %v263, 32
    %v266 = vpop.permute.xlu0 %265
    %v268 = vmul.f32 %v246, %v266
    %270 = vrot.lane.b32.xlu0 %v268, 64
    %v271 = vpop.permute.xlu0 %270
    %273 = vst.msk [vmem:[#allocation2] sm:$0xff] %vm196, %v271
    %275 = vrot.lane.b32.xlu0 %v262, 96
    %v276 = vpop.permute.xlu0 %275
    %278 = vst.msk [vmem:[#allocation3] sm:$0xff] %vm196, %v276
    %279 = vst.msk [vmem:[#allocation4] sm:$0xff] %vm196, %v271
    %v280 = vld [vmem:[#allocation2] sm:$0xff]
    %v281 = vld [vmem:[#allocation3] sm:$0xff]
    %v282 = vld [vmem:[#allocation5 + $0x8] sm:$0xff]
    %v283 = vpack.c.bf16 %v280, %v280
    %v285 = vsel %vm196, %v283, 0
    %287 = vmatprep.subr.bf16.mxu0 0
    %288 = vmatpush1.bf16.msra.mxu0 %v192
    %289 = vmatprep.subr.bf16.mxu0 0
    %290 = vmatpush1.bf16.msra.mxu0 %v193
    %291 = vmatprep.subr.bf16.mxu0 0
    %292 = vmatpush1.bf16.msra.mxu0 0
    %293 = vmatprep.subr.bf16.mxu0 0
    %294 = vmatpush1.bf16.msra.mxu0 0
    %295 = vmatprep.subr.bf16.mxu0 0
    %296 = vmatpush1.bf16.msra.mxu0 0
    %297 = vmatprep.subr.bf16.mxu0 0
    %298 = vmatpush1.bf16.msra.mxu0 0
    %299 = vmatprep.subr.bf16.mxu0 0
    %300 = vmatpush1.bf16.msra.mxu0 0
    %301 = vmatprep.subr.bf16.mxu0 0
    %302 = vmatpush1.bf16.msra.mxu0 0
    %303 = vmatprep.subr.bf16.mxu0 0
    %304 = vmatpush1.bf16.msra.mxu0 0
    %305 = vmatprep.subr.bf16.mxu0 0
    %306 = vmatpush1.bf16.msra.mxu0 0
    %307 = vmatprep.subr.bf16.mxu0 0
    %308 = vmatpush1.bf16.msra.mxu0 0
    %309 = vmatprep.subr.bf16.mxu0 0
    %310 = vmatpush1.bf16.msra.mxu0 0
    %311 = vmatprep.subr.bf16.mxu0 0
    %312 = vmatpush1.bf16.msra.mxu0 0
    %313 = vmatprep.subr.bf16.mxu0 0
    %314 = vmatpush1.bf16.msra.mxu0 0
    %315 = vmatprep.subr.bf16.mxu0 0
    %316 = vmatpush1.bf16.msra.mxu0 0
    %317 = vmatprep.subr.bf16.mxu0 0
    %318 = vmatpush1.bf16.msra.mxu0 0
    %319 = vmatprep.mubr.bf16.mxu0 0
    %320 = vmatmul.mubr.bf16.gmra.mrb[0].mxu0 %v285
    %v321 = vpop.f32.mrb[0].mxu0
    %v322 = vadd.f32 0.0, %v321
    %v323 = vpop.f32.mrb[0].mxu0
    %v324 = vpop.f32.mrb[0].mxu0
    %v325 = vpop.f32.mrb[0].mxu0
    %326 = vdwg.mxu0
    %v327 = vadd.f32 %v282, %v322
    %v328 = vxor.u32 %v327, 2147483648
    %v329 = vmul.f32 %v328, 1.442695
    %v330 = vpow.pop %v329
    %v331 = vadd.f32 %v330, 1.0
    %v332 = vrcp.pop %v331
    %v333 = vmul.f32 1.0, %v332
    %v334 = vtanh.pop %v327
    %336 = vrot.lane.b32.xlu0 %v281, 32
    %v337 = vpop.permute.xlu0 %336
    %v339 = vmul.f32 %v333, %v337
    %341 = vrot.lane.b32.xlu0 %v334, 32
    %v342 = vpop.permute.xlu0 %341
    %v344 = vmul.f32 %v333, %v342
    %346 = vrot.lane.b32.xlu0 %v344, 32
    %v347 = vpop.permute.xlu0 %346
    %v349 = vadd.f32 %v339, %v347
    %v350 = vtanh.pop %v349
    %352 = vrot.lane.b32.xlu0 %v350, 32
    %v353 = vpop.permute.xlu0 %352
    %v355 = vmul.f32 %v333, %v353
    %357 = vrot.lane.b32.xlu0 %v355, 64
    %v358 = vpop.permute.xlu0 %357
    %360 = vst.msk [vmem:[#allocation2] sm:$0xff] %vm196, %v358
    %362 = vrot.lane.b32.xlu0 %v349, 96
    %v363 = vpop.permute.xlu0 %362
    %365 = vst.msk [vmem:[#allocation3] sm:$0xff] %vm196, %v363
    %366 = vst.msk [vmem:[#allocation4 + $0x8] sm:$0xff] %vm196, %v358
    %v367 = vld [vmem:[#allocation2] sm:$0xff]
    %v368 = vld [vmem:[#allocation3] sm:$0xff]
    %v369 = vld [vmem:[#allocation5 + $0x10] sm:$0xff]
    %v370 = vpack.c.bf16 %v367, %v367
    %v372 = vsel %vm196, %v370, 0
    %374 = vmatprep.subr.bf16.mxu0 0
    %375 = vmatpush1.bf16.msra.mxu0 %v192
    %376 = vmatprep.subr.bf16.mxu0 0
    %377 = vmatpush1.bf16.msra.mxu0 %v193
    %378 = vmatprep.subr.bf16.mxu0 0
    %379 = vmatpush1.bf16.msra.mxu0 0
    %380 = vmatprep.subr.bf16.mxu0 0
    %381 = vmatpush1.bf16.msra.mxu0 0
    %382 = vmatprep.subr.bf16.mxu0 0
    %383 = vmatpush1.bf16.msra.mxu0 0
    %384 = vmatprep.subr.bf16.mxu0 0
    %385 = vmatpush1.bf16.msra.mxu0 0
    %386 = vmatprep.subr.bf16.mxu0 0
    %387 = vmatpush1.bf16.msra.mxu0 0
    %388 = vmatprep.subr.bf16.mxu0 0
    %389 = vmatpush1.bf16.msra.mxu0 0
    %390 = vmatprep.subr.bf16.mxu0 0
    %391 = vmatpush1.bf16.msra.mxu0 0
    %392 = vmatprep.subr.bf16.mxu0 0
    %393 = vmatpush1.bf16.msra.mxu0 0
    %394 = vmatprep.subr.bf16.mxu0 0
    %395 = vmatpush1.bf16.msra.mxu0 0
    %396 = vmatprep.subr.bf16.mxu0 0
    %397 = vmatpush1.bf16.msra.mxu0 0
    %398 = vmatprep.subr.bf16.mxu0 0
    %399 = vmatpush1.bf16.msra.mxu0 0
    %400 = vmatprep.subr.bf16.mxu0 0
    %401 = vmatpush1.bf16.msra.mxu0 0
    %402 = vmatprep.subr.bf16.mxu0 0
    %403 = vmatpush1.bf16.msra.mxu0 0
    %404 = vmatprep.subr.bf16.mxu0 0
    %405 = vmatpush1.bf16.msra.mxu0 0
    %406 = vmatprep.mubr.bf16.mxu0 0
    %407 = vmatmul.mubr.bf16.gmra.mrb[0].mxu0 %v372
    %v408 = vpop.f32.mrb[0].mxu0
    %v409 = vadd.f32 0.0, %v408
    %v410 = vpop.f32.mrb[0].mxu0
    %v411 = vpop.f32.mrb[0].mxu0
    %v412 = vpop.f32.mrb[0].mxu0
    %413 = vdwg.mxu0
    %v414 = vadd.f32 %v369, %v409
    %v415 = vxor.u32 %v414, 2147483648
    %v416 = vmul.f32 %v415, 1.442695
    %v417 = vpow.pop %v416
    %v418 = vadd.f32 %v417, 1.0
    %v419 = vrcp.pop %v418
    %v420 = vmul.f32 1.0, %v419
    %v421 = vtanh.pop %v414
    %423 = vrot.lane.b32.xlu0 %v368, 32
    %v424 = vpop.permute.xlu0 %423
    %v426 = vmul.f32 %v420, %v424
    %428 = vrot.lane.b32.xlu0 %v421, 32
    %v429 = vpop.permute.xlu0 %428
    %v431 = vmul.f32 %v420, %v429
    %433 = vrot.lane.b32.xlu0 %v431, 32
    %v434 = vpop.permute.xlu0 %433
    %v436 = vadd.f32 %v426, %v434
    %v437 = vtanh.pop %v436
    %439 = vrot.lane.b32.xlu0 %v437, 32
    %v440 = vpop.permute.xlu0 %439
    %v442 = vmul.f32 %v420, %v440
    %444 = vrot.lane.b32.xlu0 %v442, 64
    %v445 = vpop.permute.xlu0 %444
    %447 = vst.msk [vmem:[#allocation2] sm:$0xff] %vm196, %v445
    %449 = vrot.lane.b32.xlu0 %v436, 96
    %v450 = vpop.permute.xlu0 %449
    %452 = vst.msk [vmem:[#allocation3] sm:$0xff] %vm196, %v450
    %453 = vst.msk [vmem:[#allocation4 + $0x10] sm:$0xff] %vm196, %v445
    %v454 = vld [vmem:[#allocation2] sm:$0xff]
    %v455 = vld [vmem:[#allocation3] sm:$0xff]
    %v456 = vld [vmem:[#allocation5 + $0x18] sm:$0xff]
    %v457 = vpack.c.bf16 %v454, %v454
    %v459 = vsel %vm196, %v457, 0
    %461 = vmatprep.subr.bf16.mxu0 0
    %462 = vmatpush1.bf16.msra.mxu0 %v192
    %463 = vmatprep.subr.bf16.mxu0 0
    %464 = vmatpush1.bf16.msra.mxu0 %v193
    %465 = vmatprep.subr.bf16.mxu0 0
    %466 = vmatpush1.bf16.msra.mxu0 0
    %467 = vmatprep.subr.bf16.mxu0 0
    %468 = vmatpush1.bf16.msra.mxu0 0
    %469 = vmatprep.subr.bf16.mxu0 0
    %470 = vmatpush1.bf16.msra.mxu0 0
    %471 = vmatprep.subr.bf16.mxu0 0
    %472 = vmatpush1.bf16.msra.mxu0 0
    %473 = vmatprep.subr.bf16.mxu0 0
    %474 = vmatpush1.bf16.msra.mxu0 0
    %475 = vmatprep.subr.bf16.mxu0 0
    %476 = vmatpush1.bf16.msra.mxu0 0
    %477 = vmatprep.subr.bf16.mxu0 0
    %478 = vmatpush1.bf16.msra.mxu0 0
    %479 = vmatprep.subr.bf16.mxu0 0
    %480 = vmatpush1.bf16.msra.mxu0 0
    %481 = vmatprep.subr.bf16.mxu0 0
    %482 = vmatpush1.bf16.msra.mxu0 0
    %483 = vmatprep.subr.bf16.mxu0 0
    %484 = vmatpush1.bf16.msra.mxu0 0
    %485 = vmatprep.subr.bf16.mxu0 0
    %486 = vmatpush1.bf16.msra.mxu0 0
    %487 = vmatprep.subr.bf16.mxu0 0
    %488 = vmatpush1.bf16.msra.mxu0 0
    %489 = vmatprep.subr.bf16.mxu0 0
    %490 = vmatpush1.bf16.msra.mxu0 0
    %491 = vmatprep.subr.bf16.mxu0 0
    %492 = vmatpush1.bf16.msra.mxu0 0
    %493 = vmatprep.mubr.bf16.mxu0 0
    %494 = vmatmul.mubr.bf16.gmra.mrb[0].mxu0 %v459
    %v495 = vpop.f32.mrb[0].mxu0
    %v496 = vadd.f32 0.0, %v495
    %v497 = vpop.f32.mrb[0].mxu0
    %v498 = vpop.f32.mrb[0].mxu0
    %v499 = vpop.f32.mrb[0].mxu0
    %500 = vdwg.mxu0
    %v501 = vadd.f32 %v456, %v496
    %v502 = vxor.u32 %v501, 2147483648
    %v503 = vmul.f32 %v502, 1.442695
    %v504 = vpow.pop %v503
    %v505 = vadd.f32 %v504, 1.0
    %v506 = vrcp.pop %v505
    %v507 = vmul.f32 1.0, %v506
    %v508 = vtanh.pop %v501
    %510 = vrot.lane.b32.xlu0 %v455, 32
    %v511 = vpop.permute.xlu0 %510
    %v513 = vmul.f32 %v507, %v511
    %515 = vrot.lane.b32.xlu0 %v508, 32
    %v516 = vpop.permute.xlu0 %515
    %v518 = vmul.f32 %v507, %v516
    %520 = vrot.lane.b32.xlu0 %v518, 32
    %v521 = vpop.permute.xlu0 %520
    %v523 = vadd.f32 %v513, %v521
    %v524 = vtanh.pop %v523
    %526 = vrot.lane.b32.xlu0 %v524, 32
    %v527 = vpop.permute.xlu0 %526
    %v529 = vmul.f32 %v507, %v527
    %531 = vrot.lane.b32.xlu0 %v529, 64
    %v532 = vpop.permute.xlu0 %531
    %534 = vst.msk [vmem:[#allocation2] sm:$0xff] %vm196, %v532
    %536 = vrot.lane.b32.xlu0 %v523, 96
    %v537 = vpop.permute.xlu0 %536
    %539 = vst.msk [vmem:[#allocation3] sm:$0xff] %vm196, %v537
    %540 = vst.msk [vmem:[#allocation4 + $0x18] sm:$0xff] %vm196, %v532
    %v541 = vld [vmem:[#allocation2] sm:$0xff]
    %v542 = vld [vmem:[#allocation3] sm:$0xff]
    %v543 = vld [vmem:[#allocation5 + $0x20] sm:$0xff]
    %v544 = vpack.c.bf16 %v541, %v541
    %v546 = vsel %vm196, %v544, 0
    %548 = vmatprep.subr.bf16.mxu0 0
    %549 = vmatpush1.bf16.msra.mxu0 %v192
    %550 = vmatprep.subr.bf16.mxu0 0
    %551 = vmatpush1.bf16.msra.mxu0 %v193
    %552 = vmatprep.subr.bf16.mxu0 0
    %553 = vmatpush1.bf16.msra.mxu0 0
    %554 = vmatprep.subr.bf16.mxu0 0
    %555 = vmatpush1.bf16.msra.mxu0 0
    %556 = vmatprep.subr.bf16.mxu0 0
    %557 = vmatpush1.bf16.msra.mxu0 0
    %558 = vmatprep.subr.bf16.mxu0 0
    %559 = vmatpush1.bf16.msra.mxu0 0
    %560 = vmatprep.subr.bf16.mxu0 0
    %561 = vmatpush1.bf16.msra.mxu0 0
    %562 = vmatprep.subr.bf16.mxu0 0
    %563 = vmatpush1.bf16.msra.mxu0 0
    %564 = vmatprep.subr.bf16.mxu0 0
    %565 = vmatpush1.bf16.msra.mxu0 0
    %566 = vmatprep.subr.bf16.mxu0 0
    %567 = vmatpush1.bf16.msra.mxu0 0
    %568 = vmatprep.subr.bf16.mxu0 0
    %569 = vmatpush1.bf16.msra.mxu0 0
    %570 = vmatprep.subr.bf16.mxu0 0
    %571 = vmatpush1.bf16.msra.mxu0 0
    %572 = vmatprep.subr.bf16.mxu0 0
    %573 = vmatpush1.bf16.msra.mxu0 0
    %574 = vmatprep.subr.bf16.mxu0 0
    %575 = vmatpush1.bf16.msra.mxu0 0
    %576 = vmatprep.subr.bf16.mxu0 0
    %577 = vmatpush1.bf16.msra.mxu0 0
    %578 = vmatprep.subr.bf16.mxu0 0
    %579 = vmatpush1.bf16.msra.mxu0 0
    %580 = vmatprep.mubr.bf16.mxu0 0
    %581 = vmatmul.mubr.bf16.gmra.mrb[0].mxu0 %v546
    %v582 = vpop.f32.mrb[0].mxu0
    %v583 = vadd.f32 0.0, %v582
    %v584 = vpop.f32.mrb[0].mxu0
    %v585 = vpop.f32.mrb[0].mxu0
    %v586 = vpop.f32.mrb[0].mxu0
    %587 = vdwg.mxu0
    %v588 = vadd.f32 %v543, %v583
    %v589 = vxor.u32 %v588, 2147483648
    %v590 = vmul.f32 %v589, 1.442695
    %v591 = vpow.pop %v590
    %v592 = vadd.f32 %v591, 1.0
    %v593 = vrcp.pop %v592
    %v594 = vmul.f32 1.0, %v593
    %v595 = vtanh.pop %v588
    %597 = vrot.lane.b32.xlu0 %v542, 32
    %v598 = vpop.permute.xlu0 %597
    %v600 = vmul.f32 %v594, %v598
    %602 = vrot.lane.b32.xlu0 %v595, 32
    %v603 = vpop.permute.xlu0 %602
    %v605 = vmul.f32 %v594, %v603
    %607 = vrot.lane.b32.xlu0 %v605, 32
    %v608 = vpop.permute.xlu0 %607
    %v610 = vadd.f32 %v600, %v608
    %v611 = vtanh.pop %v610
    %613 = vrot.lane.b32.xlu0 %v611, 32
    %v614 = vpop.permute.xlu0 %613
    %v616 = vmul.f32 %v594, %v614
    %618 = vrot.lane.b32.xlu0 %v616, 64
    %v619 = vpop.permute.xlu0 %618
    %621 = vst.msk [vmem:[#allocation2] sm:$0xff] %vm196, %v619
    %623 = vrot.lane.b32.xlu0 %v610, 96
    %v624 = vpop.permute.xlu0 %623
    %626 = vst.msk [vmem:[#allocation3] sm:$0xff] %vm196, %v624
    %627 = vst.msk [vmem:[#allocation4 + $0x20] sm:$0xff] %vm196, %v619
    %v628 = vld [vmem:[#allocation2] sm:$0xff]
    %v629 = vld [vmem:[#allocation3] sm:$0xff]
    %v630 = vld [vmem:[#allocation5 + $0x28] sm:$0xff]
    %v631 = vpack.c.bf16 %v628, %v628
    %v633 = vsel %vm196, %v631, 0
    %635 = vmatprep.subr.bf16.mxu0 0
    %636 = vmatpush1.bf16.msra.mxu0 %v192
    %637 = vmatprep.subr.bf16.mxu0 0
    %638 = vmatpush1.bf16.msra.mxu0 %v193
    %639 = vmatprep.subr.bf16.mxu0 0
    %640 = vmatpush1.bf16.msra.mxu0 0
    %641 = vmatprep.subr.bf16.mxu0 0
    %642 = vmatpush1.bf16.msra.mxu0 0
    %643 = vmatprep.subr.bf16.mxu0 0
    %644 = vmatpush1.bf16.msra.mxu0 0
    %645 = vmatprep.subr.bf16.mxu0 0
    %646 = vmatpush1.bf16.msra.mxu0 0
    %647 = vmatprep.subr.bf16.mxu0 0
    %648 = vmatpush1.bf16.msra.mxu0 0
    %649 = vmatprep.subr.bf16.mxu0 0
    %650 = vmatpush1.bf16.msra.mxu0 0
    %651 = vmatprep.subr.bf16.mxu0 0
    %652 = vmatpush1.bf16.msra.mxu0 0
    %653 = vmatprep.subr.bf16.mxu0 0
    %654 = vmatpush1.bf16.msra.mxu0 0
    %655 = vmatprep.subr.bf16.mxu0 0
    %656 = vmatpush1.bf16.msra.mxu0 0
    %657 = vmatprep.subr.bf16.mxu0 0
    %658 = vmatpush1.bf16.msra.mxu0 0
    %659 = vmatprep.subr.bf16.mxu0 0
    %660 = vmatpush1.bf16.msra.mxu0 0
    %661 = vmatprep.subr.bf16.mxu0 0
    %662 = vmatpush1.bf16.msra.mxu0 0
    %663 = vmatprep.subr.bf16.mxu0 0
    %664 = vmatpush1.bf16.msra.mxu0 0
    %665 = vmatprep.subr.bf16.mxu0 0
    %666 = vmatpush1.bf16.msra.mxu0 0
    %667 = vmatprep.mubr.bf16.mxu0 0
    %668 = vmatmul.mubr.bf16.gmra.mrb[0].mxu0 %v633
    %v669 = vpop.f32.mrb[0].mxu0
    %v670 = vadd.f32 0.0, %v669
    %v671 = vpop.f32.mrb[0].mxu0
    %v672 = vpop.f32.mrb[0].mxu0
    %v673 = vpop.f32.mrb[0].mxu0
    %674 = vdwg.mxu0
    %v675 = vadd.f32 %v630, %v670
    %v676 = vxor.u32 %v675, 2147483648
    %v677 = vmul.f32 %v676, 1.442695
    %v678 = vpow.pop %v677
    %v679 = vadd.f32 %v678, 1.0
    %v680 = vrcp.pop %v679
    %v681 = vmul.f32 1.0, %v680
    %v682 = vtanh.pop %v675
    %684 = vrot.lane.b32.xlu0 %v629, 32
    %v685 = vpop.permute.xlu0 %684
    %v687 = vmul.f32 %v681, %v685
    %689 = vrot.lane.b32.xlu0 %v682, 32
    %v690 = vpop.permute.xlu0 %689
    %v692 = vmul.f32 %v681, %v690
    %694 = vrot.lane.b32.xlu0 %v692, 32
    %v695 = vpop.permute.xlu0 %694
    %v697 = vadd.f32 %v687, %v695
    %v698 = vtanh.pop %v697
    %700 = vrot.lane.b32.xlu0 %v698, 32
    %v701 = vpop.permute.xlu0 %700
    %v703 = vmul.f32 %v681, %v701
    %705 = vrot.lane.b32.xlu0 %v703, 64
    %v706 = vpop.permute.xlu0 %705
    %708 = vst.msk [vmem:[#allocation2] sm:$0xff] %vm196, %v706
    %710 = vrot.lane.b32.xlu0 %v697, 96
    %v711 = vpop.permute.xlu0 %710
    %713 = vst.msk [vmem:[#allocation3] sm:$0xff] %vm196, %v711
    %714 = vst.msk [vmem:[#allocation4 + $0x28] sm:$0xff] %vm196, %v706
    %v715 = vld [vmem:[#allocation2] sm:$0xff]
    %v716 = vld [vmem:[#allocation3] sm:$0xff]
    %v717 = vld [vmem:[#allocation5 + $0x30] sm:$0xff]
    %v718 = vpack.c.bf16 %v715, %v715
    %v720 = vsel %vm196, %v718, 0
    %722 = vmatprep.subr.bf16.mxu0 0
    %723 = vmatpush1.bf16.msra.mxu0 %v192
    %724 = vmatprep.subr.bf16.mxu0 0
    %725 = vmatpush1.bf16.msra.mxu0 %v193
    %726 = vmatprep.subr.bf16.mxu0 0
    %727 = vmatpush1.bf16.msra.mxu0 0
    %728 = vmatprep.subr.bf16.mxu0 0
    %729 = vmatpush1.bf16.msra.mxu0 0
    %730 = vmatprep.subr.bf16.mxu0 0
    %731 = vmatpush1.bf16.msra.mxu0 0
    %732 = vmatprep.subr.bf16.mxu0 0
    %733 = vmatpush1.bf16.msra.mxu0 0
    %734 = vmatprep.subr.bf16.mxu0 0
    %735 = vmatpush1.bf16.msra.mxu0 0
    %736 = vmatprep.subr.bf16.mxu0 0
    %737 = vmatpush1.bf16.msra.mxu0 0
    %738 = vmatprep.subr.bf16.mxu0 0
    %739 = vmatpush1.bf16.msra.mxu0 0
    %740 = vmatprep.subr.bf16.mxu0 0
    %741 = vmatpush1.bf16.msra.mxu0 0
    %742 = vmatprep.subr.bf16.mxu0 0
    %743 = vmatpush1.bf16.msra.mxu0 0
    %744 = vmatprep.subr.bf16.mxu0 0
    %745 = vmatpush1.bf16.msra.mxu0 0
    %746 = vmatprep.subr.bf16.mxu0 0
    %747 = vmatpush1.bf16.msra.mxu0 0
    %748 = vmatprep.subr.bf16.mxu0 0
    %749 = vmatpush1.bf16.msra.mxu0 0
    %750 = vmatprep.subr.bf16.mxu0 0
    %751 = vmatpush1.bf16.msra.mxu0 0
    %752 = vmatprep.subr.bf16.mxu0 0
    %753 = vmatpush1.bf16.msra.mxu0 0
    %754 = vmatprep.mubr.bf16.mxu0 0
    %755 = vmatmul.mubr.bf16.gmra.mrb[0].mxu0 %v720
    %v756 = vpop.f32.mrb[0].mxu0
    %v757 = vadd.f32 0.0, %v756
    %v758 = vpop.f32.mrb[0].mxu0
    %v759 = vpop.f32.mrb[0].mxu0
    %v760 = vpop.f32.mrb[0].mxu0
    %761 = vdwg.mxu0
    %v762 = vadd.f32 %v717, %v757
    %v763 = vxor.u32 %v762, 2147483648
    %v764 = vmul.f32 %v763, 1.442695
    %v765 = vpow.pop %v764
    %v766 = vadd.f32 %v765, 1.0
    %v767 = vrcp.pop %v766
    %v768 = vmul.f32 1.0, %v767
    %v769 = vtanh.pop %v762
    %771 = vrot.lane.b32.xlu0 %v716, 32
    %v772 = vpop.permute.xlu0 %771
    %v774 = vmul.f32 %v768, %v772
    %776 = vrot.lane.b32.xlu0 %v769, 32
    %v777 = vpop.permute.xlu0 %776
    %v779 = vmul.f32 %v768, %v777
    %781 = vrot.lane.b32.xlu0 %v779, 32
    %v782 = vpop.permute.xlu0 %781
    %v784 = vadd.f32 %v774, %v782
    %v785 = vtanh.pop %v784
    %787 = vrot.lane.b32.xlu0 %v785, 32
    %v788 = vpop.permute.xlu0 %787
    %v790 = vmul.f32 %v768, %v788
    %792 = vrot.lane.b32.xlu0 %v790, 64
    %v793 = vpop.permute.xlu0 %792
    %795 = vst.msk [vmem:[#allocation2] sm:$0xff] %vm196, %v793
    %797 = vrot.lane.b32.xlu0 %v784, 96
    %v798 = vpop.permute.xlu0 %797
    %800 = vst.msk [vmem:[#allocation3] sm:$0xff] %vm196, %v798
    %801 = vst.msk [vmem:[#allocation4 + $0x30] sm:$0xff] %vm196, %v793
    %v802 = vld [vmem:[#allocation2] sm:$0xff]
    %v803 = vld [vmem:[#allocation3] sm:$0xff]
    %v804 = vld [vmem:[#allocation5 + $0x38] sm:$0xff]
    %v805 = vpack.c.bf16 %v802, %v802
    %v807 = vsel %vm196, %v805, 0
    %809 = vmatprep.subr.bf16.mxu0 0
    %810 = vmatpush1.bf16.msra.mxu0 %v192
    %811 = vmatprep.subr.bf16.mxu0 0
    %812 = vmatpush1.bf16.msra.mxu0 %v193
    %813 = vmatprep.subr.bf16.mxu0 0
    %814 = vmatpush1.bf16.msra.mxu0 0
    %815 = vmatprep.subr.bf16.mxu0 0
    %816 = vmatpush1.bf16.msra.mxu0 0
    %817 = vmatprep.subr.bf16.mxu0 0
    %818 = vmatpush1.bf16.msra.mxu0 0
    %819 = vmatprep.subr.bf16.mxu0 0
    %820 = vmatpush1.bf16.msra.mxu0 0
    %821 = vmatprep.subr.bf16.mxu0 0
    %822 = vmatpush1.bf16.msra.mxu0 0
    %823 = vmatprep.subr.bf16.mxu0 0
    %824 = vmatpush1.bf16.msra.mxu0 0
    %825 = vmatprep.subr.bf16.mxu0 0
    %826 = vmatpush1.bf16.msra.mxu0 0
    %827 = vmatprep.subr.bf16.mxu0 0
    %828 = vmatpush1.bf16.msra.mxu0 0
    %829 = vmatprep.subr.bf16.mxu0 0
    %830 = vmatpush1.bf16.msra.mxu0 0
    %831 = vmatprep.subr.bf16.mxu0 0
    %832 = vmatpush1.bf16.msra.mxu0 0
    %833 = vmatprep.subr.bf16.mxu0 0
    %834 = vmatpush1.bf16.msra.mxu0 0
    %835 = vmatprep.subr.bf16.mxu0 0
    %836 = vmatpush1.bf16.msra.mxu0 0
    %837 = vmatprep.subr.bf16.mxu0 0
    %838 = vmatpush1.bf16.msra.mxu0 0
    %839 = vmatprep.subr.bf16.mxu0 0
    %840 = vmatpush1.bf16.msra.mxu0 0
    %841 = vmatprep.mubr.bf16.mxu0 0
    %842 = vmatmul.mubr.bf16.gmra.mrb[0].mxu0 %v807
    %v843 = vpop.f32.mrb[0].mxu0
    %v844 = vadd.f32 0.0, %v843
    %v845 = vpop.f32.mrb[0].mxu0
    %v846 = vpop.f32.mrb[0].mxu0
    %v847 = vpop.f32.mrb[0].mxu0
    %848 = vdwg.mxu0
    %v849 = vadd.f32 %v804, %v844
    %v850 = vxor.u32 %v849, 2147483648
    %v851 = vmul.f32 %v850, 1.442695
    %v852 = vpow.pop %v851
    %v853 = vadd.f32 %v852, 1.0
    %v854 = vrcp.pop %v853
    %v855 = vmul.f32 1.0, %v854
    %v856 = vtanh.pop %v849
    %858 = vrot.lane.b32.xlu0 %v803, 32
    %v859 = vpop.permute.xlu0 %858
    %v861 = vmul.f32 %v855, %v859
    %863 = vrot.lane.b32.xlu0 %v856, 32
    %v864 = vpop.permute.xlu0 %863
    %v866 = vmul.f32 %v855, %v864
    %868 = vrot.lane.b32.xlu0 %v866, 32
    %v869 = vpop.permute.xlu0 %868
    %v871 = vadd.f32 %v861, %v869
    %v872 = vtanh.pop %v871
    %874 = vrot.lane.b32.xlu0 %v872, 32
    %v875 = vpop.permute.xlu0 %874
    %v877 = vmul.f32 %v855, %v875
    %879 = vrot.lane.b32.xlu0 %v877, 64
    %v880 = vpop.permute.xlu0 %879
    %882 = vst.msk [vmem:[#allocation2] sm:$0xff] %vm196, %v880
    %884 = vrot.lane.b32.xlu0 %v871, 96
    %v885 = vpop.permute.xlu0 %884
    %887 = vst.msk [vmem:[#allocation3] sm:$0xff] %vm196, %v885
    %888 = vst.msk [vmem:[#allocation4 + $0x38] sm:$0xff] %vm196, %v880
    %v889 = vld [vmem:[#allocation4] sm:$0xff]
    %v890 = vld [vmem:[#allocation4 + $0x8] sm:$0xff]
    %v891 = vld [vmem:[#allocation4 + $0x10] sm:$0xff]
    %v892 = vld [vmem:[#allocation4 + $0x18] sm:$0xff]
    %v893 = vld [vmem:[#allocation4 + $0x20] sm:$0xff]
    %v894 = vld [vmem:[#allocation4 + $0x28] sm:$0xff]
    %v895 = vld [vmem:[#allocation4 + $0x30] sm:$0xff]
    %v896 = vld [vmem:[#allocation4 + $0x38] sm:$0xff]
    %v897 = vpack.c.bf16 %v890, %v889
    %v898 = vpack.c.bf16 %v892, %v891
    %v899 = vpack.c.bf16 %v894, %v893
    %v900 = vpack.c.bf16 %v896, %v895
    %v901 = vld [vmem:[%s2] sm:$0xf]
    %v902 = vld [vmem:[%s2 + $0x4] sm:$0xf]
    %v903 = vld [vmem:[%s2 + $0x8] sm:$0xf]
    %v904 = vld [vmem:[%s2 + $0xc] sm:$0xf]
    %s905 = scalar_lea.vmem [#allocation6], 1
    %v906 = vld [vmem:[%s905] sm:$0x1]
    %v908 = vlaneseq
    %v909 = vshrl.u32 %v908, 7
    %v910 = vsub.s32 0, %v909
    %v911 = vrot.slane %v906, %v910
    %v917 = vunpack.c.l.b16 %v901
    %v918 = vunpack.c.l.b16 %v902
    %v919 = vunpack.c.l.b16 %v903
    %v920 = vunpack.c.l.b16 %v904
    %v921 = vpack.c.b16 %v918, %v917
    %v922 = vpack.c.b16 %v920, %v919
    %v926 = vsel %vm196, %v897, 0
    %v929 = vsel %vm196, %v898, 0
    %v932 = vsel %vm196, %v899, 0
    %v935 = vsel %vm196, %v900, 0
    %937 = vmatprep.subr.bf16.mxu0 0
    %938 = vmatpush1.bf16.msra.mxu0 %v921
    %939 = vmatprep.subr.bf16.mxu0 0
    %940 = vmatpush1.bf16.msra.mxu0 %v922
    %941 = vmatprep.subr.bf16.mxu0 0
    %942 = vmatpush1.bf16.msra.mxu0 0
    %943 = vmatprep.subr.bf16.mxu0 0
    %944 = vmatpush1.bf16.msra.mxu0 0
    %945 = vmatprep.subr.bf16.mxu0 0
    %946 = vmatpush1.bf16.msra.mxu0 0
    %947 = vmatprep.subr.bf16.mxu0 0
    %948 = vmatpush1.bf16.msra.mxu0 0
    %949 = vmatprep.subr.bf16.mxu0 0
    %950 = vmatpush1.bf16.msra.mxu0 0
    %951 = vmatprep.subr.bf16.mxu0 0
    %952 = vmatpush1.bf16.msra.mxu0 0
    %953 = vmatprep.subr.bf16.mxu0 0
    %954 = vmatpush1.bf16.msra.mxu0 0
    %955 = vmatprep.subr.bf16.mxu0 0
    %956 = vmatpush1.bf16.msra.mxu0 0
    %957 = vmatprep.subr.bf16.mxu0 0
    %958 = vmatpush1.bf16.msra.mxu0 0
    %959 = vmatprep.subr.bf16.mxu0 0
    %960 = vmatpush1.bf16.msra.mxu0 0
    %961 = vmatprep.subr.bf16.mxu0 0
    %962 = vmatpush1.bf16.msra.mxu0 0
    %963 = vmatprep.subr.bf16.mxu0 0
    %964 = vmatpush1.bf16.msra.mxu0 0
    %965 = vmatprep.subr.bf16.mxu0 0
    %966 = vmatpush1.bf16.msra.mxu0 0
    %967 = vmatprep.subr.bf16.mxu0 0
    %968 = vmatpush1.bf16.msra.mxu0 0
    %969 = vmatprep.mubr.bf16.mxu0 0
    %970 = vmatmul.mubr.bf16.gmra.mrb[0].mxu0 %v926
    %v971 = vpop.f32.mrb[0].mxu0
    %v972 = vadd.f32 %v911, %v971
    %v973 = vpop.f32.mrb[0].mxu0
    %v974 = vpop.f32.mrb[0].mxu0
    %v975 = vadd.f32 %v911, %v974
    %v976 = vpop.f32.mrb[0].mxu0
    %977 = vmatprep.mubr.bf16.mxu0 0
    %978 = vmatmul.mubr.bf16.gmra.mrb[0].mxu0 %v929
    %v979 = vpop.f32.mrb[0].mxu0
    %v980 = vadd.f32 %v911, %v979
    %v981 = vpop.f32.mrb[0].mxu0
    %v982 = vpop.f32.mrb[0].mxu0
    %v983 = vadd.f32 %v911, %v982
    %v984 = vpop.f32.mrb[0].mxu0
    %985 = vmatprep.mubr.bf16.mxu0 0
    %986 = vmatmul.mubr.bf16.gmra.mrb[0].mxu0 %v932
    %v987 = vpop.f32.mrb[0].mxu0
    %v988 = vadd.f32 %v911, %v987
    %v989 = vpop.f32.mrb[0].mxu0
    %v990 = vpop.f32.mrb[0].mxu0
    %v991 = vadd.f32 %v911, %v990
    %v992 = vpop.f32.mrb[0].mxu0
    %993 = vmatprep.mubr.bf16.mxu0 0
    %994 = vmatmul.mubr.bf16.gmra.mrb[0].mxu0 %v935
    %v995 = vpop.f32.mrb[0].mxu0
    %v996 = vadd.f32 %v911, %v995
    %v997 = vpop.f32.mrb[0].mxu0
    %v998 = vpop.f32.mrb[0].mxu0
    %v999 = vadd.f32 %v911, %v998
    %v1000 = vpop.f32.mrb[0].mxu0
    %1001 = vdwg.mxu0
    %1002 = vst [vmem:[#allocation5] sm:$0xff] %v972
    %1003 = vst [vmem:[#allocation5 + $0x8] sm:$0xff] %v975
    %1004 = vst [vmem:[#allocation5 + $0x10] sm:$0xff] %v980
    %1005 = vst [vmem:[#allocation5 + $0x18] sm:$0xff] %v983
    %1006 = vst [vmem:[#allocation5 + $0x20] sm:$0xff] %v988
    %1007 = vst [vmem:[#allocation5 + $0x28] sm:$0xff] %v991
    %1008 = vst [vmem:[#allocation5 + $0x30] sm:$0xff] %v996
    %1009 = vst [vmem:[#allocation5 + $0x38] sm:$0xff] %v999
    %s1010 = scalar_lea.vmem %s3, 16
    %v1011 = vld [vmem:[%s1010] sm:$0xf]
    %v1012 = vld [vmem:[%s1010 + $0x4] sm:$0xf]
    %v1013 = vld [vmem:[%s1010 + $0x8] sm:$0xf]
    %v1014 = vld [vmem:[%s1010 + $0xc] sm:$0xf]
    %s1015 = scalar_lea.vmem [#allocation2], 8
    %v1016 = vld [vmem:[%s1015] sm:$0xff]
    %s1017 = scalar_lea.vmem [#allocation3], 8
    %v1018 = vld [vmem:[%s1017] sm:$0xff]
    %v1019 = vld [vmem:[#allocation5] sm:$0xff]
    %v1020 = vpack.c.bf16 %v1016, %v1016
    %v1025 = vunpack.c.l.b16 %v1011
    %v1026 = vunpack.c.l.b16 %v1012
    %v1027 = vunpack.c.l.b16 %v1013
    %v1028 = vunpack.c.l.b16 %v1014
    %v1029 = vpack.c.b16 %v1026, %v1025
    %v1030 = vpack.c.b16 %v1028, %v1027
    %v1034 = vsel %vm196, %v1020, 0
    %1036 = vmatprep.subr.bf16.mxu0 0
    %1037 = vmatpush1.bf16.msra.mxu0 %v1029
    %1038 = vmatprep.subr.bf16.mxu0 0
    %1039 = vmatpush1.bf16.msra.mxu0 %v1030
    %1040 = vmatprep.subr.bf16.mxu0 0
    %1041 = vmatpush1.bf16.msra.mxu0 0
    %1042 = vmatprep.subr.bf16.mxu0 0
    %1043 = vmatpush1.bf16.msra.mxu0 0
    %1044 = vmatprep.subr.bf16.mxu0 0
    %1045 = vmatpush1.bf16.msra.mxu0 0
    %1046 = vmatprep.subr.bf16.mxu0 0
    %1047 = vmatpush1.bf16.msra.mxu0 0
    %1048 = vmatprep.subr.bf16.mxu0 0
    %1049 = vmatpush1.bf16.msra.mxu0 0
    %1050 = vmatprep.subr.bf16.mxu0 0
    %1051 = vmatpush1.bf16.msra.mxu0 0
    %1052 = vmatprep.subr.bf16.mxu0 0
    %1053 = vmatpush1.bf16.msra.mxu0 0
    %1054 = vmatprep.subr.bf16.mxu0 0
    %1055 = vmatpush1.bf16.msra.mxu0 0
    %1056 = vmatprep.subr.bf16.mxu0 0
    %1057 = vmatpush1.bf16.msra.mxu0 0
    %1058 = vmatprep.subr.bf16.mxu0 0
    %1059 = vmatpush1.bf16.msra.mxu0 0
    %1060 = vmatprep.subr.bf16.mxu0 0
    %1061 = vmatpush1.bf16.msra.mxu0 0
    %1062 = vmatprep.subr.bf16.mxu0 0
    %1063 = vmatpush1.bf16.msra.mxu0 0
    %1064 = vmatprep.subr.bf16.mxu0 0
    %1065 = vmatpush1.bf16.msra.mxu0 0
    %1066 = vmatprep.subr.bf16.mxu0 0
    %1067 = vmatpush1.bf16.msra.mxu0 0
    %1068 = vmatprep.mubr.bf16.mxu0 0
    %1069 = vmatmul.mubr.bf16.gmra.mrb[0].mxu0 %v1034
    %v1070 = vpop.f32.mrb[0].mxu0
    %v1071 = vadd.f32 0.0, %v1070
    %v1072 = vpop.f32.mrb[0].mxu0
    %v1073 = vpop.f32.mrb[0].mxu0
    %v1074 = vpop.f32.mrb[0].mxu0
    %1075 = vdwg.mxu0
    %v1076 = vadd.f32 %v1019, %v1071
    %v1077 = vxor.u32 %v1076, 2147483648
    %v1078 = vmul.f32 %v1077, 1.442695
    %v1079 = vpow.pop %v1078
    %v1080 = vadd.f32 %v1079, 1.0
    %v1081 = vrcp.pop %v1080
    %v1082 = vmul.f32 1.0, %v1081
    %v1083 = vtanh.pop %v1076
    %1085 = vrot.lane.b32.xlu0 %v1018, 32
    %v1086 = vpop.permute.xlu0 %1085
    %v1088 = vmul.f32 %v1082, %v1086
    %1090 = vrot.lane.b32.xlu0 %v1083, 32
    %v1091 = vpop.permute.xlu0 %1090
    %v1093 = vmul.f32 %v1082, %v1091
    %1095 = vrot.lane.b32.xlu0 %v1093, 32
    %v1096 = vpop.permute.xlu0 %1095
    %v1098 = vadd.f32 %v1088, %v1096
    %v1099 = vtanh.pop %v1098
    %1101 = vrot.lane.b32.xlu0 %v1099, 32
    %v1102 = vpop.permute.xlu0 %1101
    %v1104 = vmul.f32 %v1082, %v1102
    %1106 = vrot.lane.b32.xlu0 %v1104, 64
    %v1107 = vpop.permute.xlu0 %1106
    %1109 = vst.msk [vmem:[%s1015] sm:$0xff] %vm196, %v1107
    %1111 = vrot.lane.b32.xlu0 %v1098, 96
    %v1112 = vpop.permute.xlu0 %1111
    %1114 = vst.msk [vmem:[%s1017] sm:$0xff] %vm196, %v1112
    %1115 = vst.msk [vmem:[#allocation4] sm:$0xff] %vm196, %v1107
    %v1116 = vld [vmem:[%s1015] sm:$0xff]
    %v1117 = vld [vmem:[%s1017] sm:$0xff]
    %v1118 = vld [vmem:[#allocation5 + $0x8] sm:$0xff]
    %v1119 = vpack.c.bf16 %v1116, %v1116
    %v1121 = vsel %vm196, %v1119, 0
    %1123 = vmatprep.subr.bf16.mxu0 0
    %1124 = vmatpush1.bf16.msra.mxu0 %v1029
    %1125 = vmatprep.subr.bf16.mxu0 0
    %1126 = vmatpush1.bf16.msra.mxu0 %v1030
    %1127 = vmatprep.subr.bf16.mxu0 0
    %1128 = vmatpush1.bf16.msra.mxu0 0
    %1129 = vmatprep.subr.bf16.mxu0 0
    %1130 = vmatpush1.bf16.msra.mxu0 0
    %1131 = vmatprep.subr.bf16.mxu0 0
    %1132 = vmatpush1.bf16.msra.mxu0 0
    %1133 = vmatprep.subr.bf16.mxu0 0
    %1134 = vmatpush1.bf16.msra.mxu0 0
    %1135 = vmatprep.subr.bf16.mxu0 0
    %1136 = vmatpush1.bf16.msra.mxu0 0
    %1137 = vmatprep.subr.bf16.mxu0 0
    %1138 = vmatpush1.bf16.msra.mxu0 0
    %1139 = vmatprep.subr.bf16.mxu0 0
    %1140 = vmatpush1.bf16.msra.mxu0 0
    %1141 = vmatprep.subr.bf16.mxu0 0
    %1142 = vmatpush1.bf16.msra.mxu0 0
    %1143 = vmatprep.subr.bf16.mxu0 0
    %1144 = vmatpush1.bf16.msra.mxu0 0
    %1145 = vmatprep.subr.bf16.mxu0 0
    %1146 = vmatpush1.bf16.msra.mxu0 0
    %1147 = vmatprep.subr.bf16.mxu0 0
    %1148 = vmatpush1.bf16.msra.mxu0 0
    %1149 = vmatprep.subr.bf16.mxu0 0
    %1150 = vmatpush1.bf16.msra.mxu0 0
    %1151 = vmatprep.subr.bf16.mxu0 0
    %1152 = vmatpush1.bf16.msra.mxu0 0
    %1153 = vmatprep.subr.bf16.mxu0 0
    %1154 = vmatpush1.bf16.msra.mxu0 0
    %1155 = vmatprep.mubr.bf16.mxu0 0
    %1156 = vmatmul.mubr.bf16.gmra.mrb[0].mxu0 %v1121
    %v1157 = vpop.f32.mrb[0].mxu0
    %v1158 = vadd.f32 0.0, %v1157
    %v1159 = vpop.f32.mrb[0].mxu0
    %v1160 = vpop.f32.mrb[0].mxu0
    %v1161 = vpop.f32.mrb[0].mxu0
    %1162 = vdwg.mxu0
    %v1163 = vadd.f32 %v1118, %v1158
    %v1164 = vxor.u32 %v1163, 2147483648
    %v1165 = vmul.f32 %v1164, 1.442695
    %v1166 = vpow.pop %v1165
    %v1167 = vadd.f32 %v1166, 1.0
    %v1168 = vrcp.pop %v1167
    %v1169 = vmul.f32 1.0, %v1168
    %v1170 = vtanh.pop %v1163
    %1172 = vrot.lane.b32.xlu0 %v1117, 32
    %v1173 = vpop.permute.xlu0 %1172
    %v1175 = vmul.f32 %v1169, %v1173
    %1177 = vrot.lane.b32.xlu0 %v1170, 32
    %v1178 = vpop.permute.xlu0 %1177
    %v1180 = vmul.f32 %v1169, %v1178
    %1182 = vrot.lane.b32.xlu0 %v1180, 32
    %v1183 = vpop.permute.xlu0 %1182
    %v1185 = vadd.f32 %v1175, %v1183
    %v1186 = vtanh.pop %v1185
    %1188 = vrot.lane.b32.xlu0 %v1186, 32
    %v1189 = vpop.permute.xlu0 %1188
    %v1191 = vmul.f32 %v1169, %v1189
    %1193 = vrot.lane.b32.xlu0 %v1191, 64
    %v1194 = vpop.permute.xlu0 %1193
    %1196 = vst.msk [vmem:[%s1015] sm:$0xff] %vm196, %v1194
    %1198 = vrot.lane.b32.xlu0 %v1185, 96
    %v1199 = vpop.permute.xlu0 %1198
    %1201 = vst.msk [vmem:[%s1017] sm:$0xff] %vm196, %v1199
    %1202 = vst.msk [vmem:[#allocation4 + $0x8] sm:$0xff] %vm196, %v1194
    %v1203 = vld [vmem:[%s1015] sm:$0xff]
    %v1204 = vld [vmem:[%s1017] sm:$0xff]
    %v1205 = vld [vmem:[#allocation5 + $0x10] sm:$0xff]
    %v1206 = vpack.c.bf16 %v1203, %v1203
    %v1208 = vsel %vm196, %v1206, 0
    %1210 = vmatprep.subr.bf16.mxu0 0
    %1211 = vmatpush1.bf16.msra.mxu0 %v1029
    %1212 = vmatprep.subr.bf16.mxu0 0
    %1213 = vmatpush1.bf16.msra.mxu0 %v1030
    %1214 = vmatprep.subr.bf16.mxu0 0
    %1215 = vmatpush1.bf16.msra.mxu0 0
    %1216 = vmatprep.subr.bf16.mxu0 0
    %1217 = vmatpush1.bf16.msra.mxu0 0
    %1218 = vmatprep.subr.bf16.mxu0 0
    %1219 = vmatpush1.bf16.msra.mxu0 0
    %1220 = vmatprep.subr.bf16.mxu0 0
    %1221 = vmatpush1.bf16.msra.mxu0 0
    %1222 = vmatprep.subr.bf16.mxu0 0
    %1223 = vmatpush1.bf16.msra.mxu0 0
    %1224 = vmatprep.subr.bf16.mxu0 0
    %1225 = vmatpush1.bf16.msra.mxu0 0
    %1226 = vmatprep.subr.bf16.mxu0 0
    %1227 = vmatpush1.bf16.msra.mxu0 0
    %1228 = vmatprep.subr.bf16.mxu0 0
    %1229 = vmatpush1.bf16.msra.mxu0 0
    %1230 = vmatprep.subr.bf16.mxu0 0
    %1231 = vmatpush1.bf16.msra.mxu0 0
    %1232 = vmatprep.subr.bf16.mxu0 0
    %1233 = vmatpush1.bf16.msra.mxu0 0
    %1234 = vmatprep.subr.bf16.mxu0 0
    %1235 = vmatpush1.bf16.msra.mxu0 0
    %1236 = vmatprep.subr.bf16.mxu0 0
    %1237 = vmatpush1.bf16.msra.mxu0 0
    %1238 = vmatprep.subr.bf16.mxu0 0
    %1239 = vmatpush1.bf16.msra.mxu0 0
    %1240 = vmatprep.subr.bf16.mxu0 0
    %1241 = vmatpush1.bf16.msra.mxu0 0
    %1242 = vmatprep.mubr.bf16.mxu0 0
    %1243 = vmatmul.mubr.bf16.gmra.mrb[0].mxu0 %v1208
    %v1244 = vpop.f32.mrb[0].mxu0
    %v1245 = vadd.f32 0.0, %v1244
    %v1246 = vpop.f32.mrb[0].mxu0
    %v1247 = vpop.f32.mrb[0].mxu0
    %v1248 = vpop.f32.mrb[0].mxu0
    %1249 = vdwg.mxu0
    %v1250 = vadd.f32 %v1205, %v1245
    %v1251 = vxor.u32 %v1250, 2147483648
    %v1252 = vmul.f32 %v1251, 1.442695
    %v1253 = vpow.pop %v1252
    %v1254 = vadd.f32 %v1253, 1.0
    %v1255 = vrcp.pop %v1254
    %v1256 = vmul.f32 1.0, %v1255
    %v1257 = vtanh.pop %v1250
    %1259 = vrot.lane.b32.xlu0 %v1204, 32
    %v1260 = vpop.permute.xlu0 %1259
    %v1262 = vmul.f32 %v1256, %v1260
    %1264 = vrot.lane.b32.xlu0 %v1257, 32
    %v1265 = vpop.permute.xlu0 %1264
    %v1267 = vmul.f32 %v1256, %v1265
    %1269 = vrot.lane.b32.xlu0 %v1267, 32
    %v1270 = vpop.permute.xlu0 %1269
    %v1272 = vadd.f32 %v1262, %v1270
    %v1273 = vtanh.pop %v1272
    %1275 = vrot.lane.b32.xlu0 %v1273, 32
    %v1276 = vpop.permute.xlu0 %1275
    %v1278 = vmul.f32 %v1256, %v1276
    %1280 = vrot.lane.b32.xlu0 %v1278, 64
    %v1281 = vpop.permute.xlu0 %1280
    %1283 = vst.msk [vmem:[%s1015] sm:$0xff] %vm196, %v1281
    %1285 = vrot.lane.b32.xlu0 %v1272, 96
    %v1286 = vpop.permute.xlu0 %1285
    %1288 = vst.msk [vmem:[%s1017] sm:$0xff] %vm196, %v1286
    %1289 = vst.msk [vmem:[#allocation4 + $0x10] sm:$0xff] %vm196, %v1281
    %v1290 = vld [vmem:[%s1015] sm:$0xff]
    %v1291 = vld [vmem:[%s1017] sm:$0xff]
    %v1292 = vld [vmem:[#allocation5 + $0x18] sm:$0xff]
    %v1293 = vpack.c.bf16 %v1290, %v1290
    %v1295 = vsel %vm196, %v1293, 0
    %1297 = vmatprep.subr.bf16.mxu0 0
    %1298 = vmatpush1.bf16.msra.mxu0 %v1029
    %1299 = vmatprep.subr.bf16.mxu0 0
    %1300 = vmatpush1.bf16.msra.mxu0 %v1030
    %1301 = vmatprep.subr.bf16.mxu0 0
    %1302 = vmatpush1.bf16.msra.mxu0 0
    %1303 = vmatprep.subr.bf16.mxu0 0
    %1304 = vmatpush1.bf16.msra.mxu0 0
    %1305 = vmatprep.subr.bf16.mxu0 0
    %1306 = vmatpush1.bf16.msra.mxu0 0
    %1307 = vmatprep.subr.bf16.mxu0 0
    %1308 = vmatpush1.bf16.msra.mxu0 0
    %1309 = vmatprep.subr.bf16.mxu0 0
    %1310 = vmatpush1.bf16.msra.mxu0 0
    %1311 = vmatprep.subr.bf16.mxu0 0
    %1312 = vmatpush1.bf16.msra.mxu0 0
    %1313 = vmatprep.subr.bf16.mxu0 0
    %1314 = vmatpush1.bf16.msra.mxu0 0
    %1315 = vmatprep.subr.bf16.mxu0 0
    %1316 = vmatpush1.bf16.msra.mxu0 0
    %1317 = vmatprep.subr.bf16.mxu0 0
    %1318 = vmatpush1.bf16.msra.mxu0 0
    %1319 = vmatprep.subr.bf16.mxu0 0
    %1320 = vmatpush1.bf16.msra.mxu0 0
    %1321 = vmatprep.subr.bf16.mxu0 0
    %1322 = vmatpush1.bf16.msra.mxu0 0
    %1323 = vmatprep.subr.bf16.mxu0 0
    %1324 = vmatpush1.bf16.msra.mxu0 0
    %1325 = vmatprep.subr.bf16.mxu0 0
    %1326 = vmatpush1.bf16.msra.mxu0 0
    %1327 = vmatprep.subr.bf16.mxu0 0
    %1328 = vmatpush1.bf16.msra.mxu0 0
    %1329 = vmatprep.mubr.bf16.mxu0 0
    %1330 = vmatmul.mubr.bf16.gmra.mrb[0].mxu0 %v1295
    %v1331 = vpop.f32.mrb[0].mxu0
    %v1332 = vadd.f32 0.0, %v1331
    %v1333 = vpop.f32.mrb[0].mxu0
    %v1334 = vpop.f32.mrb[0].mxu0
    %v1335 = vpop.f32.mrb[0].mxu0
    %1336 = vdwg.mxu0
    %v1337 = vadd.f32 %v1292, %v1332
    %v1338 = vxor.u32 %v1337, 2147483648
    %v1339 = vmul.f32 %v1338, 1.442695
    %v1340 = vpow.pop %v1339
    %v1341 = vadd.f32 %v1340, 1.0
    %v1342 = vrcp.pop %v1341
    %v1343 = vmul.f32 1.0, %v1342
    %v1344 = vtanh.pop %v1337
    %1346 = vrot.lane.b32.xlu0 %v1291, 32
    %v1347 = vpop.permute.xlu0 %1346
    %v1349 = vmul.f32 %v1343, %v1347
    %1351 = vrot.lane.b32.xlu0 %v1344, 32
    %v1352 = vpop.permute.xlu0 %1351
    %v1354 = vmul.f32 %v1343, %v1352
    %1356 = vrot.lane.b32.xlu0 %v1354, 32
    %v1357 = vpop.permute.xlu0 %1356
    %v1359 = vadd.f32 %v1349, %v1357
    %v1360 = vtanh.pop %v1359
    %1362 = vrot.lane.b32.xlu0 %v1360, 32
    %v1363 = vpop.permute.xlu0 %1362
    %v1365 = vmul.f32 %v1343, %v1363
    %1367 = vrot.lane.b32.xlu0 %v1365, 64
    %v1368 = vpop.permute.xlu0 %1367
    %1370 = vst.msk [vmem:[%s1015] sm:$0xff] %vm196, %v1368
    %1372 = vrot.lane.b32.xlu0 %v1359, 96
    %v1373 = vpop.permute.xlu0 %1372
    %1375 = vst.msk [vmem:[%s1017] sm:$0xff] %vm196, %v1373
    %1376 = vst.msk [vmem:[#allocation4 + $0x18] sm:$0xff] %vm196, %v1368
    %v1377 = vld [vmem:[%s1015] sm:$0xff]
    %v1378 = vld [vmem:[%s1017] sm:$0xff]
    %v1379 = vld [vmem:[#allocation5 + $0x20] sm:$0xff]
    %v1380 = vpack.c.bf16 %v1377, %v1377
    %v1382 = vsel %vm196, %v1380, 0
    %1384 = vmatprep.subr.bf16.mxu0 0
    %1385 = vmatpush1.bf16.msra.mxu0 %v1029
    %1386 = vmatprep.subr.bf16.mxu0 0
    %1387 = vmatpush1.bf16.msra.mxu0 %v1030
    %1388 = vmatprep.subr.bf16.mxu0 0
    %1389 = vmatpush1.bf16.msra.mxu0 0
    %1390 = vmatprep.subr.bf16.mxu0 0
    %1391 = vmatpush1.bf16.msra.mxu0 0
    %1392 = vmatprep.subr.bf16.mxu0 0
    %1393 = vmatpush1.bf16.msra.mxu0 0
    %1394 = vmatprep.subr.bf16.mxu0 0
    %1395 = vmatpush1.bf16.msra.mxu0 0
    %1396 = vmatprep.subr.bf16.mxu0 0
    %1397 = vmatpush1.bf16.msra.mxu0 0
    %1398 = vmatprep.subr.bf16.mxu0 0
    %1399 = vmatpush1.bf16.msra.mxu0 0
    %1400 = vmatprep.subr.bf16.mxu0 0
    %1401 = vmatpush1.bf16.msra.mxu0 0
    %1402 = vmatprep.subr.bf16.mxu0 0
    %1403 = vmatpush1.bf16.msra.mxu0 0
    %1404 = vmatprep.subr.bf16.mxu0 0
    %1405 = vmatpush1.bf16.msra.mxu0 0
    %1406 = vmatprep.subr.bf16.mxu0 0
    %1407 = vmatpush1.bf16.msra.mxu0 0
    %1408 = vmatprep.subr.bf16.mxu0 0
    %1409 = vmatpush1.bf16.msra.mxu0 0
    %1410 = vmatprep.subr.bf16.mxu0 0
    %1411 = vmatpush1.bf16.msra.mxu0 0
    %1412 = vmatprep.subr.bf16.mxu0 0
    %1413 = vmatpush1.bf16.msra.mxu0 0
    %1414 = vmatprep.subr.bf16.mxu0 0
    %1415 = vmatpush1.bf16.msra.mxu0 0
    %1416 = vmatprep.mubr.bf16.mxu0 0
    %1417 = vmatmul.mubr.bf16.gmra.mrb[0].mxu0 %v1382
    %v1418 = vpop.f32.mrb[0].mxu0
    %v1419 = vadd.f32 0.0, %v1418
    %v1420 = vpop.f32.mrb[0].mxu0
    %v1421 = vpop.f32.mrb[0].mxu0
    %v1422 = vpop.f32.mrb[0].mxu0
    %1423 = vdwg.mxu0
    %v1424 = vadd.f32 %v1379, %v1419
    %v1425 = vxor.u32 %v1424, 2147483648
    %v1426 = vmul.f32 %v1425, 1.442695
    %v1427 = vpow.pop %v1426
    %v1428 = vadd.f32 %v1427, 1.0
    %v1429 = vrcp.pop %v1428
    %v1430 = vmul.f32 1.0, %v1429
    %v1431 = vtanh.pop %v1424
    %1433 = vrot.lane.b32.xlu0 %v1378, 32
    %v1434 = vpop.permute.xlu0 %1433
    %v1436 = vmul.f32 %v1430, %v1434
    %1438 = vrot.lane.b32.xlu0 %v1431, 32
    %v1439 = vpop.permute.xlu0 %1438
    %v1441 = vmul.f32 %v1430, %v1439
    %1443 = vrot.lane.b32.xlu0 %v1441, 32
    %v1444 = vpop.permute.xlu0 %1443
    %v1446 = vadd.f32 %v1436, %v1444
    %v1447 = vtanh.pop %v1446
    %1449 = vrot.lane.b32.xlu0 %v1447, 32
    %v1450 = vpop.permute.xlu0 %1449
    %v1452 = vmul.f32 %v1430, %v1450
    %1454 = vrot.lane.b32.xlu0 %v1452, 64
    %v1455 = vpop.permute.xlu0 %1454
    %1457 = vst.msk [vmem:[%s1015] sm:$0xff] %vm196, %v1455
    %1459 = vrot.lane.b32.xlu0 %v1446, 96
    %v1460 = vpop.permute.xlu0 %1459
    %1462 = vst.msk [vmem:[%s1017] sm:$0xff] %vm196, %v1460
    %1463 = vst.msk [vmem:[#allocation4 + $0x20] sm:$0xff] %vm196, %v1455
    %v1464 = vld [vmem:[%s1015] sm:$0xff]
    %v1465 = vld [vmem:[%s1017] sm:$0xff]
    %v1466 = vld [vmem:[#allocation5 + $0x28] sm:$0xff]
    %v1467 = vpack.c.bf16 %v1464, %v1464
    %v1469 = vsel %vm196, %v1467, 0
    %1471 = vmatprep.subr.bf16.mxu0 0
    %1472 = vmatpush1.bf16.msra.mxu0 %v1029
    %1473 = vmatprep.subr.bf16.mxu0 0
    %1474 = vmatpush1.bf16.msra.mxu0 %v1030
    %1475 = vmatprep.subr.bf16.mxu0 0
    %1476 = vmatpush1.bf16.msra.mxu0 0
    %1477 = vmatprep.subr.bf16.mxu0 0
    %1478 = vmatpush1.bf16.msra.mxu0 0
    %1479 = vmatprep.subr.bf16.mxu0 0
    %1480 = vmatpush1.bf16.msra.mxu0 0
    %1481 = vmatprep.subr.bf16.mxu0 0
    %1482 = vmatpush1.bf16.msra.mxu0 0
    %1483 = vmatprep.subr.bf16.mxu0 0
    %1484 = vmatpush1.bf16.msra.mxu0 0
    %1485 = vmatprep.subr.bf16.mxu0 0
    %1486 = vmatpush1.bf16.msra.mxu0 0
    %1487 = vmatprep.subr.bf16.mxu0 0
    %1488 = vmatpush1.bf16.msra.mxu0 0
    %1489 = vmatprep.subr.bf16.mxu0 0
    %1490 = vmatpush1.bf16.msra.mxu0 0
    %1491 = vmatprep.subr.bf16.mxu0 0
    %1492 = vmatpush1.bf16.msra.mxu0 0
    %1493 = vmatprep.subr.bf16.mxu0 0
    %1494 = vmatpush1.bf16.msra.mxu0 0
    %1495 = vmatprep.subr.bf16.mxu0 0
    %1496 = vmatpush1.bf16.msra.mxu0 0
    %1497 = vmatprep.subr.bf16.mxu0 0
    %1498 = vmatpush1.bf16.msra.mxu0 0
    %1499 = vmatprep.subr.bf16.mxu0 0
    %1500 = vmatpush1.bf16.msra.mxu0 0
    %1501 = vmatprep.subr.bf16.mxu0 0
    %1502 = vmatpush1.bf16.msra.mxu0 0
    %1503 = vmatprep.mubr.bf16.mxu0 0
    %1504 = vmatmul.mubr.bf16.gmra.mrb[0].mxu0 %v1469
    %v1505 = vpop.f32.mrb[0].mxu0
    %v1506 = vadd.f32 0.0, %v1505
    %v1507 = vpop.f32.mrb[0].mxu0
    %v1508 = vpop.f32.mrb[0].mxu0
    %v1509 = vpop.f32.mrb[0].mxu0
    %1510 = vdwg.mxu0
    %v1511 = vadd.f32 %v1466, %v1506
    %v1512 = vxor.u32 %v1511, 2147483648
    %v1513 = vmul.f32 %v1512, 1.442695
    %v1514 = vpow.pop %v1513
    %v1515 = vadd.f32 %v1514, 1.0
    %v1516 = vrcp.pop %v1515
    %v1517 = vmul.f32 1.0, %v1516
    %v1518 = vtanh.pop %v1511
    %1520 = vrot.lane.b32.xlu0 %v1465, 32
    %v1521 = vpop.permute.xlu0 %1520
    %v1523 = vmul.f32 %v1517, %v1521
    %1525 = vrot.lane.b32.xlu0 %v1518, 32
    %v1526 = vpop.permute.xlu0 %1525
    %v1528 = vmul.f32 %v1517, %v1526
    %1530 = vrot.lane.b32.xlu0 %v1528, 32
    %v1531 = vpop.permute.xlu0 %1530
    %v1533 = vadd.f32 %v1523, %v1531
    %v1534 = vtanh.pop %v1533
    %1536 = vrot.lane.b32.xlu0 %v1534, 32
    %v1537 = vpop.permute.xlu0 %1536
    %v1539 = vmul.f32 %v1517, %v1537
    %1541 = vrot.lane.b32.xlu0 %v1539, 64
    %v1542 = vpop.permute.xlu0 %1541
    %1544 = vst.msk [vmem:[%s1015] sm:$0xff] %vm196, %v1542
    %1546 = vrot.lane.b32.xlu0 %v1533, 96
    %v1547 = vpop.permute.xlu0 %1546
    %1549 = vst.msk [vmem:[%s1017] sm:$0xff] %vm196, %v1547
    %1550 = vst.msk [vmem:[#allocation4 + $0x28] sm:$0xff] %vm196, %v1542
    %v1551 = vld [vmem:[%s1015] sm:$0xff]
    %v1552 = vld [vmem:[%s1017] sm:$0xff]
    %v1553 = vld [vmem:[#allocation5 + $0x30] sm:$0xff]
    %v1554 = vpack.c.bf16 %v1551, %v1551
    %v1556 = vsel %vm196, %v1554, 0
    %1558 = vmatprep.subr.bf16.mxu0 0
    %1559 = vmatpush1.bf16.msra.mxu0 %v1029
    %1560 = vmatprep.subr.bf16.mxu0 0
    %1561 = vmatpush1.bf16.msra.mxu0 %v1030
    %1562 = vmatprep.subr.bf16.mxu0 0
    %1563 = vmatpush1.bf16.msra.mxu0 0
    %1564 = vmatprep.subr.bf16.mxu0 0
    %1565 = vmatpush1.bf16.msra.mxu0 0
    %1566 = vmatprep.subr.bf16.mxu0 0
    %1567 = vmatpush1.bf16.msra.mxu0 0
    %1568 = vmatprep.subr.bf16.mxu0 0
    %1569 = vmatpush1.bf16.msra.mxu0 0
    %1570 = vmatprep.subr.bf16.mxu0 0
    %1571 = vmatpush1.bf16.msra.mxu0 0
    %1572 = vmatprep.subr.bf16.mxu0 0
    %1573 = vmatpush1.bf16.msra.mxu0 0
    %1574 = vmatprep.subr.bf16.mxu0 0
    %1575 = vmatpush1.bf16.msra.mxu0 0
    %1576 = vmatprep.subr.bf16.mxu0 0
    %1577 = vmatpush1.bf16.msra.mxu0 0
    %1578 = vmatprep.subr.bf16.mxu0 0
    %1579 = vmatpush1.bf16.msra.mxu0 0
    %1580 = vmatprep.subr.bf16.mxu0 0
    %1581 = vmatpush1.bf16.msra.mxu0 0
    %1582 = vmatprep.subr.bf16.mxu0 0
    %1583 = vmatpush1.bf16.msra.mxu0 0
    %1584 = vmatprep.subr.bf16.mxu0 0
    %1585 = vmatpush1.bf16.msra.mxu0 0
    %1586 = vmatprep.subr.bf16.mxu0 0
    %1587 = vmatpush1.bf16.msra.mxu0 0
    %1588 = vmatprep.subr.bf16.mxu0 0
    %1589 = vmatpush1.bf16.msra.mxu0 0
    %1590 = vmatprep.mubr.bf16.mxu0 0
    %1591 = vmatmul.mubr.bf16.gmra.mrb[0].mxu0 %v1556
    %v1592 = vpop.f32.mrb[0].mxu0
    %v1593 = vadd.f32 0.0, %v1592
    %v1594 = vpop.f32.mrb[0].mxu0
    %v1595 = vpop.f32.mrb[0].mxu0
    %v1596 = vpop.f32.mrb[0].mxu0
    %1597 = vdwg.mxu0
    %v1598 = vadd.f32 %v1553, %v1593
    %v1599 = vxor.u32 %v1598, 2147483648
    %v1600 = vmul.f32 %v1599, 1.442695
    %v1601 = vpow.pop %v1600
    %v1602 = vadd.f32 %v1601, 1.0
    %v1603 = vrcp.pop %v1602
    %v1604 = vmul.f32 1.0, %v1603
    %v1605 = vtanh.pop %v1598
    %1607 = vrot.lane.b32.xlu0 %v1552, 32
    %v1608 = vpop.permute.xlu0 %1607
    %v1610 = vmul.f32 %v1604, %v1608
    %1612 = vrot.lane.b32.xlu0 %v1605, 32
    %v1613 = vpop.permute.xlu0 %1612
    %v1615 = vmul.f32 %v1604, %v1613
    %1617 = vrot.lane.b32.xlu0 %v1615, 32
    %v1618 = vpop.permute.xlu0 %1617
    %v1620 = vadd.f32 %v1610, %v1618
    %v1621 = vtanh.pop %v1620
    %1623 = vrot.lane.b32.xlu0 %v1621, 32
    %v1624 = vpop.permute.xlu0 %1623
    %v1626 = vmul.f32 %v1604, %v1624
    %1628 = vrot.lane.b32.xlu0 %v1626, 64
    %v1629 = vpop.permute.xlu0 %1628
    %1631 = vst.msk [vmem:[%s1015] sm:$0xff] %vm196, %v1629
    %1633 = vrot.lane.b32.xlu0 %v1620, 96
    %v1634 = vpop.permute.xlu0 %1633
    %1636 = vst.msk [vmem:[%s1017] sm:$0xff] %vm196, %v1634
    %1637 = vst.msk [vmem:[#allocation4 + $0x30] sm:$0xff] %vm196, %v1629
    %v1638 = vld [vmem:[%s1015] sm:$0xff]
    %v1639 = vld [vmem:[%s1017] sm:$0xff]
    %v1640 = vld [vmem:[#allocation5 + $0x38] sm:$0xff]
    %v1641 = vpack.c.bf16 %v1638, %v1638
    %v1643 = vsel %vm196, %v1641, 0
    %1645 = vmatprep.subr.bf16.mxu0 0
    %1646 = vmatpush1.bf16.msra.mxu0 %v1029
    %1647 = vmatprep.subr.bf16.mxu0 0
    %1648 = vmatpush1.bf16.msra.mxu0 %v1030
    %1649 = vmatprep.subr.bf16.mxu0 0
    %1650 = vmatpush1.bf16.msra.mxu0 0
    %1651 = vmatprep.subr.bf16.mxu0 0
    %1652 = vmatpush1.bf16.msra.mxu0 0
    %1653 = vmatprep.subr.bf16.mxu0 0
    %1654 = vmatpush1.bf16.msra.mxu0 0
    %1655 = vmatprep.subr.bf16.mxu0 0
    %1656 = vmatpush1.bf16.msra.mxu0 0
    %1657 = vmatprep.subr.bf16.mxu0 0
    %1658 = vmatpush1.bf16.msra.mxu0 0
    %1659 = vmatprep.subr.bf16.mxu0 0
    %1660 = vmatpush1.bf16.msra.mxu0 0
    %1661 = vmatprep.subr.bf16.mxu0 0
    %1662 = vmatpush1.bf16.msra.mxu0 0
    %1663 = vmatprep.subr.bf16.mxu0 0
    %1664 = vmatpush1.bf16.msra.mxu0 0
    %1665 = vmatprep.subr.bf16.mxu0 0
    %1666 = vmatpush1.bf16.msra.mxu0 0
    %1667 = vmatprep.subr.bf16.mxu0 0
    %1668 = vmatpush1.bf16.msra.mxu0 0
    %1669 = vmatprep.subr.bf16.mxu0 0
    %1670 = vmatpush1.bf16.msra.mxu0 0
    %1671 = vmatprep.subr.bf16.mxu0 0
    %1672 = vmatpush1.bf16.msra.mxu0 0
    %1673 = vmatprep.subr.bf16.mxu0 0
    %1674 = vmatpush1.bf16.msra.mxu0 0
    %1675 = vmatprep.subr.bf16.mxu0 0
    %1676 = vmatpush1.bf16.msra.mxu0 0
    %1677 = vmatprep.mubr.bf16.mxu0 0
    %1678 = vmatmul.mubr.bf16.gmra.mrb[0].mxu0 %v1643
    %v1679 = vpop.f32.mrb[0].mxu0
    %v1680 = vadd.f32 0.0, %v1679
    %v1681 = vpop.f32.mrb[0].mxu0
    %v1682 = vpop.f32.mrb[0].mxu0
    %v1683 = vpop.f32.mrb[0].mxu0
    %1684 = vdwg.mxu0
    %v1685 = vadd.f32 %v1640, %v1680
    %v1686 = vxor.u32 %v1685, 2147483648
    %v1687 = vmul.f32 %v1686, 1.442695
    %v1688 = vpow.pop %v1687
    %v1689 = vadd.f32 %v1688, 1.0
    %v1690 = vrcp.pop %v1689
    %v1691 = vmul.f32 1.0, %v1690
    %v1692 = vtanh.pop %v1685
    %1694 = vrot.lane.b32.xlu0 %v1639, 32
    %v1695 = vpop.permute.xlu0 %1694
    %v1697 = vmul.f32 %v1691, %v1695
    %1699 = vrot.lane.b32.xlu0 %v1692, 32
    %v1700 = vpop.permute.xlu0 %1699
    %v1702 = vmul.f32 %v1691, %v1700
    %1704 = vrot.lane.b32.xlu0 %v1702, 32
    %v1705 = vpop.permute.xlu0 %1704
    %v1707 = vadd.f32 %v1697, %v1705
    %v1708 = vtanh.pop %v1707
    %1710 = vrot.lane.b32.xlu0 %v1708, 32
    %v1711 = vpop.permute.xlu0 %1710
    %v1713 = vmul.f32 %v1691, %v1711
    %1715 = vrot.lane.b32.xlu0 %v1713, 64
    %v1716 = vpop.permute.xlu0 %1715
    %1718 = vst.msk [vmem:[%s1015] sm:$0xff] %vm196, %v1716
    %1720 = vrot.lane.b32.xlu0 %v1707, 96
    %v1721 = vpop.permute.xlu0 %1720
    %1723 = vst.msk [vmem:[%s1017] sm:$0xff] %vm196, %v1721
    %1724 = vst.msk [vmem:[#allocation4 + $0x38] sm:$0xff] %vm196, %v1716
    %v1725 = vld [vmem:[#allocation4] sm:$0xff]
    %v1726 = vld [vmem:[#allocation4 + $0x8] sm:$0xff]
    %v1727 = vld [vmem:[#allocation4 + $0x10] sm:$0xff]
    %v1728 = vld [vmem:[#allocation4 + $0x18] sm:$0xff]
    %v1729 = vld [vmem:[#allocation4 + $0x20] sm:$0xff]
    %v1730 = vld [vmem:[#allocation4 + $0x28] sm:$0xff]
    %v1731 = vld [vmem:[#allocation4 + $0x30] sm:$0xff]
    %v1732 = vld [vmem:[#allocation4 + $0x38] sm:$0xff]
    %v1733 = vpack.c.bf16 %v1726, %v1725
    %v1734 = vpack.c.bf16 %v1728, %v1727
    %v1735 = vpack.c.bf16 %v1730, %v1729
    %v1736 = vpack.c.bf16 %v1732, %v1731
    %v1737 = vld [vmem:[%s5] sm:$0xf]
    %v1738 = vld [vmem:[%s5 + $0x4] sm:$0xf]
    %v1739 = vld [vmem:[%s5 + $0x8] sm:$0xf]
    %v1740 = vld [vmem:[%s5 + $0xc] sm:$0xf]
    %v1741 = vld [vmem:[%s6] sm:$0x1]
    %v1743 = vlaneseq
    %v1744 = vshrl.u32 %v1743, 7
    %v1745 = vsub.s32 0, %v1744
    %v1746 = vrot.slane %v1741, %v1745
    %v1752 = vunpack.c.l.b16 %v1737
    %v1753 = vunpack.c.l.b16 %v1738
    %v1754 = vunpack.c.l.b16 %v1739
    %v1755 = vunpack.c.l.b16 %v1740
    %v1756 = vpack.c.b16 %v1753, %v1752
    %v1757 = vpack.c.b16 %v1755, %v1754
    %v1761 = vsel %vm196, %v1733, 0
    %v1764 = vsel %vm196, %v1734, 0
    %v1767 = vsel %vm196, %v1735, 0
    %v1770 = vsel %vm196, %v1736, 0
    %1772 = vmatprep.subr.bf16.mxu0 0
    %1773 = vmatpush1.bf16.msra.mxu0 %v1756
    %1774 = vmatprep.subr.bf16.mxu0 0
    %1775 = vmatpush1.bf16.msra.mxu0 %v1757
    %1776 = vmatprep.subr.bf16.mxu0 0
    %1777 = vmatpush1.bf16.msra.mxu0 0
    %1778 = vmatprep.subr.bf16.mxu0 0
    %1779 = vmatpush1.bf16.msra.mxu0 0
    %1780 = vmatprep.subr.bf16.mxu0 0
    %1781 = vmatpush1.bf16.msra.mxu0 0
    %1782 = vmatprep.subr.bf16.mxu0 0
    %1783 = vmatpush1.bf16.msra.mxu0 0
    %1784 = vmatprep.subr.bf16.mxu0 0
    %1785 = vmatpush1.bf16.msra.mxu0 0
    %1786 = vmatprep.subr.bf16.mxu0 0
    %1787 = vmatpush1.bf16.msra.mxu0 0
    %1788 = vmatprep.subr.bf16.mxu0 0
    %1789 = vmatpush1.bf16.msra.mxu0 0
    %1790 = vmatprep.subr.bf16.mxu0 0
    %1791 = vmatpush1.bf16.msra.mxu0 0
    %1792 = vmatprep.subr.bf16.mxu0 0
    %1793 = vmatpush1.bf16.msra.mxu0 0
    %1794 = vmatprep.subr.bf16.mxu0 0
    %1795 = vmatpush1.bf16.msra.mxu0 0
    %1796 = vmatprep.subr.bf16.mxu0 0
    %1797 = vmatpush1.bf16.msra.mxu0 0
    %1798 = vmatprep.subr.bf16.mxu0 0
    %1799 = vmatpush1.bf16.msra.mxu0 0
    %1800 = vmatprep.subr.bf16.mxu0 0
    %1801 = vmatpush1.bf16.msra.mxu0 0
    %1802 = vmatprep.subr.bf16.mxu0 0
    %1803 = vmatpush1.bf16.msra.mxu0 0
    %1804 = vmatprep.mubr.bf16.mxu0 0
    %1805 = vmatmul.mubr.bf16.gmra.mrb[0].mxu0 %v1761
    %v1806 = vpop.f32.mrb[0].mxu0
    %v1807 = vadd.f32 %v1746, %v1806
    %v1808 = vpop.f32.mrb[0].mxu0
    %v1809 = vpop.f32.mrb[0].mxu0
    %v1810 = vadd.f32 %v1746, %v1809
    %v1811 = vpop.f32.mrb[0].mxu0
    %1812 = vmatprep.mubr.bf16.mxu0 0
    %1813 = vmatmul.mubr.bf16.gmra.mrb[0].mxu0 %v1764
    %v1814 = vpop.f32.mrb[0].mxu0
    %v1815 = vadd.f32 %v1746, %v1814
    %v1816 = vpop.f32.mrb[0].mxu0
    %v1817 = vpop.f32.mrb[0].mxu0
    %v1818 = vadd.f32 %v1746, %v1817
    %v1819 = vpop.f32.mrb[0].mxu0
    %1820 = vmatprep.mubr.bf16.mxu0 0
    %1821 = vmatmul.mubr.bf16.gmra.mrb[0].mxu0 %v1767
    %v1822 = vpop.f32.mrb[0].mxu0
    %v1823 = vadd.f32 %v1746, %v1822
    %v1824 = vpop.f32.mrb[0].mxu0
    %v1825 = vpop.f32.mrb[0].mxu0
    %v1826 = vadd.f32 %v1746, %v1825
    %v1827 = vpop.f32.mrb[0].mxu0
    %1828 = vmatprep.mubr.bf16.mxu0 0
    %1829 = vmatmul.mubr.bf16.gmra.mrb[0].mxu0 %v1770
    %v1830 = vpop.f32.mrb[0].mxu0
    %v1831 = vadd.f32 %v1746, %v1830
    %v1832 = vpop.f32.mrb[0].mxu0
    %v1833 = vpop.f32.mrb[0].mxu0
    %v1834 = vadd.f32 %v1746, %v1833
    %v1835 = vpop.f32.mrb[0].mxu0
    %1836 = vdwg.mxu0
    %1837 = vst [vmem:[%s7] sm:$0xff] %v1807
    %1838 = vst [vmem:[%s7 + $0x8] sm:$0xff] %v1810
    %1839 = vst [vmem:[%s7 + $0x10] sm:$0xff] %v1815
    %1840 = vst [vmem:[%s7 + $0x18] sm:$0xff] %v1818
    %1841 = vst [vmem:[%s7 + $0x20] sm:$0xff] %v1823
    %1842 = vst [vmem:[%s7 + $0x28] sm:$0xff] %v1826
    %1843 = vst [vmem:[%s7 + $0x30] sm:$0xff] %v1831
    %1844 = vst [vmem:[%s7 + $0x38] sm:$0xff] %v1834
    // Predicated region
    $region38: #{multi_lstm_forward.1} parent=1 // pred_check
      _
    $region39: #{multi_lstm_forward.1} parent=1 // pred_check_branch
      %1846 = sbr.rel (0) target = $region41
    $region40: #{multi_lstm_forward.1} parent=1 // pred_region
      _
    $region41: #{multi_lstm_forward.1} parent=1 // pred_fallthru
      _
    // Predicated region
    $region42: #{multi_lstm_forward.1} parent=1 // pred_check
      _
    $region43: #{multi_lstm_forward.1} parent=1 // pred_check_branch
      %1848 = sbr.rel (0) target = $region45
    $region44: #{multi_lstm_forward.1} parent=1 // pred_region
      _
    $region45: #{multi_lstm_forward.1} parent=1 // pred_fallthru
      _
    %1849 = vsyncpa [#allocation7], 1

</llo_original>
